<compile_context>
chip_gen: v7x
topology: tpu7x:2x2x1
jax: 0.10.0
libtpu: 0.0.40
codegen_flags: <defaults>
</compile_context>

<pallas_src>
import functools
import numpy as np

import jax
import jax.numpy as jnp
from jax.experimental import pallas as pl
from jax.experimental.pallas import tpu as pltpu


# --------------------------------------------------------------------------- #
# config (small, deterministic, consistent with the module's __init__)
# --------------------------------------------------------------------------- #
class Config:
    task_name = "supervised"
    enc_in = 4            # EEG channels C
    d_model = 32          # D
    n_heads = 4
    d_ff = 64
    e_layers = 2
    num_class = 5
    dropout = 0.0
    activation = "relu"
    output_attention = False
    factor = 1
    mask_ratio = 0.5
    seq_len = 16          # T (time samples)
    pooling_size = 2      # hard-coded to 2 in the module
    spatial_kernel = 8    # original EEG2Rep uses k=40; scaled down for small T


# --------------------------------------------------------------------------- #
# host-side layout helpers (shared by init_params and the kernel)
# --------------------------------------------------------------------------- #
def _r8(x):
    return (x + 7) // 8 * 8


def _mats_layout(B, T, C, D, L):
    """Row layout of the bf16 'mats' slab (lane width = max(B*T, D))."""
    BT, BL = B * T, B * L
    o, r = {}, 0
    o["M1"] = (r, BT); r += BT          # block-diag reflect+conv #1   [BT, BT]
    o["Se"] = (r, BL); r += BL          # pooling select (even)        [BL, BT]
    o["So"] = (r, BL); r += BL          # pooling select (odd)         [BL, BT]
    o["M2"] = (r, BL); r += BL          # block-diag reflect+conv #2   [BL, BL]
    r = _r8(r); o["poolm"] = (r, B); r += B     # mean-pool matrix     [B, BL]
    r = _r8(r); o["wd"] = (r, C); r += C        # depthwise conv w^T   [C, D]
    r = _r8(r); o["projw"] = (r, D); r += D     # classifier weight    [D, nc]
    return o, _r8(r)


def _vecs_layout(D, F, L, B, nl):
    """Row layout of the f32 'vecs' slab (lane width = 3*D)."""
    BL = B * L
    o, r = {}, 0
    o["ln"] = (r, 4 * nl + 6); r += 4 * nl + 6   # all LayerNorm gamma/beta
    r = _r8(r)
    o["pe"] = (r, BL); r += BL                   # positional encoding [BL, D]
    o["mask"] = (r, BL); r += BL                 # additive attn mask  [BL, BL]
    o["bd"] = (r, 1); r += 1                     # depthwise conv bias [1, D]
    o["cb1"] = (r, 1); r += 1                    # spatial conv1 bias  [1, D]
    o["cb2"] = (r, 1); r += 1                    # spatial conv2 bias  [1, D]
    o["projb"] = (r, 1); r += 1                  # classifier bias     [1, nc]
    o["bqkv"] = (r, nl); r += nl                 # fused qkv bias      [1, 3D]
    o["bo"] = (r, nl); r += nl                   # out-proj bias       [1, D]
    o["b1"] = (r, nl); r += nl                   # ffn1 bias           [1, F]
    o["b2"] = (r, nl); r += nl                   # ffn2 bias           [1, D]
    return o, _r8(r)


def _conv_matrix_np(t, taps, K):
    """Combined ReflectionPad1d(((K-1)//2, K-1-(K-1)//2)) + K-tap conv, [t, t]."""
    pad_l = (K - 1) // 2
    M = np.zeros((t, t), np.float32)
    for i in range(t):
        for j in range(K):
            p = i + j - pad_l
            if p < 0:
                p = -p
            elif p > t - 1:
                p = 2 * (t - 1) - p
            M[i, p] += float(taps[j])
    return M


def _block_diag_np(M, B):
    t = M.shape[0]
    out = np.zeros((B * t, B * t), np.float32)
    for b in range(B):
        out[b * t:(b + 1) * t, b * t:(b + 1) * t] = M
    return out


def _sinusoidal_pe(length, d_model):
    position = np.arange(length, dtype=np.float32)[:, None]
    div_term = np.exp(np.arange(0, d_model, 2, dtype=np.float32)
                      * -(np.log(10000.0) / d_model))
    pe = np.zeros((length, d_model), np.float32)
    pe[:, 0::2] = np.sin(position * div_term)
    pe[:, 1::2] = np.cos(position * div_term)
    return pe


# --------------------------------------------------------------------------- #
# the single fused forward kernel
# --------------------------------------------------------------------------- #
def _fused_forward_kernel(x_ref, mats_ref, lw_ref, vecs_ref, o_ref,
                          *, B, T, D, H, F, L, nl, nc, mo, vo):
    f32, bf16 = jnp.float32, jnp.bfloat16
    BL, BT = B * L, B * T
    dh = D // H
    scale = 1.0 / float(dh) ** 0.5

    def bdot(a, b):
        # bf16 operands at the MXU, f32 accumulation; elementwise stays f32.
        return jnp.dot(a.astype(bf16), b.astype(bf16),
                       preferred_element_type=f32)

    def mslab(name, width):
        s, n = mo[name]
        return mats_ref[s:s + n, 0:width]

    def vrow(name, l, width):
        s, _ = vo[name]
        return vecs_ref[s + l:s + l + 1, 0:width]

    def layernorm(a, idx):
        base = vo["ln"][0] + idx
        g = vecs_ref[base:base + 1, 0:D]
        b = vecs_ref[base + 1:base + 2, 0:D]
        mu = jnp.mean(a, axis=-1, keepdims=True)
        ac = a - mu
        var = jnp.mean(ac * ac, axis=-1, keepdims=True)
        return ac * jax.lax.rsqrt(var + 1e-5) * g + b

    # ---- EEG2Rep embedding, all B batches fused via block-diagonal mats ---- #
    x = x_ref[...]                                              # [BT, C] f32
    h = bdot(x, mslab("wd", D)) + vrow("bd", 0, D)              # [BT, D]
    c1 = bdot(mslab("M1", BT), h) + vrow("cb1", 0, D)           # reflect+conv1
    c1 = c1 * jax.nn.sigmoid(c1)                                # SiLU
    p1 = jnp.maximum(bdot(mslab("Se", BT), c1),
                     bdot(mslab("So", BT), c1))                 # MaxPool(2) -> [BL, D]
    c2 = bdot(mslab("M2", BL), p1) + vrow("cb2", 0, D)          # reflect+conv2

    # ---- pre-encoder: LayerNorm -> +PE -> LayerNorm ------------------------ #
    z = layernorm(c2, 0)
    pe = vecs_ref[vo["pe"][0]:vo["pe"][0] + BL, 0:D]
    z = layernorm(z + pe, 2)

    # additive cross-batch mask (0 in-batch, -1e9 across batches), [BL, BL]
    mask = vecs_ref[vo["mask"][0]:vo["mask"][0] + BL, 0:BL]

    # ---- Transformer encoder layers (block-diagonal attention) ------------- #
    for l in range(nl):
        lw = lw_ref[l]                                          # [3D+F, 3D] bf16
        wqkv = lw[0:D, 0:3 * D]
        wo = lw[D:2 * D, 0:D]
        w1 = lw[2 * D:3 * D, 0:F]
        w2 = lw[3 * D:3 * D + F, 0:D]

        qkv = bdot(z, wqkv) + vrow("bqkv", l, 3 * D)            # [BL, 3D]

        heads = []
        for hh in range(H):                                     # H=4, unrolled
            q = qkv[:, hh * dh:(hh + 1) * dh]
            k = qkv[:, D + hh * dh:D + (hh + 1) * dh]
            v = qkv[:, 2 * D + hh * dh:2 * D + (hh + 1) * dh]
            # q @ k^T over ALL batches at once; cross-batch blocks masked out.
            s = jax.lax.dot_general(q.astype(bf16), k.astype(bf16),
                                    (((1,), (1,)), ((), ())),
                                    preferred_element_type=f32) * scale + mask
            s = s - jnp.max(s, axis=-1, keepdims=True)
            p = jnp.exp(s)
            p = p * pl.reciprocal(jnp.sum(p, axis=-1, keepdims=True),
                                  approx=False)
            heads.append(bdot(p, v))                            # [BL, dh]
        ctx = jnp.concatenate(heads, axis=-1)                   # [BL, D]
        attn = bdot(ctx, wo) + vrow("bo", l, D)                 # single wo matmul

        z1 = layernorm(z + attn, 4 + 4 * l)
        y = bdot(z1, w1) + vrow("b1", l, F)
        y = jnp.maximum(y, 0.0)                                 # activation == 'relu'
        y = bdot(y, w2) + vrow("b2", l, D)
        z = layernorm(z1 + y, 6 + 4 * l)

    # ---- encoder final LayerNorm -> mean over L -> classification head ----- #
    zf = layernorm(z, 4 + 4 * nl)
    pooled = bdot(mslab("poolm", BL), zf)                       # [B, D]
    o_ref[...] = bdot(pooled, mslab("projw", nc)) + vrow("projb", 0, nc)


# --------------------------------------------------------------------------- #
# wrapper: one pallas_call for the whole forward pass (jitted)
# --------------------------------------------------------------------------- #
def make_forward(cfg, batch_size):
    B, T, C = batch_size, cfg.seq_len, cfg.enc_in
    D, F, H = cfg.d_model, cfg.d_ff, cfg.n_heads
    nl, nc = cfg.e_layers, cfg.num_class
    L = T // cfg.pooling_size

    mo, mrows = _mats_layout(B, T, C, D, L)
    vo, vrows = _vecs_layout(D, F, L, B, nl)
    mw = max(B * T, D)

    kern = functools.partial(_fused_forward_kernel, B=B, T=T, D=D, H=H, F=F,
                             L=L, nl=nl, nc=nc, mo=mo, vo=vo)

    def vfull(shape):
        nd = len(shape)
        return pl.BlockSpec(shape, lambda i, nd=nd: (0,) * nd)

    call = pl.pallas_call(
        kern,
        out_shape=jax.ShapeDtypeStruct((B, nc), jnp.float32),
        grid=(1,),
        in_specs=[vfull((B * T, C)),               # x (flattened batch)
                  vfull((mrows, mw)),              # structural mats + wd + projw (bf16)
                  vfull((nl, 3 * D + F, 3 * D)),   # per-layer weight slab (bf16)
                  vfull((vrows, 3 * D))],          # LN / PE / mask / biases (f32)
        out_specs=pl.BlockSpec((B, nc), lambda i: (0, 0)),
        compiler_params=pltpu.CompilerParams(
            dimension_semantics=("arbitrary",)),
    )

    @jax.jit
    def fwd(packed, x_enc):
        x2d = x_enc.reshape(B * T, C).astype(jnp.float32)
        return call(x2d, packed["mats"], packed["lw"], packed["vecs"])

    return fwd


# --------------------------------------------------------------------------- #
# parameter init: builds raw weights, precomputes structural matrices, packs
# everything into the 3 slabs the kernel consumes.
# --------------------------------------------------------------------------- #
def init_params(key, cfg, batch_size):
    B, T, C = batch_size, cfg.seq_len, cfg.enc_in
    D, F = cfg.d_model, cfg.d_ff
    K, nl, nc = cfg.spatial_kernel, cfg.e_layers, cfg.num_class
    pool = cfg.pooling_size
    L = T // pool
    BL, BT = B * L, B * T

    keys = iter(jax.random.split(key, 64))

    def w(shape, scale=0.02):
        return np.asarray(scale * jax.random.normal(next(keys), shape),
                          dtype=np.float32)

    # --- raw parameters (torch-module layout, transposed for right-matmul) -- #
    wd = w((C, D))                      # depthwise Conv2d(1, D, (C, 1)) weight^T
    bd = w((D,))
    taps1, cb1 = w((K,), 0.1), w((D,))  # spatial conv #1 taps + per-channel bias
    taps2, cb2 = w((K,), 0.1), w((D,))  # spatial conv #2 taps + per-channel bias
    wqkv = w((nl, D, 3 * D))            # Wq || Wk || Wv fused
    wo_w = w((nl, D, D))
    w1 = w((nl, D, F))
    w2 = w((nl, F, D))
    bqkv = w((nl, 3 * D))
    bo_b = w((nl, D))
    b1 = w((nl, F))
    b2 = w((nl, D))
    projw = w((D, nc))
    projb = w((nc,))

    # --- precomputed structural matrices (hoisted out of the kernel) -------- #
    M1 = _block_diag_np(_conv_matrix_np(T, taps1, K), B)        # [BT, BT]
    M2 = _block_diag_np(_conv_matrix_np(L, taps2, K), B)        # [BL, BL]
    Se = np.zeros((BL, BT), np.float32)
    So = np.zeros((BL, BT), np.float32)
    for r in range(BL):
        b, lr = divmod(r, L)
        Se[r, b * T + pool * lr] = 1.0
        So[r, b * T + pool * lr + 1] = 1.0
    poolm = np.zeros((B, BL), np.float32)
    for b in range(B):
        poolm[b, b * L:(b + 1) * L] = 1.0 / L
    mask = np.full((BL, BL), -1e9, np.float32)
    for b in range(B):
        mask[b * L:(b + 1) * L, b * L:(b + 1) * L] = 0.0
    pe = np.tile(_sinusoidal_pe(L, D), (B, 1))                  # [BL, D]
    ln = np.zeros((4 * nl + 6, D), np.float32)                  # gammas=1, betas=0
    ln[0::2, :] = 1.0

    # --- pack: mats (bf16), lw (bf16), vecs (f32) ---------------------------- #
    mo, mrows = _mats_layout(B, T, C, D, L)
    mats = np.zeros((mrows, max(BT, D)), np.float32)

    def put_m(name, arr):
        s, n = mo[name]
        mats[s:s + n, :arr.shape[1]] = arr

    put_m("M1", M1); put_m("Se", Se); put_m("So", So); put_m("M2", M2)
    put_m("poolm", poolm); put_m("wd", wd); put_m("projw", projw)

    lw = np.zeros((nl, 3 * D + F, 3 * D), np.float32)
    for l in range(nl):
        lw[l, 0:D, 0:3 * D] = wqkv[l]
        lw[l, D:2 * D, 0:D] = wo_w[l]
        lw[l, 2 * D:3 * D, 0:F] = w1[l]
        lw[l, 3 * D:3 * D + F, 0:D] = w2[l]

    vo, vrows = _vecs_layout(D, F, L, B, nl)
    vecs = np.zeros((vrows, 3 * D), np.float32)

    def put_v(name, arr):
        s, n = vo[name]
        arr = np.atleast_2d(arr)
        vecs[s:s + n, :arr.shape[1]] = arr

    put_v("ln", ln); put_v("pe", pe); put_v("mask", mask)
    put_v("bd", bd); put_v("cb1", cb1); put_v("cb2", cb2); put_v("projb", projb)
    put_v("bqkv", bqkv); put_v("bo", bo_b); put_v("b1", b1); put_v("b2", b2)

    return {"mats": jnp.asarray(mats, jnp.bfloat16),
            "lw": jnp.asarray(lw, jnp.bfloat16),
            "vecs": jnp.asarray(vecs, jnp.float32)}


# --------------------------------------------------------------------------- #
if __name__ == "__main__":
    cfg = Config()
    B = 2
    key = jax.random.PRNGKey(0)
    pkey, xkey = jax.random.split(key)

    packed = init_params(pkey, cfg, B)
    fwd = make_forward(cfg, B)

    x_enc = jax.random.normal(xkey, (B, cfg.seq_len, cfg.enc_in),
                              dtype=jnp.float32)
    out = jax.block_until_ready(fwd(packed, x_enc))

    assert out.shape == (B, cfg.num_class), out.shape
    assert bool(jnp.all(jnp.isfinite(out)))
    print("KERNEL_OK")
</pallas_src>

<mosaic_0001>
module attributes {stable_mosaic.version = 11 : i64} {
  func.func @_fused_forward_kernel(%arg0: i32, %arg1: memref<32x4xf32, #tpu.memory_space<vmem>>, %arg2: memref<128x32xbf16, #tpu.memory_space<vmem>>, %arg3: memref<2x160x96xbf16, #tpu.memory_space<vmem>>, %arg4: memref<64x96xf32, #tpu.memory_space<vmem>>, %arg5: memref<2x5xf32, #tpu.memory_space<vmem>>) attributes {dimension_semantics = [#tpu.dimension_semantics<arbitrary>], iteration_bounds = array<i64: 1>, scalar_prefetch = 0 : i64, scratch_operands = 0 : i64, tpu.core_type = #tpu.core_type<tc>, window_params = [{pipeline_mode = #tpu.pipeline_mode<synchronous>, transform_indices = @transform_0, window_bounds = array<i64: 32, 4>}, {pipeline_mode = #tpu.pipeline_mode<synchronous>, transform_indices = @transform_1, window_bounds = array<i64: 128, 32>}, {pipeline_mode = #tpu.pipeline_mode<synchronous>, transform_indices = @transform_2, window_bounds = array<i64: 2, 160, 96>}, {pipeline_mode = #tpu.pipeline_mode<synchronous>, transform_indices = @transform_3, window_bounds = array<i64: 64, 96>}, {pipeline_mode = #tpu.pipeline_mode<synchronous>, transform_indices = @transform_4, window_bounds = array<i64: 2, 5>}]} {
    %c0 = arith.constant 0 : index
    %c0_0 = arith.constant 0 : index
    %0 = vector.load %arg1[%c0, %c0_0] : memref<32x4xf32, #tpu.memory_space<vmem>>, vector<32x4xf32>
    %c88 = arith.constant 88 : index
    %c0_1 = arith.constant 0 : index
    %1 = vector.load %arg2[%c88, %c0_1] : memref<128x32xbf16, #tpu.memory_space<vmem>>, vector<4x32xbf16>
    %2 = arith.truncf %0 : vector<32x4xf32> to vector<32x4xbf16>
    %cst = arith.constant dense<0.000000e+00> : vector<32x32xf32>
    %3 = tpu.matmul %2, %1, %cst {dimension_numbers = #tpu.dot_dimension_numbers<[1], [0], [0], [1], [0, 0, 1, 1], [], []>} : vector<32x4xbf16>, vector<4x32xbf16>, vector<32x32xf32> -> vector<32x32xf32>
    %c48 = arith.constant 48 : index
    %c0_2 = arith.constant 0 : index
    %4 = vector.load %arg4[%c48, %c0_2] : memref<64x96xf32, #tpu.memory_space<vmem>>, vector<1x32xf32>
    %5 = vector.broadcast %4 : vector<1x32xf32> to vector<32x32xf32>
    %6 = arith.addf %3, %5 : vector<32x32xf32>
    %c0_3 = arith.constant 0 : index
    %c0_4 = arith.constant 0 : index
    %7 = vector.load %arg2[%c0_3, %c0_4] : memref<128x32xbf16, #tpu.memory_space<vmem>>, vector<32x32xbf16>
    %8 = arith.truncf %6 : vector<32x32xf32> to vector<32x32xbf16>
    %cst_5 = arith.constant dense<0.000000e+00> : vector<32x32xf32>
    %9 = tpu.matmul %7, %8, %cst_5 {dimension_numbers = #tpu.dot_dimension_numbers<[1], [0], [0], [1], [0, 0, 1, 1], [], []>} : vector<32x32xbf16>, vector<32x32xbf16>, vector<32x32xf32> -> vector<32x32xf32>
    %c49 = arith.constant 49 : index
    %c0_6 = arith.constant 0 : index
    %10 = vector.load %arg4[%c49, %c0_6] : memref<64x96xf32, #tpu.memory_space<vmem>>, vector<1x32xf32>
    %11 = vector.broadcast %10 : vector<1x32xf32> to vector<32x32xf32>
    %12 = arith.addf %9, %11 : vector<32x32xf32>
    %13 = arith.negf %12 : vector<32x32xf32>
    %14 = math.exp %13 : vector<32x32xf32>
    %cst_7 = arith.constant 1.000000e+00 : f32
    %15 = vector.broadcast %cst_7 : f32 to vector<32x32xf32>
    %16 = arith.addf %15, %14 : vector<32x32xf32>
    %17 = arith.divf %15, %16 : vector<32x32xf32>
    %18 = arith.mulf %12, %17 : vector<32x32xf32>
    %c32 = arith.constant 32 : index
    %c0_8 = arith.constant 0 : index
    %19 = vector.load %arg2[%c32, %c0_8] : memref<128x32xbf16, #tpu.memory_space<vmem>>, vector<16x32xbf16>
    %20 = arith.truncf %18 : vector<32x32xf32> to vector<32x32xbf16>
    %cst_9 = arith.constant dense<0.000000e+00> : vector<16x32xf32>
    %21 = tpu.matmul %19, %20, %cst_9 {dimension_numbers = #tpu.dot_dimension_numbers<[1], [0], [0], [1], [0, 0, 1, 1], [], []>} : vector<16x32xbf16>, vector<32x32xbf16>, vector<16x32xf32> -> vector<16x32xf32>
    %c48_10 = arith.constant 48 : index
    %c0_11 = arith.constant 0 : index
    %22 = vector.load %arg2[%c48_10, %c0_11] : memref<128x32xbf16, #tpu.memory_space<vmem>>, vector<16x32xbf16>
    %23 = arith.truncf %18 : vector<32x32xf32> to vector<32x32xbf16>
    %cst_12 = arith.constant dense<0.000000e+00> : vector<16x32xf32>
    %24 = tpu.matmul %22, %23, %cst_12 {dimension_numbers = #tpu.dot_dimension_numbers<[1], [0], [0], [1], [0, 0, 1, 1], [], []>} : vector<16x32xbf16>, vector<32x32xbf16>, vector<16x32xf32> -> vector<16x32xf32>
    %25 = arith.maximumf %21, %24 : vector<16x32xf32>
    %c64 = arith.constant 64 : index
    %c0_13 = arith.constant 0 : index
    %26 = vector.load %arg2[%c64, %c0_13] : memref<128x32xbf16, #tpu.memory_space<vmem>>, vector<16x16xbf16>
    %27 = arith.truncf %25 : vector<16x32xf32> to vector<16x32xbf16>
    %cst_14 = arith.constant dense<0.000000e+00> : vector<16x32xf32>
    %28 = tpu.matmul %26, %27, %cst_14 {dimension_numbers = #tpu.dot_dimension_numbers<[1], [0], [0], [1], [0, 0, 1, 1], [], []>} : vector<16x16xbf16>, vector<16x32xbf16>, vector<16x32xf32> -> vector<16x32xf32>
    %c50 = arith.constant 50 : index
    %c0_15 = arith.constant 0 : index
    %29 = vector.load %arg4[%c50, %c0_15] : memref<64x96xf32, #tpu.memory_space<vmem>>, vector<1x32xf32>
    %30 = vector.broadcast %29 : vector<1x32xf32> to vector<16x32xf32>
    %31 = arith.addf %28, %30 : vector<16x32xf32>
    %c0_16 = arith.constant 0 : index
    %c0_17 = arith.constant 0 : index
    %32 = vector.load %arg4[%c0_16, %c0_17] : memref<64x96xf32, #tpu.memory_space<vmem>>, vector<1x32xf32>
    %c1 = arith.constant 1 : index
    %c0_18 = arith.constant 0 : index
    %33 = vector.load %arg4[%c1, %c0_18] : memref<64x96xf32, #tpu.memory_space<vmem>>, vector<1x32xf32>
    %cst_19 = arith.constant dense<0.000000e+00> : vector<16xf32>
    %34 = vector.multi_reduction <add>, %31, %cst_19 [1] : vector<16x32xf32> to vector<16xf32>
    %35 = vector.shape_cast %34 : vector<16xf32> to vector<16x1xf32>
    %cst_20 = arith.constant 3.200000e+01 : f32
    %36 = vector.broadcast %cst_20 : f32 to vector<16x1xf32>
    %37 = arith.divf %35, %36 : vector<16x1xf32>
    %38 = vector.broadcast %37 : vector<16x1xf32> to vector<16x32xf32>
    %39 = arith.subf %31, %38 : vector<16x32xf32>
    %40 = arith.mulf %39, %39 : vector<16x32xf32>
    %cst_21 = arith.constant dense<0.000000e+00> : vector<16xf32>
    %41 = vector.multi_reduction <add>, %40, %cst_21 [1] : vector<16x32xf32> to vector<16xf32>
    %42 = vector.shape_cast %41 : vector<16xf32> to vector<16x1xf32>
    %cst_22 = arith.constant 3.200000e+01 : f32
    %43 = vector.broadcast %cst_22 : f32 to vector<16x1xf32>
    %44 = arith.divf %42, %43 : vector<16x1xf32>
    %cst_23 = arith.constant 9.99999974E-6 : f32
    %45 = vector.broadcast %cst_23 : f32 to vector<16x1xf32>
    %46 = arith.addf %44, %45 : vector<16x1xf32>
    %47 = math.rsqrt %46 : vector<16x1xf32>
    %48 = vector.broadcast %47 : vector<16x1xf32> to vector<16x32xf32>
    %49 = arith.mulf %39, %48 : vector<16x32xf32>
    %50 = vector.broadcast %32 : vector<1x32xf32> to vector<16x32xf32>
    %51 = arith.mulf %49, %50 : vector<16x32xf32>
    %52 = vector.broadcast %33 : vector<1x32xf32> to vector<16x32xf32>
    %53 = arith.addf %51, %52 : vector<16x32xf32>
    %c16 = arith.constant 16 : index
    %c0_24 = arith.constant 0 : index
    %54 = vector.load %arg4[%c16, %c0_24] : memref<64x96xf32, #tpu.memory_space<vmem>>, vector<16x32xf32>
    %55 = arith.addf %53, %54 : vector<16x32xf32>
    %c2 = arith.constant 2 : index
    %c0_25 = arith.constant 0 : index
    %56 = vector.load %arg4[%c2, %c0_25] : memref<64x96xf32, #tpu.memory_space<vmem>>, vector<1x32xf32>
    %c3 = arith.constant 3 : index
    %c0_26 = arith.constant 0 : index
    %57 = vector.load %arg4[%c3, %c0_26] : memref<64x96xf32, #tpu.memory_space<vmem>>, vector<1x32xf32>
    %cst_27 = arith.constant dense<0.000000e+00> : vector<16xf32>
    %58 = vector.multi_reduction <add>, %55, %cst_27 [1] : vector<16x32xf32> to vector<16xf32>
    %59 = vector.shape_cast %58 : vector<16xf32> to vector<16x1xf32>
    %cst_28 = arith.constant 3.200000e+01 : f32
    %60 = vector.broadcast %cst_28 : f32 to vector<16x1xf32>
    %61 = arith.divf %59, %60 : vector<16x1xf32>
    %62 = vector.broadcast %61 : vector<16x1xf32> to vector<16x32xf32>
    %63 = arith.subf %55, %62 : vector<16x32xf32>
    %64 = arith.mulf %63, %63 : vector<16x32xf32>
    %cst_29 = arith.constant dense<0.000000e+00> : vector<16xf32>
    %65 = vector.multi_reduction <add>, %64, %cst_29 [1] : vector<16x32xf32> to vector<16xf32>
    %66 = vector.shape_cast %65 : vector<16xf32> to vector<16x1xf32>
    %cst_30 = arith.constant 3.200000e+01 : f32
    %67 = vector.broadcast %cst_30 : f32 to vector<16x1xf32>
    %68 = arith.divf %66, %67 : vector<16x1xf32>
    %cst_31 = arith.constant 9.99999974E-6 : f32
    %69 = vector.broadcast %cst_31 : f32 to vector<16x1xf32>
    %70 = arith.addf %68, %69 : vector<16x1xf32>
    %71 = math.rsqrt %70 : vector<16x1xf32>
    %72 = vector.broadcast %71 : vector<16x1xf32> to vector<16x32xf32>
    %73 = arith.mulf %63, %72 : vector<16x32xf32>
    %74 = vector.broadcast %56 : vector<1x32xf32> to vector<16x32xf32>
    %75 = arith.mulf %73, %74 : vector<16x32xf32>
    %76 = vector.broadcast %57 : vector<1x32xf32> to vector<16x32xf32>
    %77 = arith.addf %75, %76 : vector<16x32xf32>
    %c32_32 = arith.constant 32 : index
    %c0_33 = arith.constant 0 : index
    %78 = vector.load %arg4[%c32_32, %c0_33] : memref<64x96xf32, #tpu.memory_space<vmem>>, vector<16x16xf32>
    %c0_34 = arith.constant 0 : index
    %c0_35 = arith.constant 0 : index
    %c0_36 = arith.constant 0 : index
    %79 = vector.load %arg3[%c0_34, %c0_35, %c0_36] : memref<2x160x96xbf16, #tpu.memory_space<vmem>>, vector<1x160x96xbf16>
    %80 = vector.shape_cast %79 : vector<1x160x96xbf16> to vector<160x96xbf16>
    %81 = vector.extract_strided_slice %80 {offsets = [0, 0], sizes = [32, 96], strides = [1, 1]} : vector<160x96xbf16> to vector<32x96xbf16>
    %82 = vector.extract_strided_slice %80 {offsets = [32, 0], sizes = [32, 32], strides = [1, 1]} : vector<160x96xbf16> to vector<32x32xbf16>
    %83 = vector.extract_strided_slice %80 {offsets = [64, 0], sizes = [32, 64], strides = [1, 1]} : vector<160x96xbf16> to vector<32x64xbf16>
    %84 = vector.extract_strided_slice %80 {offsets = [96, 0], sizes = [64, 32], strides = [1, 1]} : vector<160x96xbf16> to vector<64x32xbf16>
    %85 = arith.truncf %77 : vector<16x32xf32> to vector<16x32xbf16>
    %cst_37 = arith.constant dense<0.000000e+00> : vector<16x96xf32>
    %86 = tpu.matmul %85, %81, %cst_37 {dimension_numbers = #tpu.dot_dimension_numbers<[1], [0], [0], [1], [0, 0, 1, 1], [], []>} : vector<16x32xbf16>, vector<32x96xbf16>, vector<16x96xf32> -> vector<16x96xf32>
    %c52 = arith.constant 52 : index
    %c0_38 = arith.constant 0 : index
    %87 = vector.load %arg4[%c52, %c0_38] : memref<64x96xf32, #tpu.memory_space<vmem>>, vector<1x96xf32>
    %88 = vector.broadcast %87 : vector<1x96xf32> to vector<16x96xf32>
    %89 = arith.addf %86, %88 : vector<16x96xf32>
    %90 = vector.extract_strided_slice %89 {offsets = [0, 0], sizes = [16, 8], strides = [1, 1]} : vector<16x96xf32> to vector<16x8xf32>
    %91 = vector.extract_strided_slice %89 {offsets = [0, 32], sizes = [16, 8], strides = [1, 1]} : vector<16x96xf32> to vector<16x8xf32>
    %92 = vector.extract_strided_slice %89 {offsets = [0, 64], sizes = [16, 8], strides = [1, 1]} : vector<16x96xf32> to vector<16x8xf32>
    %93 = arith.truncf %90 : vector<16x8xf32> to vector<16x8xbf16>
    %94 = arith.truncf %91 : vector<16x8xf32> to vector<16x8xbf16>
    %cst_39 = arith.constant dense<0.000000e+00> : vector<16x16xf32>
    %95 = tpu.matmul %93, %94, %cst_39 {dimension_numbers = #tpu.dot_dimension_numbers<[1], [1], [0], [0], [0, 0, 1, 0], [], []>} : vector<16x8xbf16>, vector<16x8xbf16>, vector<16x16xf32> -> vector<16x16xf32>
    %cst_40 = arith.constant 0.353553385 : f32
    %96 = vector.broadcast %cst_40 : f32 to vector<16x16xf32>
    %97 = arith.mulf %95, %96 : vector<16x16xf32>
    %98 = arith.addf %97, %78 : vector<16x16xf32>
    %cst_41 = arith.constant dense<0xFF800000> : vector<16xf32>
    %99 = vector.multi_reduction <maximumf>, %98, %cst_41 [1] : vector<16x16xf32> to vector<16xf32>
    %100 = vector.shape_cast %99 : vector<16xf32> to vector<16x1xf32>
    %101 = vector.broadcast %100 : vector<16x1xf32> to vector<16x16xf32>
    %102 = arith.subf %98, %101 : vector<16x16xf32>
    %103 = math.exp %102 : vector<16x16xf32>
    %cst_42 = arith.constant dense<0.000000e+00> : vector<16xf32>
    %104 = vector.multi_reduction <add>, %103, %cst_42 [1] : vector<16x16xf32> to vector<16xf32>
    %105 = vector.shape_cast %104 : vector<16xf32> to vector<16x1xf32>
    %106 = tpu.reciprocal %105 : vector<16x1xf32> -> vector<16x1xf32>
    %107 = vector.broadcast %106 : vector<16x1xf32> to vector<16x16xf32>
    %108 = arith.mulf %103, %107 : vector<16x16xf32>
    %109 = arith.truncf %108 : vector<16x16xf32> to vector<16x16xbf16>
    %110 = arith.truncf %92 : vector<16x8xf32> to vector<16x8xbf16>
    %cst_43 = arith.constant dense<0.000000e+00> : vector<16x8xf32>
    %111 = tpu.matmul %109, %110, %cst_43 {dimension_numbers = #tpu.dot_dimension_numbers<[1], [0], [0], [1], [0, 0, 1, 1], [], []>} : vector<16x16xbf16>, vector<16x8xbf16>, vector<16x8xf32> -> vector<16x8xf32>
    %112 = vector.extract_strided_slice %89 {offsets = [0, 8], sizes = [16, 8], strides = [1, 1]} : vector<16x96xf32> to vector<16x8xf32>
    %113 = vector.extract_strided_slice %89 {offsets = [0, 40], sizes = [16, 8], strides = [1, 1]} : vector<16x96xf32> to vector<16x8xf32>
    %114 = vector.extract_strided_slice %89 {offsets = [0, 72], sizes = [16, 8], strides = [1, 1]} : vector<16x96xf32> to vector<16x8xf32>
    %115 = arith.truncf %112 : vector<16x8xf32> to vector<16x8xbf16>
    %116 = arith.truncf %113 : vector<16x8xf32> to vector<16x8xbf16>
    %cst_44 = arith.constant dense<0.000000e+00> : vector<16x16xf32>
    %117 = tpu.matmul %115, %116, %cst_44 {dimension_numbers = #tpu.dot_dimension_numbers<[1], [1], [0], [0], [0, 0, 1, 0], [], []>} : vector<16x8xbf16>, vector<16x8xbf16>, vector<16x16xf32> -> vector<16x16xf32>
    %cst_45 = arith.constant 0.353553385 : f32
    %118 = vector.broadcast %cst_45 : f32 to vector<16x16xf32>
    %119 = arith.mulf %117, %118 : vector<16x16xf32>
    %120 = arith.addf %119, %78 : vector<16x16xf32>
    %cst_46 = arith.constant dense<0xFF800000> : vector<16xf32>
    %121 = vector.multi_reduction <maximumf>, %120, %cst_46 [1] : vector<16x16xf32> to vector<16xf32>
    %122 = vector.shape_cast %121 : vector<16xf32> to vector<16x1xf32>
    %123 = vector.broadcast %122 : vector<16x1xf32> to vector<16x16xf32>
    %124 = arith.subf %120, %123 : vector<16x16xf32>
    %125 = math.exp %124 : vector<16x16xf32>
    %cst_47 = arith.constant dense<0.000000e+00> : vector<16xf32>
    %126 = vector.multi_reduction <add>, %125, %cst_47 [1] : vector<16x16xf32> to vector<16xf32>
    %127 = vector.shape_cast %126 : vector<16xf32> to vector<16x1xf32>
    %128 = tpu.reciprocal %127 : vector<16x1xf32> -> vector<16x1xf32>
    %129 = vector.broadcast %128 : vector<16x1xf32> to vector<16x16xf32>
    %130 = arith.mulf %125, %129 : vector<16x16xf32>
    %131 = arith.truncf %130 : vector<16x16xf32> to vector<16x16xbf16>
    %132 = arith.truncf %114 : vector<16x8xf32> to vector<16x8xbf16>
    %cst_48 = arith.constant dense<0.000000e+00> : vector<16x8xf32>
    %133 = tpu.matmul %131, %132, %cst_48 {dimension_numbers = #tpu.dot_dimension_numbers<[1], [0], [0], [1], [0, 0, 1, 1], [], []>} : vector<16x16xbf16>, vector<16x8xbf16>, vector<16x8xf32> -> vector<16x8xf32>
    %134 = vector.extract_strided_slice %89 {offsets = [0, 16], sizes = [16, 8], strides = [1, 1]} : vector<16x96xf32> to vector<16x8xf32>
    %135 = vector.extract_strided_slice %89 {offsets = [0, 48], sizes = [16, 8], strides = [1, 1]} : vector<16x96xf32> to vector<16x8xf32>
    %136 = vector.extract_strided_slice %89 {offsets = [0, 80], sizes = [16, 8], strides = [1, 1]} : vector<16x96xf32> to vector<16x8xf32>
    %137 = arith.truncf %134 : vector<16x8xf32> to vector<16x8xbf16>
    %138 = arith.truncf %135 : vector<16x8xf32> to vector<16x8xbf16>
    %cst_49 = arith.constant dense<0.000000e+00> : vector<16x16xf32>
    %139 = tpu.matmul %137, %138, %cst_49 {dimension_numbers = #tpu.dot_dimension_numbers<[1], [1], [0], [0], [0, 0, 1, 0], [], []>} : vector<16x8xbf16>, vector<16x8xbf16>, vector<16x16xf32> -> vector<16x16xf32>
    %cst_50 = arith.constant 0.353553385 : f32
    %140 = vector.broadcast %cst_50 : f32 to vector<16x16xf32>
    %141 = arith.mulf %139, %140 : vector<16x16xf32>
    %142 = arith.addf %141, %78 : vector<16x16xf32>
    %cst_51 = arith.constant dense<0xFF800000> : vector<16xf32>
    %143 = vector.multi_reduction <maximumf>, %142, %cst_51 [1] : vector<16x16xf32> to vector<16xf32>
    %144 = vector.shape_cast %143 : vector<16xf32> to vector<16x1xf32>
    %145 = vector.broadcast %144 : vector<16x1xf32> to vector<16x16xf32>
    %146 = arith.subf %142, %145 : vector<16x16xf32>
    %147 = math.exp %146 : vector<16x16xf32>
    %cst_52 = arith.constant dense<0.000000e+00> : vector<16xf32>
    %148 = vector.multi_reduction <add>, %147, %cst_52 [1] : vector<16x16xf32> to vector<16xf32>
    %149 = vector.shape_cast %148 : vector<16xf32> to vector<16x1xf32>
    %150 = tpu.reciprocal %149 : vector<16x1xf32> -> vector<16x1xf32>
    %151 = vector.broadcast %150 : vector<16x1xf32> to vector<16x16xf32>
    %152 = arith.mulf %147, %151 : vector<16x16xf32>
    %153 = arith.truncf %152 : vector<16x16xf32> to vector<16x16xbf16>
    %154 = arith.truncf %136 : vector<16x8xf32> to vector<16x8xbf16>
    %cst_53 = arith.constant dense<0.000000e+00> : vector<16x8xf32>
    %155 = tpu.matmul %153, %154, %cst_53 {dimension_numbers = #tpu.dot_dimension_numbers<[1], [0], [0], [1], [0, 0, 1, 1], [], []>} : vector<16x16xbf16>, vector<16x8xbf16>, vector<16x8xf32> -> vector<16x8xf32>
    %156 = vector.extract_strided_slice %89 {offsets = [0, 24], sizes = [16, 8], strides = [1, 1]} : vector<16x96xf32> to vector<16x8xf32>
    %157 = vector.extract_strided_slice %89 {offsets = [0, 56], sizes = [16, 8], strides = [1, 1]} : vector<16x96xf32> to vector<16x8xf32>
    %158 = vector.extract_strided_slice %89 {offsets = [0, 88], sizes = [16, 8], strides = [1, 1]} : vector<16x96xf32> to vector<16x8xf32>
    %159 = arith.truncf %156 : vector<16x8xf32> to vector<16x8xbf16>
    %160 = arith.truncf %157 : vector<16x8xf32> to vector<16x8xbf16>
    %cst_54 = arith.constant dense<0.000000e+00> : vector<16x16xf32>
    %161 = tpu.matmul %159, %160, %cst_54 {dimension_numbers = #tpu.dot_dimension_numbers<[1], [1], [0], [0], [0, 0, 1, 0], [], []>} : vector<16x8xbf16>, vector<16x8xbf16>, vector<16x16xf32> -> vector<16x16xf32>
    %cst_55 = arith.constant 0.353553385 : f32
    %162 = vector.broadcast %cst_55 : f32 to vector<16x16xf32>
    %163 = arith.mulf %161, %162 : vector<16x16xf32>
    %164 = arith.addf %163, %78 : vector<16x16xf32>
    %cst_56 = arith.constant dense<0xFF800000> : vector<16xf32>
    %165 = vector.multi_reduction <maximumf>, %164, %cst_56 [1] : vector<16x16xf32> to vector<16xf32>
    %166 = vector.shape_cast %165 : vector<16xf32> to vector<16x1xf32>
    %167 = vector.broadcast %166 : vector<16x1xf32> to vector<16x16xf32>
    %168 = arith.subf %164, %167 : vector<16x16xf32>
    %169 = math.exp %168 : vector<16x16xf32>
    %cst_57 = arith.constant dense<0.000000e+00> : vector<16xf32>
    %170 = vector.multi_reduction <add>, %169, %cst_57 [1] : vector<16x16xf32> to vector<16xf32>
    %171 = vector.shape_cast %170 : vector<16xf32> to vector<16x1xf32>
    %172 = tpu.reciprocal %171 : vector<16x1xf32> -> vector<16x1xf32>
    %173 = vector.broadcast %172 : vector<16x1xf32> to vector<16x16xf32>
    %174 = arith.mulf %169, %173 : vector<16x16xf32>
    %175 = arith.truncf %174 : vector<16x16xf32> to vector<16x16xbf16>
    %176 = arith.truncf %158 : vector<16x8xf32> to vector<16x8xbf16>
    %cst_58 = arith.constant dense<0.000000e+00> : vector<16x8xf32>
    %177 = tpu.matmul %175, %176, %cst_58 {dimension_numbers = #tpu.dot_dimension_numbers<[1], [0], [0], [1], [0, 0, 1, 1], [], []>} : vector<16x16xbf16>, vector<16x8xbf16>, vector<16x8xf32> -> vector<16x8xf32>
    %178 = tpu.concatenate %111, %133, %155, %177 in 1 : vector<16x8xf32>, vector<16x8xf32>, vector<16x8xf32>, vector<16x8xf32> -> vector<16x32xf32>
    %179 = arith.truncf %178 : vector<16x32xf32> to vector<16x32xbf16>
    %cst_59 = arith.constant dense<0.000000e+00> : vector<16x32xf32>
    %180 = tpu.matmul %179, %82, %cst_59 {dimension_numbers = #tpu.dot_dimension_numbers<[1], [0], [0], [1], [0, 0, 1, 1], [], []>} : vector<16x32xbf16>, vector<32x32xbf16>, vector<16x32xf32> -> vector<16x32xf32>
    %c54 = arith.constant 54 : index
    %c0_60 = arith.constant 0 : index
    %181 = vector.load %arg4[%c54, %c0_60] : memref<64x96xf32, #tpu.memory_space<vmem>>, vector<1x32xf32>
    %182 = vector.broadcast %181 : vector<1x32xf32> to vector<16x32xf32>
    %183 = arith.addf %180, %182 : vector<16x32xf32>
    %184 = arith.addf %77, %183 : vector<16x32xf32>
    %c4 = arith.constant 4 : index
    %c0_61 = arith.constant 0 : index
    %185 = vector.load %arg4[%c4, %c0_61] : memref<64x96xf32, #tpu.memory_space<vmem>>, vector<1x32xf32>
    %c5 = arith.constant 5 : index
    %c0_62 = arith.constant 0 : index
    %186 = vector.load %arg4[%c5, %c0_62] : memref<64x96xf32, #tpu.memory_space<vmem>>, vector<1x32xf32>
    %cst_63 = arith.constant dense<0.000000e+00> : vector<16xf32>
    %187 = vector.multi_reduction <add>, %184, %cst_63 [1] : vector<16x32xf32> to vector<16xf32>
    %188 = vector.shape_cast %187 : vector<16xf32> to vector<16x1xf32>
    %cst_64 = arith.constant 3.200000e+01 : f32
    %189 = vector.broadcast %cst_64 : f32 to vector<16x1xf32>
    %190 = arith.divf %188, %189 : vector<16x1xf32>
    %191 = vector.broadcast %190 : vector<16x1xf32> to vector<16x32xf32>
    %192 = arith.subf %184, %191 : vector<16x32xf32>
    %193 = arith.mulf %192, %192 : vector<16x32xf32>
    %cst_65 = arith.constant dense<0.000000e+00> : vector<16xf32>
    %194 = vector.multi_reduction <add>, %193, %cst_65 [1] : vector<16x32xf32> to vector<16xf32>
    %195 = vector.shape_cast %194 : vector<16xf32> to vector<16x1xf32>
    %cst_66 = arith.constant 3.200000e+01 : f32
    %196 = vector.broadcast %cst_66 : f32 to vector<16x1xf32>
    %197 = arith.divf %195, %196 : vector<16x1xf32>
    %cst_67 = arith.constant 9.99999974E-6 : f32
    %198 = vector.broadcast %cst_67 : f32 to vector<16x1xf32>
    %199 = arith.addf %197, %198 : vector<16x1xf32>
    %200 = math.rsqrt %199 : vector<16x1xf32>
    %201 = vector.broadcast %200 : vector<16x1xf32> to vector<16x32xf32>
    %202 = arith.mulf %192, %201 : vector<16x32xf32>
    %203 = vector.broadcast %185 : vector<1x32xf32> to vector<16x32xf32>
    %204 = arith.mulf %202, %203 : vector<16x32xf32>
    %205 = vector.broadcast %186 : vector<1x32xf32> to vector<16x32xf32>
    %206 = arith.addf %204, %205 : vector<16x32xf32>
    %207 = arith.truncf %206 : vector<16x32xf32> to vector<16x32xbf16>
    %cst_68 = arith.constant dense<0.000000e+00> : vector<16x64xf32>
    %208 = tpu.matmul %207, %83, %cst_68 {dimension_numbers = #tpu.dot_dimension_numbers<[1], [0], [0], [1], [0, 0, 1, 1], [], []>} : vector<16x32xbf16>, vector<32x64xbf16>, vector<16x64xf32> -> vector<16x64xf32>
    %c56 = arith.constant 56 : index
    %c0_69 = arith.constant 0 : index
    %209 = vector.load %arg4[%c56, %c0_69] : memref<64x96xf32, #tpu.memory_space<vmem>>, vector<1x64xf32>
    %210 = vector.broadcast %209 : vector<1x64xf32> to vector<16x64xf32>
    %211 = arith.addf %208, %210 : vector<16x64xf32>
    %cst_70 = arith.constant 0.000000e+00 : f32
    %212 = vector.broadcast %cst_70 : f32 to vector<16x64xf32>
    %213 = arith.maximumf %211, %212 : vector<16x64xf32>
    %214 = arith.truncf %213 : vector<16x64xf32> to vector<16x64xbf16>
    %cst_71 = arith.constant dense<0.000000e+00> : vector<16x32xf32>
    %215 = tpu.matmul %214, %84, %cst_71 {dimension_numbers = #tpu.dot_dimension_numbers<[1], [0], [0], [1], [0, 0, 1, 1], [], []>} : vector<16x64xbf16>, vector<64x32xbf16>, vector<16x32xf32> -> vector<16x32xf32>
    %c58 = arith.constant 58 : index
    %c0_72 = arith.constant 0 : index
    %216 = vector.load %arg4[%c58, %c0_72] : memref<64x96xf32, #tpu.memory_space<vmem>>, vector<1x32xf32>
    %217 = vector.broadcast %216 : vector<1x32xf32> to vector<16x32xf32>
    %218 = arith.addf %215, %217 : vector<16x32xf32>
    %219 = arith.addf %206, %218 : vector<16x32xf32>
    %c6 = arith.constant 6 : index
    %c0_73 = arith.constant 0 : index
    %220 = vector.load %arg4[%c6, %c0_73] : memref<64x96xf32, #tpu.memory_space<vmem>>, vector<1x32xf32>
    %c7 = arith.constant 7 : index
    %c0_74 = arith.constant 0 : index
    %221 = vector.load %arg4[%c7, %c0_74] : memref<64x96xf32, #tpu.memory_space<vmem>>, vector<1x32xf32>
    %cst_75 = arith.constant dense<0.000000e+00> : vector<16xf32>
    %222 = vector.multi_reduction <add>, %219, %cst_75 [1] : vector<16x32xf32> to vector<16xf32>
    %223 = vector.shape_cast %222 : vector<16xf32> to vector<16x1xf32>
    %cst_76 = arith.constant 3.200000e+01 : f32
    %224 = vector.broadcast %cst_76 : f32 to vector<16x1xf32>
    %225 = arith.divf %223, %224 : vector<16x1xf32>
    %226 = vector.broadcast %225 : vector<16x1xf32> to vector<16x32xf32>
    %227 = arith.subf %219, %226 : vector<16x32xf32>
    %228 = arith.mulf %227, %227 : vector<16x32xf32>
    %cst_77 = arith.constant dense<0.000000e+00> : vector<16xf32>
    %229 = vector.multi_reduction <add>, %228, %cst_77 [1] : vector<16x32xf32> to vector<16xf32>
    %230 = vector.shape_cast %229 : vector<16xf32> to vector<16x1xf32>
    %cst_78 = arith.constant 3.200000e+01 : f32
    %231 = vector.broadcast %cst_78 : f32 to vector<16x1xf32>
    %232 = arith.divf %230, %231 : vector<16x1xf32>
    %cst_79 = arith.constant 9.99999974E-6 : f32
    %233 = vector.broadcast %cst_79 : f32 to vector<16x1xf32>
    %234 = arith.addf %232, %233 : vector<16x1xf32>
    %235 = math.rsqrt %234 : vector<16x1xf32>
    %236 = vector.broadcast %235 : vector<16x1xf32> to vector<16x32xf32>
    %237 = arith.mulf %227, %236 : vector<16x32xf32>
    %238 = vector.broadcast %220 : vector<1x32xf32> to vector<16x32xf32>
    %239 = arith.mulf %237, %238 : vector<16x32xf32>
    %240 = vector.broadcast %221 : vector<1x32xf32> to vector<16x32xf32>
    %241 = arith.addf %239, %240 : vector<16x32xf32>
    %c1_80 = arith.constant 1 : index
    %c0_81 = arith.constant 0 : index
    %c0_82 = arith.constant 0 : index
    %242 = vector.load %arg3[%c1_80, %c0_81, %c0_82] : memref<2x160x96xbf16, #tpu.memory_space<vmem>>, vector<1x160x96xbf16>
    %243 = vector.shape_cast %242 : vector<1x160x96xbf16> to vector<160x96xbf16>
    %244 = vector.extract_strided_slice %243 {offsets = [0, 0], sizes = [32, 96], strides = [1, 1]} : vector<160x96xbf16> to vector<32x96xbf16>
    %245 = vector.extract_strided_slice %243 {offsets = [32, 0], sizes = [32, 32], strides = [1, 1]} : vector<160x96xbf16> to vector<32x32xbf16>
    %246 = vector.extract_strided_slice %243 {offsets = [64, 0], sizes = [32, 64], strides = [1, 1]} : vector<160x96xbf16> to vector<32x64xbf16>
    %247 = vector.extract_strided_slice %243 {offsets = [96, 0], sizes = [64, 32], strides = [1, 1]} : vector<160x96xbf16> to vector<64x32xbf16>
    %248 = arith.truncf %241 : vector<16x32xf32> to vector<16x32xbf16>
    %cst_83 = arith.constant dense<0.000000e+00> : vector<16x96xf32>
    %249 = tpu.matmul %248, %244, %cst_83 {dimension_numbers = #tpu.dot_dimension_numbers<[1], [0], [0], [1], [0, 0, 1, 1], [], []>} : vector<16x32xbf16>, vector<32x96xbf16>, vector<16x96xf32> -> vector<16x96xf32>
    %c53 = arith.constant 53 : index
    %c0_84 = arith.constant 0 : index
    %250 = vector.load %arg4[%c53, %c0_84] : memref<64x96xf32, #tpu.memory_space<vmem>>, vector<1x96xf32>
    %251 = vector.broadcast %250 : vector<1x96xf32> to vector<16x96xf32>
    %252 = arith.addf %249, %251 : vector<16x96xf32>
    %253 = vector.extract_strided_slice %252 {offsets = [0, 0], sizes = [16, 8], strides = [1, 1]} : vector<16x96xf32> to vector<16x8xf32>
    %254 = vector.extract_strided_slice %252 {offsets = [0, 32], sizes = [16, 8], strides = [1, 1]} : vector<16x96xf32> to vector<16x8xf32>
    %255 = vector.extract_strided_slice %252 {offsets = [0, 64], sizes = [16, 8], strides = [1, 1]} : vector<16x96xf32> to vector<16x8xf32>
    %256 = arith.truncf %253 : vector<16x8xf32> to vector<16x8xbf16>
    %257 = arith.truncf %254 : vector<16x8xf32> to vector<16x8xbf16>
    %cst_85 = arith.constant dense<0.000000e+00> : vector<16x16xf32>
    %258 = tpu.matmul %256, %257, %cst_85 {dimension_numbers = #tpu.dot_dimension_numbers<[1], [1], [0], [0], [0, 0, 1, 0], [], []>} : vector<16x8xbf16>, vector<16x8xbf16>, vector<16x16xf32> -> vector<16x16xf32>
    %cst_86 = arith.constant 0.353553385 : f32
    %259 = vector.broadcast %cst_86 : f32 to vector<16x16xf32>
    %260 = arith.mulf %258, %259 : vector<16x16xf32>
    %261 = arith.addf %260, %78 : vector<16x16xf32>
    %cst_87 = arith.constant dense<0xFF800000> : vector<16xf32>
    %262 = vector.multi_reduction <maximumf>, %261, %cst_87 [1] : vector<16x16xf32> to vector<16xf32>
    %263 = vector.shape_cast %262 : vector<16xf32> to vector<16x1xf32>
    %264 = vector.broadcast %263 : vector<16x1xf32> to vector<16x16xf32>
    %265 = arith.subf %261, %264 : vector<16x16xf32>
    %266 = math.exp %265 : vector<16x16xf32>
    %cst_88 = arith.constant dense<0.000000e+00> : vector<16xf32>
    %267 = vector.multi_reduction <add>, %266, %cst_88 [1] : vector<16x16xf32> to vector<16xf32>
    %268 = vector.shape_cast %267 : vector<16xf32> to vector<16x1xf32>
    %269 = tpu.reciprocal %268 : vector<16x1xf32> -> vector<16x1xf32>
    %270 = vector.broadcast %269 : vector<16x1xf32> to vector<16x16xf32>
    %271 = arith.mulf %266, %270 : vector<16x16xf32>
    %272 = arith.truncf %271 : vector<16x16xf32> to vector<16x16xbf16>
    %273 = arith.truncf %255 : vector<16x8xf32> to vector<16x8xbf16>
    %cst_89 = arith.constant dense<0.000000e+00> : vector<16x8xf32>
    %274 = tpu.matmul %272, %273, %cst_89 {dimension_numbers = #tpu.dot_dimension_numbers<[1], [0], [0], [1], [0, 0, 1, 1], [], []>} : vector<16x16xbf16>, vector<16x8xbf16>, vector<16x8xf32> -> vector<16x8xf32>
    %275 = vector.extract_strided_slice %252 {offsets = [0, 8], sizes = [16, 8], strides = [1, 1]} : vector<16x96xf32> to vector<16x8xf32>
    %276 = vector.extract_strided_slice %252 {offsets = [0, 40], sizes = [16, 8], strides = [1, 1]} : vector<16x96xf32> to vector<16x8xf32>
    %277 = vector.extract_strided_slice %252 {offsets = [0, 72], sizes = [16, 8], strides = [1, 1]} : vector<16x96xf32> to vector<16x8xf32>
    %278 = arith.truncf %275 : vector<16x8xf32> to vector<16x8xbf16>
    %279 = arith.truncf %276 : vector<16x8xf32> to vector<16x8xbf16>
    %cst_90 = arith.constant dense<0.000000e+00> : vector<16x16xf32>
    %280 = tpu.matmul %278, %279, %cst_90 {dimension_numbers = #tpu.dot_dimension_numbers<[1], [1], [0], [0], [0, 0, 1, 0], [], []>} : vector<16x8xbf16>, vector<16x8xbf16>, vector<16x16xf32> -> vector<16x16xf32>
    %cst_91 = arith.constant 0.353553385 : f32
    %281 = vector.broadcast %cst_91 : f32 to vector<16x16xf32>
    %282 = arith.mulf %280, %281 : vector<16x16xf32>
    %283 = arith.addf %282, %78 : vector<16x16xf32>
    %cst_92 = arith.constant dense<0xFF800000> : vector<16xf32>
    %284 = vector.multi_reduction <maximumf>, %283, %cst_92 [1] : vector<16x16xf32> to vector<16xf32>
    %285 = vector.shape_cast %284 : vector<16xf32> to vector<16x1xf32>
    %286 = vector.broadcast %285 : vector<16x1xf32> to vector<16x16xf32>
    %287 = arith.subf %283, %286 : vector<16x16xf32>
    %288 = math.exp %287 : vector<16x16xf32>
    %cst_93 = arith.constant dense<0.000000e+00> : vector<16xf32>
    %289 = vector.multi_reduction <add>, %288, %cst_93 [1] : vector<16x16xf32> to vector<16xf32>
    %290 = vector.shape_cast %289 : vector<16xf32> to vector<16x1xf32>
    %291 = tpu.reciprocal %290 : vector<16x1xf32> -> vector<16x1xf32>
    %292 = vector.broadcast %291 : vector<16x1xf32> to vector<16x16xf32>
    %293 = arith.mulf %288, %292 : vector<16x16xf32>
    %294 = arith.truncf %293 : vector<16x16xf32> to vector<16x16xbf16>
    %295 = arith.truncf %277 : vector<16x8xf32> to vector<16x8xbf16>
    %cst_94 = arith.constant dense<0.000000e+00> : vector<16x8xf32>
    %296 = tpu.matmul %294, %295, %cst_94 {dimension_numbers = #tpu.dot_dimension_numbers<[1], [0], [0], [1], [0, 0, 1, 1], [], []>} : vector<16x16xbf16>, vector<16x8xbf16>, vector<16x8xf32> -> vector<16x8xf32>
    %297 = vector.extract_strided_slice %252 {offsets = [0, 16], sizes = [16, 8], strides = [1, 1]} : vector<16x96xf32> to vector<16x8xf32>
    %298 = vector.extract_strided_slice %252 {offsets = [0, 48], sizes = [16, 8], strides = [1, 1]} : vector<16x96xf32> to vector<16x8xf32>
    %299 = vector.extract_strided_slice %252 {offsets = [0, 80], sizes = [16, 8], strides = [1, 1]} : vector<16x96xf32> to vector<16x8xf32>
    %300 = arith.truncf %297 : vector<16x8xf32> to vector<16x8xbf16>
    %301 = arith.truncf %298 : vector<16x8xf32> to vector<16x8xbf16>
    %cst_95 = arith.constant dense<0.000000e+00> : vector<16x16xf32>
    %302 = tpu.matmul %300, %301, %cst_95 {dimension_numbers = #tpu.dot_dimension_numbers<[1], [1], [0], [0], [0, 0, 1, 0], [], []>} : vector<16x8xbf16>, vector<16x8xbf16>, vector<16x16xf32> -> vector<16x16xf32>
    %cst_96 = arith.constant 0.353553385 : f32
    %303 = vector.broadcast %cst_96 : f32 to vector<16x16xf32>
    %304 = arith.mulf %302, %303 : vector<16x16xf32>
    %305 = arith.addf %304, %78 : vector<16x16xf32>
    %cst_97 = arith.constant dense<0xFF800000> : vector<16xf32>
    %306 = vector.multi_reduction <maximumf>, %305, %cst_97 [1] : vector<16x16xf32> to vector<16xf32>
    %307 = vector.shape_cast %306 : vector<16xf32> to vector<16x1xf32>
    %308 = vector.broadcast %307 : vector<16x1xf32> to vector<16x16xf32>
    %309 = arith.subf %305, %308 : vector<16x16xf32>
    %310 = math.exp %309 : vector<16x16xf32>
    %cst_98 = arith.constant dense<0.000000e+00> : vector<16xf32>
    %311 = vector.multi_reduction <add>, %310, %cst_98 [1] : vector<16x16xf32> to vector<16xf32>
    %312 = vector.shape_cast %311 : vector<16xf32> to vector<16x1xf32>
    %313 = tpu.reciprocal %312 : vector<16x1xf32> -> vector<16x1xf32>
    %314 = vector.broadcast %313 : vector<16x1xf32> to vector<16x16xf32>
    %315 = arith.mulf %310, %314 : vector<16x16xf32>
    %316 = arith.truncf %315 : vector<16x16xf32> to vector<16x16xbf16>
    %317 = arith.truncf %299 : vector<16x8xf32> to vector<16x8xbf16>
    %cst_99 = arith.constant dense<0.000000e+00> : vector<16x8xf32>
    %318 = tpu.matmul %316, %317, %cst_99 {dimension_numbers = #tpu.dot_dimension_numbers<[1], [0], [0], [1], [0, 0, 1, 1], [], []>} : vector<16x16xbf16>, vector<16x8xbf16>, vector<16x8xf32> -> vector<16x8xf32>
    %319 = vector.extract_strided_slice %252 {offsets = [0, 24], sizes = [16, 8], strides = [1, 1]} : vector<16x96xf32> to vector<16x8xf32>
    %320 = vector.extract_strided_slice %252 {offsets = [0, 56], sizes = [16, 8], strides = [1, 1]} : vector<16x96xf32> to vector<16x8xf32>
    %321 = vector.extract_strided_slice %252 {offsets = [0, 88], sizes = [16, 8], strides = [1, 1]} : vector<16x96xf32> to vector<16x8xf32>
    %322 = arith.truncf %319 : vector<16x8xf32> to vector<16x8xbf16>
    %323 = arith.truncf %320 : vector<16x8xf32> to vector<16x8xbf16>
    %cst_100 = arith.constant dense<0.000000e+00> : vector<16x16xf32>
    %324 = tpu.matmul %322, %323, %cst_100 {dimension_numbers = #tpu.dot_dimension_numbers<[1], [1], [0], [0], [0, 0, 1, 0], [], []>} : vector<16x8xbf16>, vector<16x8xbf16>, vector<16x16xf32> -> vector<16x16xf32>
    %cst_101 = arith.constant 0.353553385 : f32
    %325 = vector.broadcast %cst_101 : f32 to vector<16x16xf32>
    %326 = arith.mulf %324, %325 : vector<16x16xf32>
    %327 = arith.addf %326, %78 : vector<16x16xf32>
    %cst_102 = arith.constant dense<0xFF800000> : vector<16xf32>
    %328 = vector.multi_reduction <maximumf>, %327, %cst_102 [1] : vector<16x16xf32> to vector<16xf32>
    %329 = vector.shape_cast %328 : vector<16xf32> to vector<16x1xf32>
    %330 = vector.broadcast %329 : vector<16x1xf32> to vector<16x16xf32>
    %331 = arith.subf %327, %330 : vector<16x16xf32>
    %332 = math.exp %331 : vector<16x16xf32>
    %cst_103 = arith.constant dense<0.000000e+00> : vector<16xf32>
    %333 = vector.multi_reduction <add>, %332, %cst_103 [1] : vector<16x16xf32> to vector<16xf32>
    %334 = vector.shape_cast %333 : vector<16xf32> to vector<16x1xf32>
    %335 = tpu.reciprocal %334 : vector<16x1xf32> -> vector<16x1xf32>
    %336 = vector.broadcast %335 : vector<16x1xf32> to vector<16x16xf32>
    %337 = arith.mulf %332, %336 : vector<16x16xf32>
    %338 = arith.truncf %337 : vector<16x16xf32> to vector<16x16xbf16>
    %339 = arith.truncf %321 : vector<16x8xf32> to vector<16x8xbf16>
    %cst_104 = arith.constant dense<0.000000e+00> : vector<16x8xf32>
    %340 = tpu.matmul %338, %339, %cst_104 {dimension_numbers = #tpu.dot_dimension_numbers<[1], [0], [0], [1], [0, 0, 1, 1], [], []>} : vector<16x16xbf16>, vector<16x8xbf16>, vector<16x8xf32> -> vector<16x8xf32>
    %341 = tpu.concatenate %274, %296, %318, %340 in 1 : vector<16x8xf32>, vector<16x8xf32>, vector<16x8xf32>, vector<16x8xf32> -> vector<16x32xf32>
    %342 = arith.truncf %341 : vector<16x32xf32> to vector<16x32xbf16>
    %cst_105 = arith.constant dense<0.000000e+00> : vector<16x32xf32>
    %343 = tpu.matmul %342, %245, %cst_105 {dimension_numbers = #tpu.dot_dimension_numbers<[1], [0], [0], [1], [0, 0, 1, 1], [], []>} : vector<16x32xbf16>, vector<32x32xbf16>, vector<16x32xf32> -> vector<16x32xf32>
    %c55 = arith.constant 55 : index
    %c0_106 = arith.constant 0 : index
    %344 = vector.load %arg4[%c55, %c0_106] : memref<64x96xf32, #tpu.memory_space<vmem>>, vector<1x32xf32>
    %345 = vector.broadcast %344 : vector<1x32xf32> to vector<16x32xf32>
    %346 = arith.addf %343, %345 : vector<16x32xf32>
    %347 = arith.addf %241, %346 : vector<16x32xf32>
    %c8 = arith.constant 8 : index
    %c0_107 = arith.constant 0 : index
    %348 = vector.load %arg4[%c8, %c0_107] : memref<64x96xf32, #tpu.memory_space<vmem>>, vector<1x32xf32>
    %c9 = arith.constant 9 : index
    %c0_108 = arith.constant 0 : index
    %349 = vector.load %arg4[%c9, %c0_108] : memref<64x96xf32, #tpu.memory_space<vmem>>, vector<1x32xf32>
    %cst_109 = arith.constant dense<0.000000e+00> : vector<16xf32>
    %350 = vector.multi_reduction <add>, %347, %cst_109 [1] : vector<16x32xf32> to vector<16xf32>
    %351 = vector.shape_cast %350 : vector<16xf32> to vector<16x1xf32>
    %cst_110 = arith.constant 3.200000e+01 : f32
    %352 = vector.broadcast %cst_110 : f32 to vector<16x1xf32>
    %353 = arith.divf %351, %352 : vector<16x1xf32>
    %354 = vector.broadcast %353 : vector<16x1xf32> to vector<16x32xf32>
    %355 = arith.subf %347, %354 : vector<16x32xf32>
    %356 = arith.mulf %355, %355 : vector<16x32xf32>
    %cst_111 = arith.constant dense<0.000000e+00> : vector<16xf32>
    %357 = vector.multi_reduction <add>, %356, %cst_111 [1] : vector<16x32xf32> to vector<16xf32>
    %358 = vector.shape_cast %357 : vector<16xf32> to vector<16x1xf32>
    %cst_112 = arith.constant 3.200000e+01 : f32
    %359 = vector.broadcast %cst_112 : f32 to vector<16x1xf32>
    %360 = arith.divf %358, %359 : vector<16x1xf32>
    %cst_113 = arith.constant 9.99999974E-6 : f32
    %361 = vector.broadcast %cst_113 : f32 to vector<16x1xf32>
    %362 = arith.addf %360, %361 : vector<16x1xf32>
    %363 = math.rsqrt %362 : vector<16x1xf32>
    %364 = vector.broadcast %363 : vector<16x1xf32> to vector<16x32xf32>
    %365 = arith.mulf %355, %364 : vector<16x32xf32>
    %366 = vector.broadcast %348 : vector<1x32xf32> to vector<16x32xf32>
    %367 = arith.mulf %365, %366 : vector<16x32xf32>
    %368 = vector.broadcast %349 : vector<1x32xf32> to vector<16x32xf32>
    %369 = arith.addf %367, %368 : vector<16x32xf32>
    %370 = arith.truncf %369 : vector<16x32xf32> to vector<16x32xbf16>
    %cst_114 = arith.constant dense<0.000000e+00> : vector<16x64xf32>
    %371 = tpu.matmul %370, %246, %cst_114 {dimension_numbers = #tpu.dot_dimension_numbers<[1], [0], [0], [1], [0, 0, 1, 1], [], []>} : vector<16x32xbf16>, vector<32x64xbf16>, vector<16x64xf32> -> vector<16x64xf32>
    %c57 = arith.constant 57 : index
    %c0_115 = arith.constant 0 : index
    %372 = vector.load %arg4[%c57, %c0_115] : memref<64x96xf32, #tpu.memory_space<vmem>>, vector<1x64xf32>
    %373 = vector.broadcast %372 : vector<1x64xf32> to vector<16x64xf32>
    %374 = arith.addf %371, %373 : vector<16x64xf32>
    %cst_116 = arith.constant 0.000000e+00 : f32
    %375 = vector.broadcast %cst_116 : f32 to vector<16x64xf32>
    %376 = arith.maximumf %374, %375 : vector<16x64xf32>
    %377 = arith.truncf %376 : vector<16x64xf32> to vector<16x64xbf16>
    %cst_117 = arith.constant dense<0.000000e+00> : vector<16x32xf32>
    %378 = tpu.matmul %377, %247, %cst_117 {dimension_numbers = #tpu.dot_dimension_numbers<[1], [0], [0], [1], [0, 0, 1, 1], [], []>} : vector<16x64xbf16>, vector<64x32xbf16>, vector<16x32xf32> -> vector<16x32xf32>
    %c59 = arith.constant 59 : index
    %c0_118 = arith.constant 0 : index
    %379 = vector.load %arg4[%c59, %c0_118] : memref<64x96xf32, #tpu.memory_space<vmem>>, vector<1x32xf32>
    %380 = vector.broadcast %379 : vector<1x32xf32> to vector<16x32xf32>
    %381 = arith.addf %378, %380 : vector<16x32xf32>
    %382 = arith.addf %369, %381 : vector<16x32xf32>
    %c10 = arith.constant 10 : index
    %c0_119 = arith.constant 0 : index
    %383 = vector.load %arg4[%c10, %c0_119] : memref<64x96xf32, #tpu.memory_space<vmem>>, vector<1x32xf32>
    %c11 = arith.constant 11 : index
    %c0_120 = arith.constant 0 : index
    %384 = vector.load %arg4[%c11, %c0_120] : memref<64x96xf32, #tpu.memory_space<vmem>>, vector<1x32xf32>
    %cst_121 = arith.constant dense<0.000000e+00> : vector<16xf32>
    %385 = vector.multi_reduction <add>, %382, %cst_121 [1] : vector<16x32xf32> to vector<16xf32>
    %386 = vector.shape_cast %385 : vector<16xf32> to vector<16x1xf32>
    %cst_122 = arith.constant 3.200000e+01 : f32
    %387 = vector.broadcast %cst_122 : f32 to vector<16x1xf32>
    %388 = arith.divf %386, %387 : vector<16x1xf32>
    %389 = vector.broadcast %388 : vector<16x1xf32> to vector<16x32xf32>
    %390 = arith.subf %382, %389 : vector<16x32xf32>
    %391 = arith.mulf %390, %390 : vector<16x32xf32>
    %cst_123 = arith.constant dense<0.000000e+00> : vector<16xf32>
    %392 = vector.multi_reduction <add>, %391, %cst_123 [1] : vector<16x32xf32> to vector<16xf32>
    %393 = vector.shape_cast %392 : vector<16xf32> to vector<16x1xf32>
    %cst_124 = arith.constant 3.200000e+01 : f32
    %394 = vector.broadcast %cst_124 : f32 to vector<16x1xf32>
    %395 = arith.divf %393, %394 : vector<16x1xf32>
    %cst_125 = arith.constant 9.99999974E-6 : f32
    %396 = vector.broadcast %cst_125 : f32 to vector<16x1xf32>
    %397 = arith.addf %395, %396 : vector<16x1xf32>
    %398 = math.rsqrt %397 : vector<16x1xf32>
    %399 = vector.broadcast %398 : vector<16x1xf32> to vector<16x32xf32>
    %400 = arith.mulf %390, %399 : vector<16x32xf32>
    %401 = vector.broadcast %383 : vector<1x32xf32> to vector<16x32xf32>
    %402 = arith.mulf %400, %401 : vector<16x32xf32>
    %403 = vector.broadcast %384 : vector<1x32xf32> to vector<16x32xf32>
    %404 = arith.addf %402, %403 : vector<16x32xf32>
    %c12 = arith.constant 12 : index
    %c0_126 = arith.constant 0 : index
    %405 = vector.load %arg4[%c12, %c0_126] : memref<64x96xf32, #tpu.memory_space<vmem>>, vector<1x32xf32>
    %c13 = arith.constant 13 : index
    %c0_127 = arith.constant 0 : index
    %406 = vector.load %arg4[%c13, %c0_127] : memref<64x96xf32, #tpu.memory_space<vmem>>, vector<1x32xf32>
    %cst_128 = arith.constant dense<0.000000e+00> : vector<16xf32>
    %407 = vector.multi_reduction <add>, %404, %cst_128 [1] : vector<16x32xf32> to vector<16xf32>
    %408 = vector.shape_cast %407 : vector<16xf32> to vector<16x1xf32>
    %cst_129 = arith.constant 3.200000e+01 : f32
    %409 = vector.broadcast %cst_129 : f32 to vector<16x1xf32>
    %410 = arith.divf %408, %409 : vector<16x1xf32>
    %411 = vector.broadcast %410 : vector<16x1xf32> to vector<16x32xf32>
    %412 = arith.subf %404, %411 : vector<16x32xf32>
    %413 = arith.mulf %412, %412 : vector<16x32xf32>
    %cst_130 = arith.constant dense<0.000000e+00> : vector<16xf32>
    %414 = vector.multi_reduction <add>, %413, %cst_130 [1] : vector<16x32xf32> to vector<16xf32>
    %415 = vector.shape_cast %414 : vector<16xf32> to vector<16x1xf32>
    %cst_131 = arith.constant 3.200000e+01 : f32
    %416 = vector.broadcast %cst_131 : f32 to vector<16x1xf32>
    %417 = arith.divf %415, %416 : vector<16x1xf32>
    %cst_132 = arith.constant 9.99999974E-6 : f32
    %418 = vector.broadcast %cst_132 : f32 to vector<16x1xf32>
    %419 = arith.addf %417, %418 : vector<16x1xf32>
    %420 = math.rsqrt %419 : vector<16x1xf32>
    %421 = vector.broadcast %420 : vector<16x1xf32> to vector<16x32xf32>
    %422 = arith.mulf %412, %421 : vector<16x32xf32>
    %423 = vector.broadcast %405 : vector<1x32xf32> to vector<16x32xf32>
    %424 = arith.mulf %422, %423 : vector<16x32xf32>
    %425 = vector.broadcast %406 : vector<1x32xf32> to vector<16x32xf32>
    %426 = arith.addf %424, %425 : vector<16x32xf32>
    %c80 = arith.constant 80 : index
    %c0_133 = arith.constant 0 : index
    %427 = vector.load %arg2[%c80, %c0_133] : memref<128x32xbf16, #tpu.memory_space<vmem>>, vector<2x16xbf16>
    %428 = arith.truncf %426 : vector<16x32xf32> to vector<16x32xbf16>
    %cst_134 = arith.constant dense<0.000000e+00> : vector<2x32xf32>
    %429 = tpu.matmul %427, %428, %cst_134 {dimension_numbers = #tpu.dot_dimension_numbers<[1], [0], [0], [1], [0, 0, 1, 1], [], []>} : vector<2x16xbf16>, vector<16x32xbf16>, vector<2x32xf32> -> vector<2x32xf32>
    %c96 = arith.constant 96 : index
    %c0_135 = arith.constant 0 : index
    %430 = vector.load %arg2[%c96, %c0_135] : memref<128x32xbf16, #tpu.memory_space<vmem>>, vector<32x5xbf16>
    %431 = arith.truncf %429 : vector<2x32xf32> to vector<2x32xbf16>
    %cst_136 = arith.constant dense<0.000000e+00> : vector<2x5xf32>
    %432 = tpu.matmul %431, %430, %cst_136 {dimension_numbers = #tpu.dot_dimension_numbers<[1], [0], [0], [1], [0, 0, 1, 1], [], []>} : vector<2x32xbf16>, vector<32x5xbf16>, vector<2x5xf32> -> vector<2x5xf32>
    %c51 = arith.constant 51 : index
    %c0_137 = arith.constant 0 : index
    %433 = vector.load %arg4[%c51, %c0_137] : memref<64x96xf32, #tpu.memory_space<vmem>>, vector<1x5xf32>
    %434 = vector.broadcast %433 : vector<1x5xf32> to vector<2x5xf32>
    %435 = arith.addf %432, %434 : vector<2x5xf32>
    %c0_138 = arith.constant 0 : index
    %c0_139 = arith.constant 0 : index
    %436 = vector.load %arg5[%c0_138, %c0_139] : memref<2x5xf32, #tpu.memory_space<vmem>>, vector<2x5xf32>
    tpu.vector_store %arg5[%c0_138, %c0_139], %435 {strides = array<i32>} : memref<2x5xf32, #tpu.memory_space<vmem>>, vector<2x5xf32>,
    return
  }
  func.func @transform_0(%arg0: i32) -> (i32, i32) {
    %c0_i32 = arith.constant 0 : i32
    %c0_i32_0 = arith.constant 0 : i32
    %c0_i32_1 = arith.constant 0 : i32
    return %c0_i32, %c0_i32_0 : i32, i32
  }
  func.func @transform_1(%arg0: i32) -> (i32, i32) {
    %c0_i32 = arith.constant 0 : i32
    %c0_i32_0 = arith.constant 0 : i32
    %c0_i32_1 = arith.constant 0 : i32
    return %c0_i32, %c0_i32_0 : i32, i32
  }
  func.func @transform_2(%arg0: i32) -> (i32, i32, i32) {
    %c0_i32 = arith.constant 0 : i32
    %c0_i32_0 = arith.constant 0 : i32
    %c0_i32_1 = arith.constant 0 : i32
    %c0_i32_2 = arith.constant 0 : i32
    return %c0_i32, %c0_i32_0, %c0_i32_1 : i32, i32, i32
  }
  func.func @transform_3(%arg0: i32) -> (i32, i32) {
    %c0_i32 = arith.constant 0 : i32
    %c0_i32_0 = arith.constant 0 : i32
    %c0_i32_1 = arith.constant 0 : i32
    return %c0_i32, %c0_i32_0 : i32, i32
  }
  func.func @transform_4(%arg0: i32) -> (i32, i32) {
    %c0_i32 = arith.constant 0 : i32
    %c0_i32_0 = arith.constant 0 : i32
    %c0_i32_1 = arith.constant 0 : i32
    return %c0_i32, %c0_i32_0 : i32, i32
  }
}

</mosaic_0001>

<llo_original>
// kernel: fwd.1
$region0: #{fwd.1}
  #allocation0 [shape = 'u32[]', space=smem, size = 0x4, offset = 0x4, fixed_abs, tag = 'smem constant byte address 0x4 - core index']
  #allocation1 [shape = 'u32[144,128]{1,0:T(1,128)}', space=vmem, size = 0x12000, scoped, tag = 'internal scratch']
  %s0 = inlined_call_operand.vmem [shape: f32[32,4], index: 0, kind: input, shape index: {}]
  %s1 = inlined_call_operand.vmem [shape: bf16[128,32], index: 1, kind: input, shape index: {}]
  %s2 = inlined_call_operand.hbm [shape: bf16[2,160,96], index: 2, kind: input, shape index: {}]
  %s3 = inlined_call_operand.vmem [shape: f32[64,96], index: 3, kind: input, shape index: {}]
  %s4 = inlined_call_operand.hbm [shape: f32[2,5], index: 4, kind: output, shape index: {}]
  %s5 = sld [smem:[#allocation0]]
  $region30: #{fwd.1} parent=0
    _
  %s7 = ssub.s32 1, %s5
  %s8 = scalar_select 0, %s7, %s5
  $region1: #{fwd.1} parent=0
    #allocation2 [shape = 'u8[81920]{0}', space=vmem, size = 0x14000, scoped, tag = 'input window, operand 2, single buffered']
    #allocation3 [shape = 's32[1]{0}', space=sflag, size = 0x4, scoped, tag = 'scoped memory for fwd.1']
    #allocation4 [shape = 's32[1]{0}', space=sflag, size = 0x4, scoped, tag = 'scoped memory for fwd.1']
    #allocation5 [shape = 'u8[1024]{0}', space=vmem, size = 0x400, scoped, tag = 'output window, operand 0, single buffered']
    %9 = vsyncpa [#allocation3], 0
    %10 = vsyncpa [#allocation4], 0
    // Predicated region
    $region2: #{fwd.1} parent=1 // pred_check
      _
    $region3: #{fwd.1} parent=1 // pred_check_branch
      %12 = sbr.rel (0) target = $region5
    $region4: #{fwd.1} parent=1 // pred_region
      _
    $region5: #{fwd.1} parent=1 // pred_fallthru
      _
    // Predicated region
    $region6: #{fwd.1} parent=1 // pred_check
      _
    $region7: #{fwd.1} parent=1 // pred_check_branch
      %14 = sbr.rel (0) target = $region9
    $region8: #{fwd.1} parent=1 // pred_region
      _
    $region9: #{fwd.1} parent=1 // pred_fallthru
      _
    // Predicated region
    $region10: #{fwd.1} parent=1 // pred_check
      _
    $region11: #{fwd.1} parent=1 // pred_check_branch
      %16 = sbr.rel (0) target = $region13
    $region12: #{fwd.1} parent=1 // pred_region
      %s18 = ssub.s32 2560, 2560
      %19 = vsyncadd [#allocation3], %s18
      %s20 = sshll.u32 [#allocation2], 4
      %s21 = int_to_ptr.vmem [resolvable:$true] %s20
      %26 = dma.hbm_to_vmem [thread:$0]  %s2, 2560, %s21, [#allocation3], 64, 64, 4
    $region13: #{fwd.1} parent=1 // pred_fallthru
      _
    // Predicated region
    $region14: #{fwd.1} parent=1 // pred_check
      _
    $region15: #{fwd.1} parent=1 // pred_check_branch
      %28 = sbr.rel (0) target = $region17
    $region16: #{fwd.1} parent=1 // pred_region
      _
    $region17: #{fwd.1} parent=1 // pred_fallthru
      _
    // Predicated region
    $region18: #{fwd.1} parent=1 // pred_check
      _
    $region19: #{fwd.1} parent=1 // pred_check_branch
      %30 = sbr.rel (0) target = $region21
    $region20: #{fwd.1} parent=1 // pred_region
      %31 = dma.done [#allocation3], 2560
    $region21: #{fwd.1} parent=1 // pred_fallthru
      _
    %v33 = vld [vmem:[%s0] sm:$0xff]
    %v34 = vld [vmem:[%s0 + $0x8] sm:$0xff]
    %v35 = vld [vmem:[%s0 + $0x10] sm:$0xff]
    %v36 = vld [vmem:[%s0 + $0x18] sm:$0xff]
    %v37 = vld [vmem:[%s1 + $0x2c] sm:$0x3]
    %v38 = vpack.c.bf16 %v34, %v33
    %v39 = vpack.c.bf16 %v36, %v35
    %v40 = vld [vmem:[%s3 + $0x30] sm:$0x1]
    %v41 = vlaneseq
    %v42 = vshrl.u32 %v41, 7
    %v43 = vsub.s32 0, %v42
    %v44 = vrot.slane %v40, %v43
    %vm45 = vcmask 31744
    %v47 = vsel %vm45, %v38, 0
    %v50 = vsel %vm45, %v39, 0
    %vm52 = vcmask 1041408
    %v54 = vsel %vm52, %v37, 0
    %56 = vmatprep.subr.bf16.mxu0 0
    %57 = vmatpush1.bf16.msra.mxu0 %v54
    %58 = vmatprep.subr.bf16.mxu0 0
    %59 = vmatpush1.bf16.msra.mxu0 0
    %60 = vmatprep.subr.bf16.mxu0 0
    %61 = vmatpush1.bf16.msra.mxu0 0
    %62 = vmatprep.subr.bf16.mxu0 0
    %63 = vmatpush1.bf16.msra.mxu0 0
    %64 = vmatprep.subr.bf16.mxu0 0
    %65 = vmatpush1.bf16.msra.mxu0 0
    %66 = vmatprep.subr.bf16.mxu0 0
    %67 = vmatpush1.bf16.msra.mxu0 0
    %68 = vmatprep.subr.bf16.mxu0 0
    %69 = vmatpush1.bf16.msra.mxu0 0
    %70 = vmatprep.subr.bf16.mxu0 0
    %71 = vmatpush1.bf16.msra.mxu0 0
    %72 = vmatprep.subr.bf16.mxu0 0
    %73 = vmatpush1.bf16.msra.mxu0 0
    %74 = vmatprep.subr.bf16.mxu0 0
    %75 = vmatpush1.bf16.msra.mxu0 0
    %76 = vmatprep.subr.bf16.mxu0 0
    %77 = vmatpush1.bf16.msra.mxu0 0
    %78 = vmatprep.subr.bf16.mxu0 0
    %79 = vmatpush1.bf16.msra.mxu0 0
    %80 = vmatprep.subr.bf16.mxu0 0
    %81 = vmatpush1.bf16.msra.mxu0 0
    %82 = vmatprep.subr.bf16.mxu0 0
    %83 = vmatpush1.bf16.msra.mxu0 0
    %84 = vmatprep.subr.bf16.mxu0 0
    %85 = vmatpush1.bf16.msra.mxu0 0
    %86 = vmatprep.subr.bf16.mxu0 0
    %87 = vmatpush1.bf16.msra.mxu0 0
    %88 = vmatprep.mubr.bf16.mxu0 0
    %89 = vmatmul.mubr.bf16.gmra.mrb[0].mxu0 %v47
    %v90 = vpop.f32.mrb[0].mxu0
    %v91 = vadd.f32 %v44, %v90
    %v92 = vpop.f32.mrb[0].mxu0
    %v93 = vpop.f32.mrb[0].mxu0
    %v94 = vadd.f32 %v44, %v93
    %v95 = vpop.f32.mrb[0].mxu0
    %96 = vmatprep.mubr.bf16.mxu0 0
    %97 = vmatmul.mubr.bf16.gmra.mrb[0].mxu0 %v50
    %v98 = vpop.f32.mrb[0].mxu0
    %v99 = vadd.f32 %v44, %v98
    %v100 = vpop.f32.mrb[0].mxu0
    %v101 = vpop.f32.mrb[0].mxu0
    %v102 = vadd.f32 %v44, %v101
    %v103 = vpop.f32.mrb[0].mxu0
    %104 = vdwg.mxu0
    %v105 = vld [vmem:[%s1] sm:$0xf]
    %v106 = vld [vmem:[%s1 + $0x4] sm:$0xf]
    %v107 = vld [vmem:[%s1 + $0x8] sm:$0xf]
    %v108 = vld [vmem:[%s1 + $0xc] sm:$0xf]
    %v109 = vpack.c.bf16 %v94, %v91
    %v110 = vpack.c.bf16 %v102, %v99
    %v111 = vld [vmem:[%s3 + $0x31] sm:$0x1]
    %v112 = vlaneseq
    %v113 = vshrl.u32 %v112, 7
    %v114 = vsub.s32 0, %v113
    %v115 = vrot.slane %v111, %v114
    %v120 = vunpack.c.l.b16 %v105
    %v121 = vunpack.c.l.b16 %v106
    %v122 = vunpack.c.l.b16 %v107
    %v123 = vunpack.c.l.b16 %v108
    %v124 = vpack.c.b16 %v121, %v120
    %v125 = vpack.c.b16 %v123, %v122
    %vm126 = vcmask 261120
    %v128 = vsel %vm126, %v124, 0
    %v131 = vsel %vm126, %v125, 0
    %133 = vmatprep.subr.bf16.mxu0 0
    %134 = vmatpush1.bf16.msra.mxu0 %v109
    %135 = vmatprep.subr.bf16.mxu0 0
    %136 = vmatpush1.bf16.msra.mxu0 %v110
    %137 = vmatprep.subr.bf16.mxu0 0
    %138 = vmatpush1.bf16.msra.mxu0 0
    %139 = vmatprep.subr.bf16.mxu0 0
    %140 = vmatpush1.bf16.msra.mxu0 0
    %141 = vmatprep.subr.bf16.mxu0 0
    %142 = vmatpush1.bf16.msra.mxu0 0
    %143 = vmatprep.subr.bf16.mxu0 0
    %144 = vmatpush1.bf16.msra.mxu0 0
    %145 = vmatprep.subr.bf16.mxu0 0
    %146 = vmatpush1.bf16.msra.mxu0 0
    %147 = vmatprep.subr.bf16.mxu0 0
    %148 = vmatpush1.bf16.msra.mxu0 0
    %149 = vmatprep.subr.bf16.mxu0 0
    %150 = vmatpush1.bf16.msra.mxu0 0
    %151 = vmatprep.subr.bf16.mxu0 0
    %152 = vmatpush1.bf16.msra.mxu0 0
    %153 = vmatprep.subr.bf16.mxu0 0
    %154 = vmatpush1.bf16.msra.mxu0 0
    %155 = vmatprep.subr.bf16.mxu0 0
    %156 = vmatpush1.bf16.msra.mxu0 0
    %157 = vmatprep.subr.bf16.mxu0 0
    %158 = vmatpush1.bf16.msra.mxu0 0
    %159 = vmatprep.subr.bf16.mxu0 0
    %160 = vmatpush1.bf16.msra.mxu0 0
    %161 = vmatprep.subr.bf16.mxu0 0
    %162 = vmatpush1.bf16.msra.mxu0 0
    %163 = vmatprep.subr.bf16.mxu0 0
    %164 = vmatpush1.bf16.msra.mxu0 0
    %165 = vmatprep.mubr.bf16.mxu0 0
    %166 = vmatmul.mubr.bf16.gmra.mrb[0].mxu0 %v128
    %v167 = vpop.f32.mrb[0].mxu0
    %v168 = vadd.f32 %v115, %v167
    %v169 = vpop.f32.mrb[0].mxu0
    %v170 = vpop.f32.mrb[0].mxu0
    %v171 = vadd.f32 %v115, %v170
    %v172 = vpop.f32.mrb[0].mxu0
    %173 = vmatprep.mubr.bf16.mxu0 0
    %174 = vmatmul.mubr.bf16.gmra.mrb[0].mxu0 %v131
    %v175 = vpop.f32.mrb[0].mxu0
    %v176 = vadd.f32 %v115, %v175
    %v177 = vpop.f32.mrb[0].mxu0
    %v178 = vpop.f32.mrb[0].mxu0
    %v179 = vadd.f32 %v115, %v178
    %v180 = vpop.f32.mrb[0].mxu0
    %181 = vdwg.mxu0
    %v182 = vxor.u32 %v168, 2147483648
    %v183 = vxor.u32 %v171, 2147483648
    %v184 = vxor.u32 %v176, 2147483648
    %v185 = vxor.u32 %v179, 2147483648
    %v186 = vmul.f32 %v182, 1.442695
    %v187 = vpow.pop %v186
    %v188 = vmul.f32 %v183, 1.442695
    %v189 = vpow.pop %v188
    %v190 = vmul.f32 %v184, 1.442695
    %v191 = vpow.pop %v190
    %v192 = vmul.f32 %v185, 1.442695
    %v193 = vpow.pop %v192
    %v194 = vadd.f32 %v187, 1.0
    %v195 = vadd.f32 %v189, 1.0
    %v196 = vadd.f32 %v191, 1.0
    %v197 = vadd.f32 %v193, 1.0
    %v198 = vrcp.pop %v194
    %v199 = vmul.f32 1.0, %v198
    %v200 = vrcp.pop %v195
    %v201 = vmul.f32 1.0, %v200
    %v202 = vrcp.pop %v196
    %v203 = vmul.f32 1.0, %v202
    %v204 = vrcp.pop %v197
    %v205 = vmul.f32 1.0, %v204
    %v206 = vmul.f32 %v168, %v199
    %v207 = vmul.f32 %v171, %v201
    %v208 = vmul.f32 %v176, %v203
    %v209 = vmul.f32 %v179, %v205
    %v210 = vld [vmem:[%s1 + $0x10] sm:$0xf]
    %v211 = vld [vmem:[%s1 + $0x14] sm:$0xf]
    %v212 = vpack.c.bf16 %v207, %v206
    %v213 = vpack.c.bf16 %v209, %v208
    %v216 = vunpack.c.l.b16 %v210
    %v217 = vunpack.c.l.b16 %v211
    %v218 = vpack.c.b16 %v217, %v216
    %v220 = vsel %vm126, %v218, 0
    %222 = vmatprep.subr.bf16.mxu0 0
    %223 = vmatpush1.bf16.msra.mxu0 %v212
    %224 = vmatprep.subr.bf16.mxu0 0
    %225 = vmatpush1.bf16.msra.mxu0 %v213
    %226 = vmatprep.subr.bf16.mxu0 0
    %227 = vmatpush1.bf16.msra.mxu0 0
    %228 = vmatprep.subr.bf16.mxu0 0
    %229 = vmatpush1.bf16.msra.mxu0 0
    %230 = vmatprep.subr.bf16.mxu0 0
    %231 = vmatpush1.bf16.msra.mxu0 0
    %232 = vmatprep.subr.bf16.mxu0 0
    %233 = vmatpush1.bf16.msra.mxu0 0
    %234 = vmatprep.subr.bf16.mxu0 0
    %235 = vmatpush1.bf16.msra.mxu0 0
    %236 = vmatprep.subr.bf16.mxu0 0
    %237 = vmatpush1.bf16.msra.mxu0 0
    %238 = vmatprep.subr.bf16.mxu0 0
    %239 = vmatpush1.bf16.msra.mxu0 0
    %240 = vmatprep.subr.bf16.mxu0 0
    %241 = vmatpush1.bf16.msra.mxu0 0
    %242 = vmatprep.subr.bf16.mxu0 0
    %243 = vmatpush1.bf16.msra.mxu0 0
    %244 = vmatprep.subr.bf16.mxu0 0
    %245 = vmatpush1.bf16.msra.mxu0 0
    %246 = vmatprep.subr.bf16.mxu0 0
    %247 = vmatpush1.bf16.msra.mxu0 0
    %248 = vmatprep.subr.bf16.mxu0 0
    %249 = vmatpush1.bf16.msra.mxu0 0
    %250 = vmatprep.subr.bf16.mxu0 0
    %251 = vmatpush1.bf16.msra.mxu0 0
    %252 = vmatprep.subr.bf16.mxu0 0
    %253 = vmatpush1.bf16.msra.mxu0 0
    %254 = vmatprep.mubr.bf16.mxu0 0
    %255 = vmatmul.mubr.bf16.gmra.mrb[0].mxu0 %v220
    %v256 = vpop.f32.mrb[0].mxu0
    %v257 = vadd.f32 0.0, %v256
    %v258 = vpop.f32.mrb[0].mxu0
    %v259 = vpop.f32.mrb[0].mxu0
    %v260 = vadd.f32 0.0, %v259
    %v261 = vpop.f32.mrb[0].mxu0
    %262 = vdwg.mxu0
    %v263 = vld [vmem:[%s1 + $0x18] sm:$0xf]
    %v264 = vld [vmem:[%s1 + $0x1c] sm:$0xf]
    %v267 = vunpack.c.l.b16 %v263
    %v268 = vunpack.c.l.b16 %v264
    %v269 = vpack.c.b16 %v268, %v267
    %v271 = vsel %vm126, %v269, 0
    %273 = vmatprep.subr.bf16.mxu0 0
    %274 = vmatpush1.bf16.msra.mxu0 %v212
    %275 = vmatprep.subr.bf16.mxu0 0
    %276 = vmatpush1.bf16.msra.mxu0 %v213
    %277 = vmatprep.subr.bf16.mxu0 0
    %278 = vmatpush1.bf16.msra.mxu0 0
    %279 = vmatprep.subr.bf16.mxu0 0
    %280 = vmatpush1.bf16.msra.mxu0 0
    %281 = vmatprep.subr.bf16.mxu0 0
    %282 = vmatpush1.bf16.msra.mxu0 0
    %283 = vmatprep.subr.bf16.mxu0 0
    %284 = vmatpush1.bf16.msra.mxu0 0
    %285 = vmatprep.subr.bf16.mxu0 0
    %286 = vmatpush1.bf16.msra.mxu0 0
    %287 = vmatprep.subr.bf16.mxu0 0
    %288 = vmatpush1.bf16.msra.mxu0 0
    %289 = vmatprep.subr.bf16.mxu0 0
    %290 = vmatpush1.bf16.msra.mxu0 0
    %291 = vmatprep.subr.bf16.mxu0 0
    %292 = vmatpush1.bf16.msra.mxu0 0
    %293 = vmatprep.subr.bf16.mxu0 0
    %294 = vmatpush1.bf16.msra.mxu0 0
    %295 = vmatprep.subr.bf16.mxu0 0
    %296 = vmatpush1.bf16.msra.mxu0 0
    %297 = vmatprep.subr.bf16.mxu0 0
    %298 = vmatpush1.bf16.msra.mxu0 0
    %299 = vmatprep.subr.bf16.mxu0 0
    %300 = vmatpush1.bf16.msra.mxu0 0
    %301 = vmatprep.subr.bf16.mxu0 0
    %302 = vmatpush1.bf16.msra.mxu0 0
    %303 = vmatprep.subr.bf16.mxu0 0
    %304 = vmatpush1.bf16.msra.mxu0 0
    %305 = vmatprep.mubr.bf16.mxu0 0
    %306 = vmatmul.mubr.bf16.gmra.mrb[0].mxu0 %v271
    %v307 = vpop.f32.mrb[0].mxu0
    %v308 = vadd.f32 0.0, %v307
    %v309 = vpop.f32.mrb[0].mxu0
    %v310 = vpop.f32.mrb[0].mxu0
    %v311 = vadd.f32 0.0, %v310
    %v312 = vpop.f32.mrb[0].mxu0
    %313 = vdwg.mxu0
    %v314 = vmax.f32 %v257, %v308
    %v315 = vmax.f32 %v260, %v311
    %v316 = vld [vmem:[%s1 + $0x20] sm:$0xf]
    %v317 = vld [vmem:[%s1 + $0x24] sm:$0xf]
    %v318 = vpack.c.bf16 %v315, %v314
    %v319 = vld [vmem:[%s3 + $0x32] sm:$0x1]
    %v320 = vlaneseq
    %v321 = vshrl.u32 %v320, 7
    %v322 = vsub.s32 0, %v321
    %v323 = vrot.slane %v319, %v322
    %v326 = vunpack.c.l.b16 %v316
    %v327 = vunpack.c.l.b16 %v317
    %v328 = vpack.c.b16 %v327, %v326
    %vm329 = vcmask 130048
    %v331 = vsel %vm329, %v328, 0
    %333 = vmatprep.subr.bf16.mxu0 0
    %334 = vmatpush1.bf16.msra.mxu0 %v318
    %335 = vmatprep.subr.bf16.mxu0 0
    %336 = vmatpush1.bf16.msra.mxu0 0
    %337 = vmatprep.subr.bf16.mxu0 0
    %338 = vmatpush1.bf16.msra.mxu0 0
    %339 = vmatprep.subr.bf16.mxu0 0
    %340 = vmatpush1.bf16.msra.mxu0 0
    %341 = vmatprep.subr.bf16.mxu0 0
    %342 = vmatpush1.bf16.msra.mxu0 0
    %343 = vmatprep.subr.bf16.mxu0 0
    %344 = vmatpush1.bf16.msra.mxu0 0
    %345 = vmatprep.subr.bf16.mxu0 0
    %346 = vmatpush1.bf16.msra.mxu0 0
    %347 = vmatprep.subr.bf16.mxu0 0
    %348 = vmatpush1.bf16.msra.mxu0 0
    %349 = vmatprep.subr.bf16.mxu0 0
    %350 = vmatpush1.bf16.msra.mxu0 0
    %351 = vmatprep.subr.bf16.mxu0 0
    %352 = vmatpush1.bf16.msra.mxu0 0
    %353 = vmatprep.subr.bf16.mxu0 0
    %354 = vmatpush1.bf16.msra.mxu0 0
    %355 = vmatprep.subr.bf16.mxu0 0
    %356 = vmatpush1.bf16.msra.mxu0 0
    %357 = vmatprep.subr.bf16.mxu0 0
    %358 = vmatpush1.bf16.msra.mxu0 0
    %359 = vmatprep.subr.bf16.mxu0 0
    %360 = vmatpush1.bf16.msra.mxu0 0
    %361 = vmatprep.subr.bf16.mxu0 0
    %362 = vmatpush1.bf16.msra.mxu0 0
    %363 = vmatprep.subr.bf16.mxu0 0
    %364 = vmatpush1.bf16.msra.mxu0 0
    %365 = vmatprep.mubr.bf16.mxu0 0
    %366 = vmatmul.mubr.bf16.gmra.mrb[0].mxu0 %v331
    %v367 = vpop.f32.mrb[0].mxu0
    %v368 = vadd.f32 %v323, %v367
    %v369 = vpop.f32.mrb[0].mxu0
    %v370 = vpop.f32.mrb[0].mxu0
    %v371 = vadd.f32 %v323, %v370
    %v372 = vpop.f32.mrb[0].mxu0
    %373 = vdwg.mxu0
    %v374 = vld [vmem:[%s3] sm:$0x1]
    %v375 = vld [vmem:[%s3 + $0x1] sm:$0x1]
    %v376 = vsel %vm126, %v368, 0.0
    %377 = vadd.xlane.f32.xlu0 %v376
    %v378 = vpop.xlane.xlu0 %377
    %v379 = vsel %vm126, %v371, 0.0
    %380 = vadd.xlane.f32.xlu0 %v379
    %v381 = vpop.xlane.xlu0 %380
    %v382 = vrcp.pop 32.0
    %v383 = vmul.f32 %v378, %v382
    %v384 = vmul.f32 %v381, %v382
    %v385 = vsub.f32 %v368, %v383
    %v386 = vsub.f32 %v371, %v384
    %v387 = vmul.f32 %v385, %v385
    %v388 = vmul.f32 %v386, %v386
    %v389 = vsel %vm126, %v387, 0.0
    %390 = vadd.xlane.f32.xlu0 %v389
    %v391 = vpop.xlane.xlu0 %390
    %v392 = vsel %vm126, %v388, 0.0
    %393 = vadd.xlane.f32.xlu0 %v392
    %v394 = vpop.xlane.xlu0 %393
    %v395 = vmul.f32 %v391, %v382
    %v396 = vmul.f32 %v394, %v382
    %v397 = vadd.f32 %v395, 1e-05
    %v398 = vadd.f32 %v396, 1e-05
    %v399 = vrsqrt.pop %v397
    %v400 = vrsqrt.pop %v398
    %v401 = vmul.f32 %v385, %v399
    %v402 = vmul.f32 %v386, %v400
    %v403 = vlaneseq
    %v404 = vshrl.u32 %v403, 7
    %v405 = vsub.s32 0, %v404
    %v406 = vrot.slane %v374, %v405
    %v407 = vmul.f32 %v401, %v406
    %v408 = vmul.f32 %v402, %v406
    %v409 = vlaneseq
    %v410 = vshrl.u32 %v409, 7
    %v411 = vsub.s32 0, %v410
    %v412 = vrot.slane %v375, %v411
    %v413 = vadd.f32 %v407, %v412
    %v414 = vadd.f32 %v408, %v412
    %v415 = vld [vmem:[%s3 + $0x10] sm:$0xff]
    %v416 = vld [vmem:[%s3 + $0x18] sm:$0xff]
    %v417 = vadd.f32 %v413, %v415
    %v418 = vadd.f32 %v414, %v416
    %v419 = vld [vmem:[%s3 + $0x2] sm:$0x1]
    %v420 = vld [vmem:[%s3 + $0x3] sm:$0x1]
    %v421 = vsel %vm126, %v417, 0.0
    %422 = vadd.xlane.f32.xlu0 %v421
    %v423 = vpop.xlane.xlu0 %422
    %v424 = vsel %vm126, %v418, 0.0
    %425 = vadd.xlane.f32.xlu0 %v424
    %v426 = vpop.xlane.xlu0 %425
    %v427 = vmul.f32 %v423, %v382
    %v428 = vmul.f32 %v426, %v382
    %v429 = vsub.f32 %v417, %v427
    %v430 = vsub.f32 %v418, %v428
    %v431 = vmul.f32 %v429, %v429
    %v432 = vmul.f32 %v430, %v430
    %v433 = vsel %vm126, %v431, 0.0
    %434 = vadd.xlane.f32.xlu0 %v433
    %v435 = vpop.xlane.xlu0 %434
    %v436 = vsel %vm126, %v432, 0.0
    %437 = vadd.xlane.f32.xlu0 %v436
    %v438 = vpop.xlane.xlu0 %437
    %v439 = vmul.f32 %v435, %v382
    %v440 = vmul.f32 %v438, %v382
    %v441 = vadd.f32 %v439, 1e-05
    %v442 = vadd.f32 %v440, 1e-05
    %v443 = vrsqrt.pop %v441
    %v444 = vrsqrt.pop %v442
    %v445 = vmul.f32 %v429, %v443
    %v446 = vmul.f32 %v430, %v444
    %v447 = vlaneseq
    %v448 = vshrl.u32 %v447, 7
    %v449 = vsub.s32 0, %v448
    %v450 = vrot.slane %v419, %v449
    %v451 = vmul.f32 %v445, %v450
    %v452 = vmul.f32 %v446, %v450
    %v453 = vlaneseq
    %v454 = vshrl.u32 %v453, 7
    %v455 = vsub.s32 0, %v454
    %v456 = vrot.slane %v420, %v455
    %v457 = vadd.f32 %v451, %v456
    %v458 = vadd.f32 %v452, %v456
    %v459 = vld [vmem:[%s3 + $0x20] sm:$0xff]
    %v460 = vld [vmem:[%s3 + $0x28] sm:$0xff]
    %v461 = vld [vmem:[#allocation2] sm:$0xf]
    %v462 = vld [vmem:[#allocation2 + $0x4] sm:$0xf]
    %v463 = vld [vmem:[#allocation2 + $0x8] sm:$0xf]
    %v464 = vld [vmem:[#allocation2 + $0xc] sm:$0xf]
    %v465 = vld [vmem:[#allocation2 + $0x10] sm:$0xf]
    %v466 = vld [vmem:[#allocation2 + $0x14] sm:$0xf]
    %v467 = vld [vmem:[#allocation2 + $0x18] sm:$0xf]
    %v468 = vld [vmem:[#allocation2 + $0x1c] sm:$0xf]
    %v469 = vld [vmem:[#allocation2 + $0x20] sm:$0xf]
    %v470 = vld [vmem:[#allocation2 + $0x24] sm:$0xf]
    %v471 = vld [vmem:[#allocation2 + $0x28] sm:$0xf]
    %v472 = vld [vmem:[#allocation2 + $0x2c] sm:$0xf]
    %v473 = vld [vmem:[#allocation2 + $0x30] sm:$0xf]
    %v474 = vld [vmem:[#allocation2 + $0x34] sm:$0xf]
    %v475 = vld [vmem:[#allocation2 + $0x38] sm:$0xf]
    %v476 = vld [vmem:[#allocation2 + $0x3c] sm:$0xf]
    %v477 = vld [vmem:[#allocation2 + $0x40] sm:$0xf]
    %v478 = vld [vmem:[#allocation2 + $0x44] sm:$0xf]
    %v479 = vld [vmem:[#allocation2 + $0x48] sm:$0xf]
    %v480 = vld [vmem:[#allocation2 + $0x4c] sm:$0xf]
    %v481 = vpack.c.bf16 %v458, %v457
    %v482 = vld [vmem:[%s3 + $0x34] sm:$0x1]
    %v483 = vlaneseq
    %v484 = vshrl.u32 %v483, 7
    %v485 = vsub.s32 0, %v484
    %v486 = vrot.slane %v482, %v485
    %v491 = vunpack.c.l.b16 %v461
    %v492 = vunpack.c.l.b16 %v462
    %v493 = vunpack.c.l.b16 %v463
    %v494 = vunpack.c.l.b16 %v464
    %v495 = vpack.c.b16 %v492, %v491
    %v496 = vpack.c.b16 %v494, %v493
    %v500 = vsel %vm126, %v481, 0
    %502 = vmatprep.subr.bf16.mxu0 0
    %503 = vmatpush1.bf16.msra.mxu0 %v495
    %504 = vmatprep.subr.bf16.mxu0 0
    %505 = vmatpush1.bf16.msra.mxu0 %v496
    %506 = vmatprep.subr.bf16.mxu0 0
    %507 = vmatpush1.bf16.msra.mxu0 0
    %508 = vmatprep.subr.bf16.mxu0 0
    %509 = vmatpush1.bf16.msra.mxu0 0
    %510 = vmatprep.subr.bf16.mxu0 0
    %511 = vmatpush1.bf16.msra.mxu0 0
    %512 = vmatprep.subr.bf16.mxu0 0
    %513 = vmatpush1.bf16.msra.mxu0 0
    %514 = vmatprep.subr.bf16.mxu0 0
    %515 = vmatpush1.bf16.msra.mxu0 0
    %516 = vmatprep.subr.bf16.mxu0 0
    %517 = vmatpush1.bf16.msra.mxu0 0
    %518 = vmatprep.subr.bf16.mxu0 0
    %519 = vmatpush1.bf16.msra.mxu0 0
    %520 = vmatprep.subr.bf16.mxu0 0
    %521 = vmatpush1.bf16.msra.mxu0 0
    %522 = vmatprep.subr.bf16.mxu0 0
    %523 = vmatpush1.bf16.msra.mxu0 0
    %524 = vmatprep.subr.bf16.mxu0 0
    %525 = vmatpush1.bf16.msra.mxu0 0
    %526 = vmatprep.subr.bf16.mxu0 0
    %527 = vmatpush1.bf16.msra.mxu0 0
    %528 = vmatprep.subr.bf16.mxu0 0
    %529 = vmatpush1.bf16.msra.mxu0 0
    %530 = vmatprep.subr.bf16.mxu0 0
    %531 = vmatpush1.bf16.msra.mxu0 0
    %532 = vmatprep.subr.bf16.mxu0 0
    %533 = vmatpush1.bf16.msra.mxu0 0
    %534 = vmatprep.mubr.bf16.mxu0 0
    %535 = vmatmul.mubr.bf16.gmra.mrb[0].mxu0 %v500
    %v536 = vpop.f32.mrb[0].mxu0
    %v537 = vadd.f32 %v486, %v536
    %v538 = vpop.f32.mrb[0].mxu0
    %v539 = vpop.f32.mrb[0].mxu0
    %v540 = vadd.f32 %v486, %v539
    %v541 = vpop.f32.mrb[0].mxu0
    %542 = vdwg.mxu0
    %v543 = vpack.c.bf16 %v540, %v537
    %545 = vrot.lane.b32.xlu0 %v543, 96
    %v546 = vpop.permute.xlu0 %545
    %vm547 = vcmask 64512
    %v549 = vsel %vm547, %v543, 0
    %v552 = vsel %vm547, %v546, 0
    %554 = vmatprep.subr.bf16.mxu0 0
    %555 = vmatpush1.bf16.xpose.msra.mxu0 %v552
    %556 = vmatprep.subr.bf16.mxu0 0
    %557 = vmatpush1.bf16.xpose.msra.mxu0 0
    %558 = vmatprep.subr.bf16.mxu0 0
    %559 = vmatpush1.bf16.xpose.msra.mxu0 0
    %560 = vmatprep.subr.bf16.mxu0 0
    %561 = vmatpush1.bf16.xpose.msra.mxu0 0
    %562 = vmatprep.subr.bf16.mxu0 0
    %563 = vmatpush1.bf16.xpose.msra.mxu0 0
    %564 = vmatprep.subr.bf16.mxu0 0
    %565 = vmatpush1.bf16.xpose.msra.mxu0 0
    %566 = vmatprep.subr.bf16.mxu0 0
    %567 = vmatpush1.bf16.xpose.msra.mxu0 0
    %568 = vmatprep.subr.bf16.mxu0 0
    %569 = vmatpush1.bf16.xpose.msra.mxu0 0
    %570 = vmatprep.subr.bf16.mxu0 0
    %571 = vmatpush1.bf16.xpose.msra.mxu0 0
    %572 = vmatprep.subr.bf16.mxu0 0
    %573 = vmatpush1.bf16.xpose.msra.mxu0 0
    %574 = vmatprep.subr.bf16.mxu0 0
    %575 = vmatpush1.bf16.xpose.msra.mxu0 0
    %576 = vmatprep.subr.bf16.mxu0 0
    %577 = vmatpush1.bf16.xpose.msra.mxu0 0
    %578 = vmatprep.subr.bf16.mxu0 0
    %579 = vmatpush1.bf16.xpose.msra.mxu0 0
    %580 = vmatprep.subr.bf16.mxu0 0
    %581 = vmatpush1.bf16.xpose.msra.mxu0 0
    %582 = vmatprep.subr.bf16.mxu0 0
    %583 = vmatpush1.bf16.xpose.msra.mxu0 0
    %584 = vmatprep.subr.bf16.mxu0 0
    %585 = vmatpush1.bf16.xpose.msra.mxu0 0
    %586 = vmatprep.mubr.bf16.mxu0 0
    %587 = vmatmul.mubr.bf16.gmra.mrb[0].mxu0 %v549
    %v588 = vpop.f32.mrb[0].mxu0
    %v589 = vadd.f32 0.0, %v588
    %v590 = vpop.f32.mrb[0].mxu0
    %v591 = vpop.f32.mrb[0].mxu0
    %v592 = vadd.f32 0.0, %v591
    %v593 = vpop.f32.mrb[0].mxu0
    %594 = vdwg.mxu0
    %v595 = vmul.f32 %v589, 0.35355338
    %v596 = vmul.f32 %v592, 0.35355338
    %v597 = vadd.f32 %v595, %v459
    %v598 = vadd.f32 %v596, %v460
    %v599 = vsel %vm329, %v597, -inf
    %600 = vmax.xlane.f32.xlu0 %v599
    %v601 = vpop.xlane.xlu0 %600
    %v602 = vsel %vm329, %v598, -inf
    %603 = vmax.xlane.f32.xlu0 %v602
    %v604 = vpop.xlane.xlu0 %603
    %v605 = vsub.f32 %v597, %v601
    %v606 = vsub.f32 %v598, %v604
    %v607 = vmul.f32 %v605, 1.442695
    %v608 = vpow.pop %v607
    %v609 = vmul.f32 %v606, 1.442695
    %v610 = vpow.pop %v609
    %v611 = vsel %vm329, %v608, 0.0
    %612 = vadd.xlane.f32.xlu0 %v611
    %v613 = vpop.xlane.xlu0 %612
    %v614 = vsel %vm329, %v610, 0.0
    %615 = vadd.xlane.f32.xlu0 %v614
    %v616 = vpop.xlane.xlu0 %615
    %v617 = vrcp.pop %v613
    %v618 = vrcp.pop %v616
    %v619 = vmul.f32 %v608, %v617
    %v620 = vmul.f32 %v610, %v618
    %v621 = vpack.c.bf16 %v620, %v619
    %622 = vrot.lane.b32.xlu0 %v543, 64
    %v623 = vpop.permute.xlu0 %622
    %v626 = vsel %vm329, %v621, 0
    %628 = vmatprep.subr.bf16.mxu0 0
    %629 = vmatpush1.bf16.msra.mxu0 %v623
    %630 = vmatprep.subr.bf16.mxu0 0
    %631 = vmatpush1.bf16.msra.mxu0 0
    %632 = vmatprep.subr.bf16.mxu0 0
    %633 = vmatpush1.bf16.msra.mxu0 0
    %634 = vmatprep.subr.bf16.mxu0 0
    %635 = vmatpush1.bf16.msra.mxu0 0
    %636 = vmatprep.subr.bf16.mxu0 0
    %637 = vmatpush1.bf16.msra.mxu0 0
    %638 = vmatprep.subr.bf16.mxu0 0
    %639 = vmatpush1.bf16.msra.mxu0 0
    %640 = vmatprep.subr.bf16.mxu0 0
    %641 = vmatpush1.bf16.msra.mxu0 0
    %642 = vmatprep.subr.bf16.mxu0 0
    %643 = vmatpush1.bf16.msra.mxu0 0
    %644 = vmatprep.subr.bf16.mxu0 0
    %645 = vmatpush1.bf16.msra.mxu0 0
    %646 = vmatprep.subr.bf16.mxu0 0
    %647 = vmatpush1.bf16.msra.mxu0 0
    %648 = vmatprep.subr.bf16.mxu0 0
    %649 = vmatpush1.bf16.msra.mxu0 0
    %650 = vmatprep.subr.bf16.mxu0 0
    %651 = vmatpush1.bf16.msra.mxu0 0
    %652 = vmatprep.subr.bf16.mxu0 0
    %653 = vmatpush1.bf16.msra.mxu0 0
    %654 = vmatprep.subr.bf16.mxu0 0
    %655 = vmatpush1.bf16.msra.mxu0 0
    %656 = vmatprep.subr.bf16.mxu0 0
    %657 = vmatpush1.bf16.msra.mxu0 0
    %658 = vmatprep.subr.bf16.mxu0 0
    %659 = vmatpush1.bf16.msra.mxu0 0
    %660 = vmatprep.mubr.bf16.mxu0 0
    %661 = vmatmul.mubr.bf16.gmra.mrb[0].mxu0 %v626
    %v662 = vpop.f32.mrb[0].mxu0
    %v663 = vadd.f32 0.0, %v662
    %v664 = vpop.f32.mrb[0].mxu0
    %v665 = vpop.f32.mrb[0].mxu0
    %v666 = vadd.f32 0.0, %v665
    %v667 = vpop.f32.mrb[0].mxu0
    %668 = vdwg.mxu0
    %669 = vrot.lane.b32.xlu0 %v543, 120
    %v670 = vpop.permute.xlu0 %669
    %671 = vrot.lane.b32.xlu0 %v543, 88
    %v672 = vpop.permute.xlu0 %671
    %v674 = vsel %vm547, %v670, 0
    %v677 = vsel %vm547, %v672, 0
    %679 = vmatprep.subr.bf16.mxu0 0
    %680 = vmatpush1.bf16.xpose.msra.mxu0 %v677
    %681 = vmatprep.subr.bf16.mxu0 0
    %682 = vmatpush1.bf16.xpose.msra.mxu0 0
    %683 = vmatprep.subr.bf16.mxu0 0
    %684 = vmatpush1.bf16.xpose.msra.mxu0 0
    %685 = vmatprep.subr.bf16.mxu0 0
    %686 = vmatpush1.bf16.xpose.msra.mxu0 0
    %687 = vmatprep.subr.bf16.mxu0 0
    %688 = vmatpush1.bf16.xpose.msra.mxu0 0
    %689 = vmatprep.subr.bf16.mxu0 0
    %690 = vmatpush1.bf16.xpose.msra.mxu0 0
    %691 = vmatprep.subr.bf16.mxu0 0
    %692 = vmatpush1.bf16.xpose.msra.mxu0 0
    %693 = vmatprep.subr.bf16.mxu0 0
    %694 = vmatpush1.bf16.xpose.msra.mxu0 0
    %695 = vmatprep.subr.bf16.mxu0 0
    %696 = vmatpush1.bf16.xpose.msra.mxu0 0
    %697 = vmatprep.subr.bf16.mxu0 0
    %698 = vmatpush1.bf16.xpose.msra.mxu0 0
    %699 = vmatprep.subr.bf16.mxu0 0
    %700 = vmatpush1.bf16.xpose.msra.mxu0 0
    %701 = vmatprep.subr.bf16.mxu0 0
    %702 = vmatpush1.bf16.xpose.msra.mxu0 0
    %703 = vmatprep.subr.bf16.mxu0 0
    %704 = vmatpush1.bf16.xpose.msra.mxu0 0
    %705 = vmatprep.subr.bf16.mxu0 0
    %706 = vmatpush1.bf16.xpose.msra.mxu0 0
    %707 = vmatprep.subr.bf16.mxu0 0
    %708 = vmatpush1.bf16.xpose.msra.mxu0 0
    %709 = vmatprep.subr.bf16.mxu0 0
    %710 = vmatpush1.bf16.xpose.msra.mxu0 0
    %711 = vmatprep.mubr.bf16.mxu0 0
    %712 = vmatmul.mubr.bf16.gmra.mrb[0].mxu0 %v674
    %v713 = vpop.f32.mrb[0].mxu0
    %v714 = vadd.f32 0.0, %v713
    %v715 = vpop.f32.mrb[0].mxu0
    %v716 = vpop.f32.mrb[0].mxu0
    %v717 = vadd.f32 0.0, %v716
    %v718 = vpop.f32.mrb[0].mxu0
    %719 = vdwg.mxu0
    %v720 = vmul.f32 %v714, 0.35355338
    %v721 = vmul.f32 %v717, 0.35355338
    %v722 = vadd.f32 %v720, %v459
    %v723 = vadd.f32 %v721, %v460
    %v724 = vsel %vm329, %v722, -inf
    %725 = vmax.xlane.f32.xlu0 %v724
    %v726 = vpop.xlane.xlu0 %725
    %v727 = vsel %vm329, %v723, -inf
    %728 = vmax.xlane.f32.xlu0 %v727
    %v729 = vpop.xlane.xlu0 %728
    %v730 = vsub.f32 %v722, %v726
    %v731 = vsub.f32 %v723, %v729
    %v732 = vmul.f32 %v730, 1.442695
    %v733 = vpow.pop %v732
    %v734 = vmul.f32 %v731, 1.442695
    %v735 = vpow.pop %v734
    %v736 = vsel %vm329, %v733, 0.0
    %737 = vadd.xlane.f32.xlu0 %v736
    %v738 = vpop.xlane.xlu0 %737
    %v739 = vsel %vm329, %v735, 0.0
    %740 = vadd.xlane.f32.xlu0 %v739
    %v741 = vpop.xlane.xlu0 %740
    %v742 = vrcp.pop %v738
    %v743 = vrcp.pop %v741
    %v744 = vmul.f32 %v733, %v742
    %v745 = vmul.f32 %v735, %v743
    %v746 = vpack.c.bf16 %v745, %v744
    %747 = vrot.lane.b32.xlu0 %v543, 56
    %v748 = vpop.permute.xlu0 %747
    %v751 = vsel %vm329, %v746, 0
    %753 = vmatprep.subr.bf16.mxu0 0
    %754 = vmatpush1.bf16.msra.mxu0 %v748
    %755 = vmatprep.subr.bf16.mxu0 0
    %756 = vmatpush1.bf16.msra.mxu0 0
    %757 = vmatprep.subr.bf16.mxu0 0
    %758 = vmatpush1.bf16.msra.mxu0 0
    %759 = vmatprep.subr.bf16.mxu0 0
    %760 = vmatpush1.bf16.msra.mxu0 0
    %761 = vmatprep.subr.bf16.mxu0 0
    %762 = vmatpush1.bf16.msra.mxu0 0
    %763 = vmatprep.subr.bf16.mxu0 0
    %764 = vmatpush1.bf16.msra.mxu0 0
    %765 = vmatprep.subr.bf16.mxu0 0
    %766 = vmatpush1.bf16.msra.mxu0 0
    %767 = vmatprep.subr.bf16.mxu0 0
    %768 = vmatpush1.bf16.msra.mxu0 0
    %769 = vmatprep.subr.bf16.mxu0 0
    %770 = vmatpush1.bf16.msra.mxu0 0
    %771 = vmatprep.subr.bf16.mxu0 0
    %772 = vmatpush1.bf16.msra.mxu0 0
    %773 = vmatprep.subr.bf16.mxu0 0
    %774 = vmatpush1.bf16.msra.mxu0 0
    %775 = vmatprep.subr.bf16.mxu0 0
    %776 = vmatpush1.bf16.msra.mxu0 0
    %777 = vmatprep.subr.bf16.mxu0 0
    %778 = vmatpush1.bf16.msra.mxu0 0
    %779 = vmatprep.subr.bf16.mxu0 0
    %780 = vmatpush1.bf16.msra.mxu0 0
    %781 = vmatprep.subr.bf16.mxu0 0
    %782 = vmatpush1.bf16.msra.mxu0 0
    %783 = vmatprep.subr.bf16.mxu0 0
    %784 = vmatpush1.bf16.msra.mxu0 0
    %785 = vmatprep.mubr.bf16.mxu0 0
    %786 = vmatmul.mubr.bf16.gmra.mrb[0].mxu0 %v751
    %v787 = vpop.f32.mrb[0].mxu0
    %v788 = vadd.f32 0.0, %v787
    %v789 = vpop.f32.mrb[0].mxu0
    %v790 = vpop.f32.mrb[0].mxu0
    %v791 = vadd.f32 0.0, %v790
    %v792 = vpop.f32.mrb[0].mxu0
    %793 = vdwg.mxu0
    %794 = vrot.lane.b32.xlu0 %v543, 112
    %v795 = vpop.permute.xlu0 %794
    %796 = vrot.lane.b32.xlu0 %v543, 80
    %v797 = vpop.permute.xlu0 %796
    %v799 = vsel %vm547, %v795, 0
    %v802 = vsel %vm547, %v797, 0
    %804 = vmatprep.subr.bf16.mxu0 0
    %805 = vmatpush1.bf16.xpose.msra.mxu0 %v802
    %806 = vmatprep.subr.bf16.mxu0 0
    %807 = vmatpush1.bf16.xpose.msra.mxu0 0
    %808 = vmatprep.subr.bf16.mxu0 0
    %809 = vmatpush1.bf16.xpose.msra.mxu0 0
    %810 = vmatprep.subr.bf16.mxu0 0
    %811 = vmatpush1.bf16.xpose.msra.mxu0 0
    %812 = vmatprep.subr.bf16.mxu0 0
    %813 = vmatpush1.bf16.xpose.msra.mxu0 0
    %814 = vmatprep.subr.bf16.mxu0 0
    %815 = vmatpush1.bf16.xpose.msra.mxu0 0
    %816 = vmatprep.subr.bf16.mxu0 0
    %817 = vmatpush1.bf16.xpose.msra.mxu0 0
    %818 = vmatprep.subr.bf16.mxu0 0
    %819 = vmatpush1.bf16.xpose.msra.mxu0 0
    %820 = vmatprep.subr.bf16.mxu0 0
    %821 = vmatpush1.bf16.xpose.msra.mxu0 0
    %822 = vmatprep.subr.bf16.mxu0 0
    %823 = vmatpush1.bf16.xpose.msra.mxu0 0
    %824 = vmatprep.subr.bf16.mxu0 0
    %825 = vmatpush1.bf16.xpose.msra.mxu0 0
    %826 = vmatprep.subr.bf16.mxu0 0
    %827 = vmatpush1.bf16.xpose.msra.mxu0 0
    %828 = vmatprep.subr.bf16.mxu0 0
    %829 = vmatpush1.bf16.xpose.msra.mxu0 0
    %830 = vmatprep.subr.bf16.mxu0 0
    %831 = vmatpush1.bf16.xpose.msra.mxu0 0
    %832 = vmatprep.subr.bf16.mxu0 0
    %833 = vmatpush1.bf16.xpose.msra.mxu0 0
    %834 = vmatprep.subr.bf16.mxu0 0
    %835 = vmatpush1.bf16.xpose.msra.mxu0 0
    %836 = vmatprep.mubr.bf16.mxu0 0
    %837 = vmatmul.mubr.bf16.gmra.mrb[0].mxu0 %v799
    %v838 = vpop.f32.mrb[0].mxu0
    %v839 = vadd.f32 0.0, %v838
    %v840 = vpop.f32.mrb[0].mxu0
    %v841 = vpop.f32.mrb[0].mxu0
    %v842 = vadd.f32 0.0, %v841
    %v843 = vpop.f32.mrb[0].mxu0
    %844 = vdwg.mxu0
    %v845 = vmul.f32 %v839, 0.35355338
    %v846 = vmul.f32 %v842, 0.35355338
    %v847 = vadd.f32 %v845, %v459
    %v848 = vadd.f32 %v846, %v460
    %v849 = vsel %vm329, %v847, -inf
    %850 = vmax.xlane.f32.xlu0 %v849
    %v851 = vpop.xlane.xlu0 %850
    %v852 = vsel %vm329, %v848, -inf
    %853 = vmax.xlane.f32.xlu0 %v852
    %v854 = vpop.xlane.xlu0 %853
    %v855 = vsub.f32 %v847, %v851
    %v856 = vsub.f32 %v848, %v854
    %v857 = vmul.f32 %v855, 1.442695
    %v858 = vpow.pop %v857
    %v859 = vmul.f32 %v856, 1.442695
    %v860 = vpow.pop %v859
    %v861 = vsel %vm329, %v858, 0.0
    %862 = vadd.xlane.f32.xlu0 %v861
    %v863 = vpop.xlane.xlu0 %862
    %v864 = vsel %vm329, %v860, 0.0
    %865 = vadd.xlane.f32.xlu0 %v864
    %v866 = vpop.xlane.xlu0 %865
    %v867 = vrcp.pop %v863
    %v868 = vrcp.pop %v866
    %v869 = vmul.f32 %v858, %v867
    %v870 = vmul.f32 %v860, %v868
    %v871 = vpack.c.bf16 %v870, %v869
    %872 = vrot.lane.b32.xlu0 %v543, 48
    %v873 = vpop.permute.xlu0 %872
    %v876 = vsel %vm329, %v871, 0
    %878 = vmatprep.subr.bf16.mxu0 0
    %879 = vmatpush1.bf16.msra.mxu0 %v873
    %880 = vmatprep.subr.bf16.mxu0 0
    %881 = vmatpush1.bf16.msra.mxu0 0
    %882 = vmatprep.subr.bf16.mxu0 0
    %883 = vmatpush1.bf16.msra.mxu0 0
    %884 = vmatprep.subr.bf16.mxu0 0
    %885 = vmatpush1.bf16.msra.mxu0 0
    %886 = vmatprep.subr.bf16.mxu0 0
    %887 = vmatpush1.bf16.msra.mxu0 0
    %888 = vmatprep.subr.bf16.mxu0 0
    %889 = vmatpush1.bf16.msra.mxu0 0
    %890 = vmatprep.subr.bf16.mxu0 0
    %891 = vmatpush1.bf16.msra.mxu0 0
    %892 = vmatprep.subr.bf16.mxu0 0
    %893 = vmatpush1.bf16.msra.mxu0 0
    %894 = vmatprep.subr.bf16.mxu0 0
    %895 = vmatpush1.bf16.msra.mxu0 0
    %896 = vmatprep.subr.bf16.mxu0 0
    %897 = vmatpush1.bf16.msra.mxu0 0
    %898 = vmatprep.subr.bf16.mxu0 0
    %899 = vmatpush1.bf16.msra.mxu0 0
    %900 = vmatprep.subr.bf16.mxu0 0
    %901 = vmatpush1.bf16.msra.mxu0 0
    %902 = vmatprep.subr.bf16.mxu0 0
    %903 = vmatpush1.bf16.msra.mxu0 0
    %904 = vmatprep.subr.bf16.mxu0 0
    %905 = vmatpush1.bf16.msra.mxu0 0
    %906 = vmatprep.subr.bf16.mxu0 0
    %907 = vmatpush1.bf16.msra.mxu0 0
    %908 = vmatprep.subr.bf16.mxu0 0
    %909 = vmatpush1.bf16.msra.mxu0 0
    %910 = vmatprep.mubr.bf16.mxu0 0
    %911 = vmatmul.mubr.bf16.gmra.mrb[0].mxu0 %v876
    %v912 = vpop.f32.mrb[0].mxu0
    %v913 = vadd.f32 0.0, %v912
    %v914 = vpop.f32.mrb[0].mxu0
    %v915 = vpop.f32.mrb[0].mxu0
    %v916 = vadd.f32 0.0, %v915
    %v917 = vpop.f32.mrb[0].mxu0
    %918 = vdwg.mxu0
    %919 = vrot.lane.b32.xlu0 %v543, 104
    %v920 = vpop.permute.xlu0 %919
    %921 = vrot.lane.b32.xlu0 %v543, 72
    %v922 = vpop.permute.xlu0 %921
    %v924 = vsel %vm547, %v920, 0
    %v927 = vsel %vm547, %v922, 0
    %929 = vmatprep.subr.bf16.mxu0 0
    %930 = vmatpush1.bf16.xpose.msra.mxu0 %v927
    %931 = vmatprep.subr.bf16.mxu0 0
    %932 = vmatpush1.bf16.xpose.msra.mxu0 0
    %933 = vmatprep.subr.bf16.mxu0 0
    %934 = vmatpush1.bf16.xpose.msra.mxu0 0
    %935 = vmatprep.subr.bf16.mxu0 0
    %936 = vmatpush1.bf16.xpose.msra.mxu0 0
    %937 = vmatprep.subr.bf16.mxu0 0
    %938 = vmatpush1.bf16.xpose.msra.mxu0 0
    %939 = vmatprep.subr.bf16.mxu0 0
    %940 = vmatpush1.bf16.xpose.msra.mxu0 0
    %941 = vmatprep.subr.bf16.mxu0 0
    %942 = vmatpush1.bf16.xpose.msra.mxu0 0
    %943 = vmatprep.subr.bf16.mxu0 0
    %944 = vmatpush1.bf16.xpose.msra.mxu0 0
    %945 = vmatprep.subr.bf16.mxu0 0
    %946 = vmatpush1.bf16.xpose.msra.mxu0 0
    %947 = vmatprep.subr.bf16.mxu0 0
    %948 = vmatpush1.bf16.xpose.msra.mxu0 0
    %949 = vmatprep.subr.bf16.mxu0 0
    %950 = vmatpush1.bf16.xpose.msra.mxu0 0
    %951 = vmatprep.subr.bf16.mxu0 0
    %952 = vmatpush1.bf16.xpose.msra.mxu0 0
    %953 = vmatprep.subr.bf16.mxu0 0
    %954 = vmatpush1.bf16.xpose.msra.mxu0 0
    %955 = vmatprep.subr.bf16.mxu0 0
    %956 = vmatpush1.bf16.xpose.msra.mxu0 0
    %957 = vmatprep.subr.bf16.mxu0 0
    %958 = vmatpush1.bf16.xpose.msra.mxu0 0
    %959 = vmatprep.subr.bf16.mxu0 0
    %960 = vmatpush1.bf16.xpose.msra.mxu0 0
    %961 = vmatprep.mubr.bf16.mxu0 0
    %962 = vmatmul.mubr.bf16.gmra.mrb[0].mxu0 %v924
    %v963 = vpop.f32.mrb[0].mxu0
    %v964 = vadd.f32 0.0, %v963
    %v965 = vpop.f32.mrb[0].mxu0
    %v966 = vpop.f32.mrb[0].mxu0
    %v967 = vadd.f32 0.0, %v966
    %v968 = vpop.f32.mrb[0].mxu0
    %969 = vdwg.mxu0
    %v970 = vmul.f32 %v964, 0.35355338
    %v971 = vmul.f32 %v967, 0.35355338
    %v972 = vadd.f32 %v970, %v459
    %v973 = vadd.f32 %v971, %v460
    %v974 = vsel %vm329, %v972, -inf
    %975 = vmax.xlane.f32.xlu0 %v974
    %v976 = vpop.xlane.xlu0 %975
    %v977 = vsel %vm329, %v973, -inf
    %978 = vmax.xlane.f32.xlu0 %v977
    %v979 = vpop.xlane.xlu0 %978
    %v980 = vsub.f32 %v972, %v976
    %v981 = vsub.f32 %v973, %v979
    %v982 = vmul.f32 %v980, 1.442695
    %v983 = vpow.pop %v982
    %v984 = vmul.f32 %v981, 1.442695
    %v985 = vpow.pop %v984
    %v986 = vsel %vm329, %v983, 0.0
    %987 = vadd.xlane.f32.xlu0 %v986
    %v988 = vpop.xlane.xlu0 %987
    %v989 = vsel %vm329, %v985, 0.0
    %990 = vadd.xlane.f32.xlu0 %v989
    %v991 = vpop.xlane.xlu0 %990
    %v992 = vrcp.pop %v988
    %v993 = vrcp.pop %v991
    %v994 = vmul.f32 %v983, %v992
    %v995 = vmul.f32 %v985, %v993
    %v996 = vpack.c.bf16 %v995, %v994
    %997 = vrot.lane.b32.xlu0 %v543, 40
    %v998 = vpop.permute.xlu0 %997
    %v1001 = vsel %vm329, %v996, 0
    %1003 = vmatprep.subr.bf16.mxu0 0
    %1004 = vmatpush1.bf16.msra.mxu0 %v998
    %1005 = vmatprep.subr.bf16.mxu0 0
    %1006 = vmatpush1.bf16.msra.mxu0 0
    %1007 = vmatprep.subr.bf16.mxu0 0
    %1008 = vmatpush1.bf16.msra.mxu0 0
    %1009 = vmatprep.subr.bf16.mxu0 0
    %1010 = vmatpush1.bf16.msra.mxu0 0
    %1011 = vmatprep.subr.bf16.mxu0 0
    %1012 = vmatpush1.bf16.msra.mxu0 0
    %1013 = vmatprep.subr.bf16.mxu0 0
    %1014 = vmatpush1.bf16.msra.mxu0 0
    %1015 = vmatprep.subr.bf16.mxu0 0
    %1016 = vmatpush1.bf16.msra.mxu0 0
    %1017 = vmatprep.subr.bf16.mxu0 0
    %1018 = vmatpush1.bf16.msra.mxu0 0
    %1019 = vmatprep.subr.bf16.mxu0 0
    %1020 = vmatpush1.bf16.msra.mxu0 0
    %1021 = vmatprep.subr.bf16.mxu0 0
    %1022 = vmatpush1.bf16.msra.mxu0 0
    %1023 = vmatprep.subr.bf16.mxu0 0
    %1024 = vmatpush1.bf16.msra.mxu0 0
    %1025 = vmatprep.subr.bf16.mxu0 0
    %1026 = vmatpush1.bf16.msra.mxu0 0
    %1027 = vmatprep.subr.bf16.mxu0 0
    %1028 = vmatpush1.bf16.msra.mxu0 0
    %1029 = vmatprep.subr.bf16.mxu0 0
    %1030 = vmatpush1.bf16.msra.mxu0 0
    %1031 = vmatprep.subr.bf16.mxu0 0
    %1032 = vmatpush1.bf16.msra.mxu0 0
    %1033 = vmatprep.subr.bf16.mxu0 0
    %1034 = vmatpush1.bf16.msra.mxu0 0
    %1035 = vmatprep.mubr.bf16.mxu0 0
    %1036 = vmatmul.mubr.bf16.gmra.mrb[0].mxu0 %v1001
    %v1037 = vpop.f32.mrb[0].mxu0
    %v1038 = vadd.f32 0.0, %v1037
    %v1039 = vpop.f32.mrb[0].mxu0
    %v1040 = vpop.f32.mrb[0].mxu0
    %v1041 = vadd.f32 0.0, %v1040
    %v1042 = vpop.f32.mrb[0].mxu0
    %1043 = vdwg.mxu0
    %1046 = vrot.lane.b32.xlu0 %v788, 8
    %v1047 = vpop.permute.xlu0 %1046
    %1048 = vrot.lane.b32.xlu0 %v791, 8
    %v1049 = vpop.permute.xlu0 %1048
    %1054 = vrot.lane.b32.xlu0 %v913, 16
    %v1055 = vpop.permute.xlu0 %1054
    %1056 = vrot.lane.b32.xlu0 %v916, 16
    %v1057 = vpop.permute.xlu0 %1056
    %1062 = vrot.lane.b32.xlu0 %v1038, 24
    %v1063 = vpop.permute.xlu0 %1062
    %1064 = vrot.lane.b32.xlu0 %v1041, 24
    %v1065 = vpop.permute.xlu0 %1064
    %v1068 = vsel %vm547, %v663, %v1047
    %v1069 = vsel %vm547, %v666, %v1049
    %v1070 = vsel %vm329, %v1068, %v1055
    %v1071 = vsel %vm329, %v1069, %v1057
    %vm1072 = vcmask 195584
    %v1073 = vsel %vm1072, %v1070, %v1063
    %v1074 = vsel %vm1072, %v1071, %v1065
    %v1075 = vpack.c.bf16 %v1074, %v1073
    %v1076 = vld [vmem:[%s3 + $0x36] sm:$0x1]
    %v1077 = vlaneseq
    %v1078 = vshrl.u32 %v1077, 7
    %v1079 = vsub.s32 0, %v1078
    %v1080 = vrot.slane %v1076, %v1079
    %v1085 = vunpack.c.l.b16 %v465
    %v1086 = vunpack.c.l.b16 %v466
    %v1087 = vunpack.c.l.b16 %v467
    %v1088 = vunpack.c.l.b16 %v468
    %v1089 = vpack.c.b16 %v1086, %v1085
    %v1090 = vpack.c.b16 %v1088, %v1087
    %v1094 = vsel %vm126, %v1075, 0
    %1096 = vmatprep.subr.bf16.mxu0 0
    %1097 = vmatpush1.bf16.msra.mxu0 %v1089
    %1098 = vmatprep.subr.bf16.mxu0 0
    %1099 = vmatpush1.bf16.msra.mxu0 %v1090
    %1100 = vmatprep.subr.bf16.mxu0 0
    %1101 = vmatpush1.bf16.msra.mxu0 0
    %1102 = vmatprep.subr.bf16.mxu0 0
    %1103 = vmatpush1.bf16.msra.mxu0 0
    %1104 = vmatprep.subr.bf16.mxu0 0
    %1105 = vmatpush1.bf16.msra.mxu0 0
    %1106 = vmatprep.subr.bf16.mxu0 0
    %1107 = vmatpush1.bf16.msra.mxu0 0
    %1108 = vmatprep.subr.bf16.mxu0 0
    %1109 = vmatpush1.bf16.msra.mxu0 0
    %1110 = vmatprep.subr.bf16.mxu0 0
    %1111 = vmatpush1.bf16.msra.mxu0 0
    %1112 = vmatprep.subr.bf16.mxu0 0
    %1113 = vmatpush1.bf16.msra.mxu0 0
    %1114 = vmatprep.subr.bf16.mxu0 0
    %1115 = vmatpush1.bf16.msra.mxu0 0
    %1116 = vmatprep.subr.bf16.mxu0 0
    %1117 = vmatpush1.bf16.msra.mxu0 0
    %1118 = vmatprep.subr.bf16.mxu0 0
    %1119 = vmatpush1.bf16.msra.mxu0 0
    %1120 = vmatprep.subr.bf16.mxu0 0
    %1121 = vmatpush1.bf16.msra.mxu0 0
    %1122 = vmatprep.subr.bf16.mxu0 0
    %1123 = vmatpush1.bf16.msra.mxu0 0
    %1124 = vmatprep.subr.bf16.mxu0 0
    %1125 = vmatpush1.bf16.msra.mxu0 0
    %1126 = vmatprep.subr.bf16.mxu0 0
    %1127 = vmatpush1.bf16.msra.mxu0 0
    %1128 = vmatprep.mubr.bf16.mxu0 0
    %1129 = vmatmul.mubr.bf16.gmra.mrb[0].mxu0 %v1094
    %v1130 = vpop.f32.mrb[0].mxu0
    %v1131 = vadd.f32 %v1080, %v1130
    %v1132 = vpop.f32.mrb[0].mxu0
    %v1133 = vpop.f32.mrb[0].mxu0
    %v1134 = vadd.f32 %v1080, %v1133
    %v1135 = vpop.f32.mrb[0].mxu0
    %1136 = vdwg.mxu0
    %v1137 = vadd.f32 %v457, %v1131
    %v1138 = vadd.f32 %v458, %v1134
    %v1139 = vld [vmem:[%s3 + $0x4] sm:$0x1]
    %v1140 = vld [vmem:[%s3 + $0x5] sm:$0x1]
    %v1141 = vsel %vm126, %v1137, 0.0
    %1142 = vadd.xlane.f32.xlu0 %v1141
    %v1143 = vpop.xlane.xlu0 %1142
    %v1144 = vsel %vm126, %v1138, 0.0
    %1145 = vadd.xlane.f32.xlu0 %v1144
    %v1146 = vpop.xlane.xlu0 %1145
    %v1147 = vmul.f32 %v1143, %v382
    %v1148 = vmul.f32 %v1146, %v382
    %v1149 = vsub.f32 %v1137, %v1147
    %v1150 = vsub.f32 %v1138, %v1148
    %v1151 = vmul.f32 %v1149, %v1149
    %v1152 = vmul.f32 %v1150, %v1150
    %v1153 = vsel %vm126, %v1151, 0.0
    %1154 = vadd.xlane.f32.xlu0 %v1153
    %v1155 = vpop.xlane.xlu0 %1154
    %v1156 = vsel %vm126, %v1152, 0.0
    %1157 = vadd.xlane.f32.xlu0 %v1156
    %v1158 = vpop.xlane.xlu0 %1157
    %v1159 = vmul.f32 %v1155, %v382
    %v1160 = vmul.f32 %v1158, %v382
    %v1161 = vadd.f32 %v1159, 1e-05
    %v1162 = vadd.f32 %v1160, 1e-05
    %v1163 = vrsqrt.pop %v1161
    %v1164 = vrsqrt.pop %v1162
    %v1165 = vmul.f32 %v1149, %v1163
    %v1166 = vmul.f32 %v1150, %v1164
    %v1167 = vlaneseq
    %v1168 = vshrl.u32 %v1167, 7
    %v1169 = vsub.s32 0, %v1168
    %v1170 = vrot.slane %v1139, %v1169
    %v1171 = vmul.f32 %v1165, %v1170
    %v1172 = vmul.f32 %v1166, %v1170
    %v1173 = vlaneseq
    %v1174 = vshrl.u32 %v1173, 7
    %v1175 = vsub.s32 0, %v1174
    %v1176 = vrot.slane %v1140, %v1175
    %v1177 = vadd.f32 %v1171, %v1176
    %v1178 = vadd.f32 %v1172, %v1176
    %v1179 = vpack.c.bf16 %v1178, %v1177
    %v1180 = vld [vmem:[%s3 + $0x38] sm:$0x1]
    %v1181 = vlaneseq
    %v1182 = vshrl.u32 %v1181, 7
    %v1183 = vsub.s32 0, %v1182
    %v1184 = vrot.slane %v1180, %v1183
    %v1189 = vunpack.c.l.b16 %v469
    %v1190 = vunpack.c.l.b16 %v470
    %v1191 = vunpack.c.l.b16 %v471
    %v1192 = vunpack.c.l.b16 %v472
    %v1193 = vpack.c.b16 %v1190, %v1189
    %v1194 = vpack.c.b16 %v1192, %v1191
    %v1198 = vsel %vm126, %v1179, 0
    %1200 = vmatprep.subr.bf16.mxu0 0
    %1201 = vmatpush1.bf16.msra.mxu0 %v1193
    %1202 = vmatprep.subr.bf16.mxu0 0
    %1203 = vmatpush1.bf16.msra.mxu0 %v1194
    %1204 = vmatprep.subr.bf16.mxu0 0
    %1205 = vmatpush1.bf16.msra.mxu0 0
    %1206 = vmatprep.subr.bf16.mxu0 0
    %1207 = vmatpush1.bf16.msra.mxu0 0
    %1208 = vmatprep.subr.bf16.mxu0 0
    %1209 = vmatpush1.bf16.msra.mxu0 0
    %1210 = vmatprep.subr.bf16.mxu0 0
    %1211 = vmatpush1.bf16.msra.mxu0 0
    %1212 = vmatprep.subr.bf16.mxu0 0
    %1213 = vmatpush1.bf16.msra.mxu0 0
    %1214 = vmatprep.subr.bf16.mxu0 0
    %1215 = vmatpush1.bf16.msra.mxu0 0
    %1216 = vmatprep.subr.bf16.mxu0 0
    %1217 = vmatpush1.bf16.msra.mxu0 0
    %1218 = vmatprep.subr.bf16.mxu0 0
    %1219 = vmatpush1.bf16.msra.mxu0 0
    %1220 = vmatprep.subr.bf16.mxu0 0
    %1221 = vmatpush1.bf16.msra.mxu0 0
    %1222 = vmatprep.subr.bf16.mxu0 0
    %1223 = vmatpush1.bf16.msra.mxu0 0
    %1224 = vmatprep.subr.bf16.mxu0 0
    %1225 = vmatpush1.bf16.msra.mxu0 0
    %1226 = vmatprep.subr.bf16.mxu0 0
    %1227 = vmatpush1.bf16.msra.mxu0 0
    %1228 = vmatprep.subr.bf16.mxu0 0
    %1229 = vmatpush1.bf16.msra.mxu0 0
    %1230 = vmatprep.subr.bf16.mxu0 0
    %1231 = vmatpush1.bf16.msra.mxu0 0
    %1232 = vmatprep.mubr.bf16.mxu0 0
    %1233 = vmatmul.mubr.bf16.gmra.mrb[0].mxu0 %v1198
    %v1234 = vpop.f32.mrb[0].mxu0
    %v1235 = vadd.f32 %v1184, %v1234
    %v1236 = vpop.f32.mrb[0].mxu0
    %v1237 = vpop.f32.mrb[0].mxu0
    %v1238 = vadd.f32 %v1184, %v1237
    %v1239 = vpop.f32.mrb[0].mxu0
    %1240 = vdwg.mxu0
    %v1241 = vmax.f32 %v1235, 0.0
    %v1242 = vmax.f32 %v1238, 0.0
    %v1243 = vpack.c.bf16 %v1242, %v1241
    %v1244 = vld [vmem:[%s3 + $0x3a] sm:$0x1]
    %v1245 = vlaneseq
    %v1246 = vshrl.u32 %v1245, 7
    %v1247 = vsub.s32 0, %v1246
    %v1248 = vrot.slane %v1244, %v1247
    %v1257 = vunpack.c.l.b16 %v473
    %v1258 = vunpack.c.l.b16 %v474
    %v1259 = vunpack.c.l.b16 %v475
    %v1260 = vunpack.c.l.b16 %v476
    %v1261 = vunpack.c.l.b16 %v477
    %v1262 = vunpack.c.l.b16 %v478
    %v1263 = vunpack.c.l.b16 %v479
    %v1264 = vunpack.c.l.b16 %v480
    %v1265 = vpack.c.b16 %v1258, %v1257
    %v1266 = vpack.c.b16 %v1260, %v1259
    %v1267 = vpack.c.b16 %v1262, %v1261
    %v1268 = vpack.c.b16 %v1264, %v1263
    %vm1273 = vcmask 523264
    %v1275 = vsel %vm1273, %v1243, 0
    %1277 = vmatprep.subr.bf16.mxu0 0
    %1278 = vmatpush1.bf16.msra.mxu0 %v1265
    %1279 = vmatprep.subr.bf16.mxu0 0
    %1280 = vmatpush1.bf16.msra.mxu0 %v1266
    %1281 = vmatprep.subr.bf16.mxu0 0
    %1282 = vmatpush1.bf16.msra.mxu0 %v1267
    %1283 = vmatprep.subr.bf16.mxu0 0
    %1284 = vmatpush1.bf16.msra.mxu0 %v1268
    %1285 = vmatprep.subr.bf16.mxu0 0
    %1286 = vmatpush1.bf16.msra.mxu0 0
    %1287 = vmatprep.subr.bf16.mxu0 0
    %1288 = vmatpush1.bf16.msra.mxu0 0
    %1289 = vmatprep.subr.bf16.mxu0 0
    %1290 = vmatpush1.bf16.msra.mxu0 0
    %1291 = vmatprep.subr.bf16.mxu0 0
    %1292 = vmatpush1.bf16.msra.mxu0 0
    %1293 = vmatprep.subr.bf16.mxu0 0
    %1294 = vmatpush1.bf16.msra.mxu0 0
    %1295 = vmatprep.subr.bf16.mxu0 0
    %1296 = vmatpush1.bf16.msra.mxu0 0
    %1297 = vmatprep.subr.bf16.mxu0 0
    %1298 = vmatpush1.bf16.msra.mxu0 0
    %1299 = vmatprep.subr.bf16.mxu0 0
    %1300 = vmatpush1.bf16.msra.mxu0 0
    %1301 = vmatprep.subr.bf16.mxu0 0
    %1302 = vmatpush1.bf16.msra.mxu0 0
    %1303 = vmatprep.subr.bf16.mxu0 0
    %1304 = vmatpush1.bf16.msra.mxu0 0
    %1305 = vmatprep.subr.bf16.mxu0 0
    %1306 = vmatpush1.bf16.msra.mxu0 0
    %1307 = vmatprep.subr.bf16.mxu0 0
    %1308 = vmatpush1.bf16.msra.mxu0 0
    %1309 = vmatprep.mubr.bf16.mxu0 0
    %1310 = vmatmul.mubr.bf16.gmra.mrb[0].mxu0 %v1275
    %v1311 = vpop.f32.mrb[0].mxu0
    %v1312 = vadd.f32 %v1248, %v1311
    %v1313 = vpop.f32.mrb[0].mxu0
    %v1314 = vpop.f32.mrb[0].mxu0
    %v1315 = vadd.f32 %v1248, %v1314
    %v1316 = vpop.f32.mrb[0].mxu0
    %1317 = vdwg.mxu0
    %v1318 = vadd.f32 %v1177, %v1312
    %v1319 = vadd.f32 %v1178, %v1315
    %v1320 = vld [vmem:[%s3 + $0x6] sm:$0x1]
    %v1321 = vld [vmem:[%s3 + $0x7] sm:$0x1]
    %v1322 = vsel %vm126, %v1318, 0.0
    %1323 = vadd.xlane.f32.xlu0 %v1322
    %v1324 = vpop.xlane.xlu0 %1323
    %v1325 = vsel %vm126, %v1319, 0.0
    %1326 = vadd.xlane.f32.xlu0 %v1325
    %v1327 = vpop.xlane.xlu0 %1326
    %v1328 = vmul.f32 %v1324, %v382
    %v1329 = vmul.f32 %v1327, %v382
    %v1330 = vsub.f32 %v1318, %v1328
    %v1331 = vsub.f32 %v1319, %v1329
    %v1332 = vmul.f32 %v1330, %v1330
    %v1333 = vmul.f32 %v1331, %v1331
    %v1334 = vsel %vm126, %v1332, 0.0
    %1335 = vadd.xlane.f32.xlu0 %v1334
    %v1336 = vpop.xlane.xlu0 %1335
    %v1337 = vsel %vm126, %v1333, 0.0
    %1338 = vadd.xlane.f32.xlu0 %v1337
    %v1339 = vpop.xlane.xlu0 %1338
    %v1340 = vmul.f32 %v1336, %v382
    %v1341 = vmul.f32 %v1339, %v382
    %v1342 = vadd.f32 %v1340, 1e-05
    %v1343 = vadd.f32 %v1341, 1e-05
    %v1344 = vrsqrt.pop %v1342
    %v1345 = vrsqrt.pop %v1343
    %v1346 = vmul.f32 %v1330, %v1344
    %v1347 = vmul.f32 %v1331, %v1345
    %v1348 = vlaneseq
    %v1349 = vshrl.u32 %v1348, 7
    %v1350 = vsub.s32 0, %v1349
    %v1351 = vrot.slane %v1320, %v1350
    %v1352 = vmul.f32 %v1346, %v1351
    %v1353 = vmul.f32 %v1347, %v1351
    %v1354 = vlaneseq
    %v1355 = vshrl.u32 %v1354, 7
    %v1356 = vsub.s32 0, %v1355
    %v1357 = vrot.slane %v1321, %v1356
    %v1358 = vadd.f32 %v1352, %v1357
    %v1359 = vadd.f32 %v1353, %v1357
    %s1360 = scalar_lea.vmem [#allocation2], 80
    %v1361 = vld [vmem:[%s1360] sm:$0xf]
    %v1362 = vld [vmem:[%s1360 + $0x4] sm:$0xf]
    %v1363 = vld [vmem:[%s1360 + $0x8] sm:$0xf]
    %v1364 = vld [vmem:[%s1360 + $0xc] sm:$0xf]
    %v1365 = vld [vmem:[%s1360 + $0x10] sm:$0xf]
    %v1366 = vld [vmem:[%s1360 + $0x14] sm:$0xf]
    %v1367 = vld [vmem:[%s1360 + $0x18] sm:$0xf]
    %v1368 = vld [vmem:[%s1360 + $0x1c] sm:$0xf]
    %v1369 = vld [vmem:[%s1360 + $0x20] sm:$0xf]
    %v1370 = vld [vmem:[%s1360 + $0x24] sm:$0xf]
    %v1371 = vld [vmem:[%s1360 + $0x28] sm:$0xf]
    %v1372 = vld [vmem:[%s1360 + $0x2c] sm:$0xf]
    %v1373 = vld [vmem:[%s1360 + $0x30] sm:$0xf]
    %v1374 = vld [vmem:[%s1360 + $0x34] sm:$0xf]
    %v1375 = vld [vmem:[%s1360 + $0x38] sm:$0xf]
    %v1376 = vld [vmem:[%s1360 + $0x3c] sm:$0xf]
    %v1377 = vld [vmem:[%s1360 + $0x40] sm:$0xf]
    %v1378 = vld [vmem:[%s1360 + $0x44] sm:$0xf]
    %v1379 = vld [vmem:[%s1360 + $0x48] sm:$0xf]
    %v1380 = vld [vmem:[%s1360 + $0x4c] sm:$0xf]
    %v1381 = vpack.c.bf16 %v1359, %v1358
    %v1382 = vld [vmem:[%s3 + $0x35] sm:$0x1]
    %v1383 = vlaneseq
    %v1384 = vshrl.u32 %v1383, 7
    %v1385 = vsub.s32 0, %v1384
    %v1386 = vrot.slane %v1382, %v1385
    %v1391 = vunpack.c.l.b16 %v1361
    %v1392 = vunpack.c.l.b16 %v1362
    %v1393 = vunpack.c.l.b16 %v1363
    %v1394 = vunpack.c.l.b16 %v1364
    %v1395 = vpack.c.b16 %v1392, %v1391
    %v1396 = vpack.c.b16 %v1394, %v1393
    %v1400 = vsel %vm126, %v1381, 0
    %1402 = vmatprep.subr.bf16.mxu0 0
    %1403 = vmatpush1.bf16.msra.mxu0 %v1395
    %1404 = vmatprep.subr.bf16.mxu0 0
    %1405 = vmatpush1.bf16.msra.mxu0 %v1396
    %1406 = vmatprep.subr.bf16.mxu0 0
    %1407 = vmatpush1.bf16.msra.mxu0 0
    %1408 = vmatprep.subr.bf16.mxu0 0
    %1409 = vmatpush1.bf16.msra.mxu0 0
    %1410 = vmatprep.subr.bf16.mxu0 0
    %1411 = vmatpush1.bf16.msra.mxu0 0
    %1412 = vmatprep.subr.bf16.mxu0 0
    %1413 = vmatpush1.bf16.msra.mxu0 0
    %1414 = vmatprep.subr.bf16.mxu0 0
    %1415 = vmatpush1.bf16.msra.mxu0 0
    %1416 = vmatprep.subr.bf16.mxu0 0
    %1417 = vmatpush1.bf16.msra.mxu0 0
    %1418 = vmatprep.subr.bf16.mxu0 0
    %1419 = vmatpush1.bf16.msra.mxu0 0
    %1420 = vmatprep.subr.bf16.mxu0 0
    %1421 = vmatpush1.bf16.msra.mxu0 0
    %1422 = vmatprep.subr.bf16.mxu0 0
    %1423 = vmatpush1.bf16.msra.mxu0 0
    %1424 = vmatprep.subr.bf16.mxu0 0
    %1425 = vmatpush1.bf16.msra.mxu0 0
    %1426 = vmatprep.subr.bf16.mxu0 0
    %1427 = vmatpush1.bf16.msra.mxu0 0
    %1428 = vmatprep.subr.bf16.mxu0 0
    %1429 = vmatpush1.bf16.msra.mxu0 0
    %1430 = vmatprep.subr.bf16.mxu0 0
    %1431 = vmatpush1.bf16.msra.mxu0 0
    %1432 = vmatprep.subr.bf16.mxu0 0
    %1433 = vmatpush1.bf16.msra.mxu0 0
    %1434 = vmatprep.mubr.bf16.mxu0 0
    %1435 = vmatmul.mubr.bf16.gmra.mrb[0].mxu0 %v1400
    %v1436 = vpop.f32.mrb[0].mxu0
    %v1437 = vadd.f32 %v1386, %v1436
    %v1438 = vpop.f32.mrb[0].mxu0
    %v1439 = vpop.f32.mrb[0].mxu0
    %v1440 = vadd.f32 %v1386, %v1439
    %v1441 = vpop.f32.mrb[0].mxu0
    %1442 = vdwg.mxu0
    %v1443 = vpack.c.bf16 %v1440, %v1437
    %1445 = vrot.lane.b32.xlu0 %v1443, 96
    %v1446 = vpop.permute.xlu0 %1445
    %v1448 = vsel %vm547, %v1443, 0
    %v1451 = vsel %vm547, %v1446, 0
    %1453 = vmatprep.subr.bf16.mxu0 0
    %1454 = vmatpush1.bf16.xpose.msra.mxu0 %v1451
    %1455 = vmatprep.subr.bf16.mxu0 0
    %1456 = vmatpush1.bf16.xpose.msra.mxu0 0
    %1457 = vmatprep.subr.bf16.mxu0 0
    %1458 = vmatpush1.bf16.xpose.msra.mxu0 0
    %1459 = vmatprep.subr.bf16.mxu0 0
    %1460 = vmatpush1.bf16.xpose.msra.mxu0 0
    %1461 = vmatprep.subr.bf16.mxu0 0
    %1462 = vmatpush1.bf16.xpose.msra.mxu0 0
    %1463 = vmatprep.subr.bf16.mxu0 0
    %1464 = vmatpush1.bf16.xpose.msra.mxu0 0
    %1465 = vmatprep.subr.bf16.mxu0 0
    %1466 = vmatpush1.bf16.xpose.msra.mxu0 0
    %1467 = vmatprep.subr.bf16.mxu0 0
    %1468 = vmatpush1.bf16.xpose.msra.mxu0 0
    %1469 = vmatprep.subr.bf16.mxu0 0
    %1470 = vmatpush1.bf16.xpose.msra.mxu0 0
    %1471 = vmatprep.subr.bf16.mxu0 0
    %1472 = vmatpush1.bf16.xpose.msra.mxu0 0
    %1473 = vmatprep.subr.bf16.mxu0 0
    %1474 = vmatpush1.bf16.xpose.msra.mxu0 0
    %1475 = vmatprep.subr.bf16.mxu0 0
    %1476 = vmatpush1.bf16.xpose.msra.mxu0 0
    %1477 = vmatprep.subr.bf16.mxu0 0
    %1478 = vmatpush1.bf16.xpose.msra.mxu0 0
    %1479 = vmatprep.subr.bf16.mxu0 0
    %1480 = vmatpush1.bf16.xpose.msra.mxu0 0
    %1481 = vmatprep.subr.bf16.mxu0 0
    %1482 = vmatpush1.bf16.xpose.msra.mxu0 0
    %1483 = vmatprep.subr.bf16.mxu0 0
    %1484 = vmatpush1.bf16.xpose.msra.mxu0 0
    %1485 = vmatprep.mubr.bf16.mxu0 0
    %1486 = vmatmul.mubr.bf16.gmra.mrb[0].mxu0 %v1448
    %v1487 = vpop.f32.mrb[0].mxu0
    %v1488 = vadd.f32 0.0, %v1487
    %v1489 = vpop.f32.mrb[0].mxu0
    %v1490 = vpop.f32.mrb[0].mxu0
    %v1491 = vadd.f32 0.0, %v1490
    %v1492 = vpop.f32.mrb[0].mxu0
    %1493 = vdwg.mxu0
    %v1494 = vmul.f32 %v1488, 0.35355338
    %v1495 = vmul.f32 %v1491, 0.35355338
    %v1496 = vadd.f32 %v1494, %v459
    %v1497 = vadd.f32 %v1495, %v460
    %v1498 = vsel %vm329, %v1496, -inf
    %1499 = vmax.xlane.f32.xlu0 %v1498
    %v1500 = vpop.xlane.xlu0 %1499
    %v1501 = vsel %vm329, %v1497, -inf
    %1502 = vmax.xlane.f32.xlu0 %v1501
    %v1503 = vpop.xlane.xlu0 %1502
    %v1504 = vsub.f32 %v1496, %v1500
    %v1505 = vsub.f32 %v1497, %v1503
    %v1506 = vmul.f32 %v1504, 1.442695
    %v1507 = vpow.pop %v1506
    %v1508 = vmul.f32 %v1505, 1.442695
    %v1509 = vpow.pop %v1508
    %v1510 = vsel %vm329, %v1507, 0.0
    %1511 = vadd.xlane.f32.xlu0 %v1510
    %v1512 = vpop.xlane.xlu0 %1511
    %v1513 = vsel %vm329, %v1509, 0.0
    %1514 = vadd.xlane.f32.xlu0 %v1513
    %v1515 = vpop.xlane.xlu0 %1514
    %v1516 = vrcp.pop %v1512
    %v1517 = vrcp.pop %v1515
    %v1518 = vmul.f32 %v1507, %v1516
    %v1519 = vmul.f32 %v1509, %v1517
    %v1520 = vpack.c.bf16 %v1519, %v1518
    %1521 = vrot.lane.b32.xlu0 %v1443, 64
    %v1522 = vpop.permute.xlu0 %1521
    %v1525 = vsel %vm329, %v1520, 0
    %1527 = vmatprep.subr.bf16.mxu0 0
    %1528 = vmatpush1.bf16.msra.mxu0 %v1522
    %1529 = vmatprep.subr.bf16.mxu0 0
    %1530 = vmatpush1.bf16.msra.mxu0 0
    %1531 = vmatprep.subr.bf16.mxu0 0
    %1532 = vmatpush1.bf16.msra.mxu0 0
    %1533 = vmatprep.subr.bf16.mxu0 0
    %1534 = vmatpush1.bf16.msra.mxu0 0
    %1535 = vmatprep.subr.bf16.mxu0 0
    %1536 = vmatpush1.bf16.msra.mxu0 0
    %1537 = vmatprep.subr.bf16.mxu0 0
    %1538 = vmatpush1.bf16.msra.mxu0 0
    %1539 = vmatprep.subr.bf16.mxu0 0
    %1540 = vmatpush1.bf16.msra.mxu0 0
    %1541 = vmatprep.subr.bf16.mxu0 0
    %1542 = vmatpush1.bf16.msra.mxu0 0
    %1543 = vmatprep.subr.bf16.mxu0 0
    %1544 = vmatpush1.bf16.msra.mxu0 0
    %1545 = vmatprep.subr.bf16.mxu0 0
    %1546 = vmatpush1.bf16.msra.mxu0 0
    %1547 = vmatprep.subr.bf16.mxu0 0
    %1548 = vmatpush1.bf16.msra.mxu0 0
    %1549 = vmatprep.subr.bf16.mxu0 0
    %1550 = vmatpush1.bf16.msra.mxu0 0
    %1551 = vmatprep.subr.bf16.mxu0 0
    %1552 = vmatpush1.bf16.msra.mxu0 0
    %1553 = vmatprep.subr.bf16.mxu0 0
    %1554 = vmatpush1.bf16.msra.mxu0 0
    %1555 = vmatprep.subr.bf16.mxu0 0
    %1556 = vmatpush1.bf16.msra.mxu0 0
    %1557 = vmatprep.subr.bf16.mxu0 0
    %1558 = vmatpush1.bf16.msra.mxu0 0
    %1559 = vmatprep.mubr.bf16.mxu0 0
    %1560 = vmatmul.mubr.bf16.gmra.mrb[0].mxu0 %v1525
    %v1561 = vpop.f32.mrb[0].mxu0
    %v1562 = vadd.f32 0.0, %v1561
    %v1563 = vpop.f32.mrb[0].mxu0
    %v1564 = vpop.f32.mrb[0].mxu0
    %v1565 = vadd.f32 0.0, %v1564
    %v1566 = vpop.f32.mrb[0].mxu0
    %1567 = vdwg.mxu0
    %1568 = vrot.lane.b32.xlu0 %v1443, 120
    %v1569 = vpop.permute.xlu0 %1568
    %1570 = vrot.lane.b32.xlu0 %v1443, 88
    %v1571 = vpop.permute.xlu0 %1570
    %v1573 = vsel %vm547, %v1569, 0
    %v1576 = vsel %vm547, %v1571, 0
    %1578 = vmatprep.subr.bf16.mxu0 0
    %1579 = vmatpush1.bf16.xpose.msra.mxu0 %v1576
    %1580 = vmatprep.subr.bf16.mxu0 0
    %1581 = vmatpush1.bf16.xpose.msra.mxu0 0
    %1582 = vmatprep.subr.bf16.mxu0 0
    %1583 = vmatpush1.bf16.xpose.msra.mxu0 0
    %1584 = vmatprep.subr.bf16.mxu0 0
    %1585 = vmatpush1.bf16.xpose.msra.mxu0 0
    %1586 = vmatprep.subr.bf16.mxu0 0
    %1587 = vmatpush1.bf16.xpose.msra.mxu0 0
    %1588 = vmatprep.subr.bf16.mxu0 0
    %1589 = vmatpush1.bf16.xpose.msra.mxu0 0
    %1590 = vmatprep.subr.bf16.mxu0 0
    %1591 = vmatpush1.bf16.xpose.msra.mxu0 0
    %1592 = vmatprep.subr.bf16.mxu0 0
    %1593 = vmatpush1.bf16.xpose.msra.mxu0 0
    %1594 = vmatprep.subr.bf16.mxu0 0
    %1595 = vmatpush1.bf16.xpose.msra.mxu0 0
    %1596 = vmatprep.subr.bf16.mxu0 0
    %1597 = vmatpush1.bf16.xpose.msra.mxu0 0
    %1598 = vmatprep.subr.bf16.mxu0 0
    %1599 = vmatpush1.bf16.xpose.msra.mxu0 0
    %1600 = vmatprep.subr.bf16.mxu0 0
    %1601 = vmatpush1.bf16.xpose.msra.mxu0 0
    %1602 = vmatprep.subr.bf16.mxu0 0
    %1603 = vmatpush1.bf16.xpose.msra.mxu0 0
    %1604 = vmatprep.subr.bf16.mxu0 0
    %1605 = vmatpush1.bf16.xpose.msra.mxu0 0
    %1606 = vmatprep.subr.bf16.mxu0 0
    %1607 = vmatpush1.bf16.xpose.msra.mxu0 0
    %1608 = vmatprep.subr.bf16.mxu0 0
    %1609 = vmatpush1.bf16.xpose.msra.mxu0 0
    %1610 = vmatprep.mubr.bf16.mxu0 0
    %1611 = vmatmul.mubr.bf16.gmra.mrb[0].mxu0 %v1573
    %v1612 = vpop.f32.mrb[0].mxu0
    %v1613 = vadd.f32 0.0, %v1612
    %v1614 = vpop.f32.mrb[0].mxu0
    %v1615 = vpop.f32.mrb[0].mxu0
    %v1616 = vadd.f32 0.0, %v1615
    %v1617 = vpop.f32.mrb[0].mxu0
    %1618 = vdwg.mxu0
    %v1619 = vmul.f32 %v1613, 0.35355338
    %v1620 = vmul.f32 %v1616, 0.35355338
    %v1621 = vadd.f32 %v1619, %v459
    %v1622 = vadd.f32 %v1620, %v460
    %v1623 = vsel %vm329, %v1621, -inf
    %1624 = vmax.xlane.f32.xlu0 %v1623
    %v1625 = vpop.xlane.xlu0 %1624
    %v1626 = vsel %vm329, %v1622, -inf
    %1627 = vmax.xlane.f32.xlu0 %v1626
    %v1628 = vpop.xlane.xlu0 %1627
    %v1629 = vsub.f32 %v1621, %v1625
    %v1630 = vsub.f32 %v1622, %v1628
    %v1631 = vmul.f32 %v1629, 1.442695
    %v1632 = vpow.pop %v1631
    %v1633 = vmul.f32 %v1630, 1.442695
    %v1634 = vpow.pop %v1633
    %v1635 = vsel %vm329, %v1632, 0.0
    %1636 = vadd.xlane.f32.xlu0 %v1635
    %v1637 = vpop.xlane.xlu0 %1636
    %v1638 = vsel %vm329, %v1634, 0.0
    %1639 = vadd.xlane.f32.xlu0 %v1638
    %v1640 = vpop.xlane.xlu0 %1639
    %v1641 = vrcp.pop %v1637
    %v1642 = vrcp.pop %v1640
    %v1643 = vmul.f32 %v1632, %v1641
    %v1644 = vmul.f32 %v1634, %v1642
    %v1645 = vpack.c.bf16 %v1644, %v1643
    %1646 = vrot.lane.b32.xlu0 %v1443, 56
    %v1647 = vpop.permute.xlu0 %1646
    %v1650 = vsel %vm329, %v1645, 0
    %1652 = vmatprep.subr.bf16.mxu0 0
    %1653 = vmatpush1.bf16.msra.mxu0 %v1647
    %1654 = vmatprep.subr.bf16.mxu0 0
    %1655 = vmatpush1.bf16.msra.mxu0 0
    %1656 = vmatprep.subr.bf16.mxu0 0
    %1657 = vmatpush1.bf16.msra.mxu0 0
    %1658 = vmatprep.subr.bf16.mxu0 0
    %1659 = vmatpush1.bf16.msra.mxu0 0
    %1660 = vmatprep.subr.bf16.mxu0 0
    %1661 = vmatpush1.bf16.msra.mxu0 0
    %1662 = vmatprep.subr.bf16.mxu0 0
    %1663 = vmatpush1.bf16.msra.mxu0 0
    %1664 = vmatprep.subr.bf16.mxu0 0
    %1665 = vmatpush1.bf16.msra.mxu0 0
    %1666 = vmatprep.subr.bf16.mxu0 0
    %1667 = vmatpush1.bf16.msra.mxu0 0
    %1668 = vmatprep.subr.bf16.mxu0 0
    %1669 = vmatpush1.bf16.msra.mxu0 0
    %1670 = vmatprep.subr.bf16.mxu0 0
    %1671 = vmatpush1.bf16.msra.mxu0 0
    %1672 = vmatprep.subr.bf16.mxu0 0
    %1673 = vmatpush1.bf16.msra.mxu0 0
    %1674 = vmatprep.subr.bf16.mxu0 0
    %1675 = vmatpush1.bf16.msra.mxu0 0
    %1676 = vmatprep.subr.bf16.mxu0 0
    %1677 = vmatpush1.bf16.msra.mxu0 0
    %1678 = vmatprep.subr.bf16.mxu0 0
    %1679 = vmatpush1.bf16.msra.mxu0 0
    %1680 = vmatprep.subr.bf16.mxu0 0
    %1681 = vmatpush1.bf16.msra.mxu0 0
    %1682 = vmatprep.subr.bf16.mxu0 0
    %1683 = vmatpush1.bf16.msra.mxu0 0
    %1684 = vmatprep.mubr.bf16.mxu0 0
    %1685 = vmatmul.mubr.bf16.gmra.mrb[0].mxu0 %v1650
    %v1686 = vpop.f32.mrb[0].mxu0
    %v1687 = vadd.f32 0.0, %v1686
    %v1688 = vpop.f32.mrb[0].mxu0
    %v1689 = vpop.f32.mrb[0].mxu0
    %v1690 = vadd.f32 0.0, %v1689
    %v1691 = vpop.f32.mrb[0].mxu0
    %1692 = vdwg.mxu0
    %1693 = vrot.lane.b32.xlu0 %v1443, 112
    %v1694 = vpop.permute.xlu0 %1693
    %1695 = vrot.lane.b32.xlu0 %v1443, 80
    %v1696 = vpop.permute.xlu0 %1695
    %v1698 = vsel %vm547, %v1694, 0
    %v1701 = vsel %vm547, %v1696, 0
    %1703 = vmatprep.subr.bf16.mxu0 0
    %1704 = vmatpush1.bf16.xpose.msra.mxu0 %v1701
    %1705 = vmatprep.subr.bf16.mxu0 0
    %1706 = vmatpush1.bf16.xpose.msra.mxu0 0
    %1707 = vmatprep.subr.bf16.mxu0 0
    %1708 = vmatpush1.bf16.xpose.msra.mxu0 0
    %1709 = vmatprep.subr.bf16.mxu0 0
    %1710 = vmatpush1.bf16.xpose.msra.mxu0 0
    %1711 = vmatprep.subr.bf16.mxu0 0
    %1712 = vmatpush1.bf16.xpose.msra.mxu0 0
    %1713 = vmatprep.subr.bf16.mxu0 0
    %1714 = vmatpush1.bf16.xpose.msra.mxu0 0
    %1715 = vmatprep.subr.bf16.mxu0 0
    %1716 = vmatpush1.bf16.xpose.msra.mxu0 0
    %1717 = vmatprep.subr.bf16.mxu0 0
    %1718 = vmatpush1.bf16.xpose.msra.mxu0 0
    %1719 = vmatprep.subr.bf16.mxu0 0
    %1720 = vmatpush1.bf16.xpose.msra.mxu0 0
    %1721 = vmatprep.subr.bf16.mxu0 0
    %1722 = vmatpush1.bf16.xpose.msra.mxu0 0
    %1723 = vmatprep.subr.bf16.mxu0 0
    %1724 = vmatpush1.bf16.xpose.msra.mxu0 0
    %1725 = vmatprep.subr.bf16.mxu0 0
    %1726 = vmatpush1.bf16.xpose.msra.mxu0 0
    %1727 = vmatprep.subr.bf16.mxu0 0
    %1728 = vmatpush1.bf16.xpose.msra.mxu0 0
    %1729 = vmatprep.subr.bf16.mxu0 0
    %1730 = vmatpush1.bf16.xpose.msra.mxu0 0
    %1731 = vmatprep.subr.bf16.mxu0 0
    %1732 = vmatpush1.bf16.xpose.msra.mxu0 0
    %1733 = vmatprep.subr.bf16.mxu0 0
    %1734 = vmatpush1.bf16.xpose.msra.mxu0 0
    %1735 = vmatprep.mubr.bf16.mxu0 0
    %1736 = vmatmul.mubr.bf16.gmra.mrb[0].mxu0 %v1698
    %v1737 = vpop.f32.mrb[0].mxu0
    %v1738 = vadd.f32 0.0, %v1737
    %v1739 = vpop.f32.mrb[0].mxu0
    %v1740 = vpop.f32.mrb[0].mxu0
    %v1741 = vadd.f32 0.0, %v1740
    %v1742 = vpop.f32.mrb[0].mxu0
    %1743 = vdwg.mxu0
    %v1744 = vmul.f32 %v1738, 0.35355338
    %v1745 = vmul.f32 %v1741, 0.35355338
    %v1746 = vadd.f32 %v1744, %v459
    %v1747 = vadd.f32 %v1745, %v460
    %v1748 = vsel %vm329, %v1746, -inf
    %1749 = vmax.xlane.f32.xlu0 %v1748
    %v1750 = vpop.xlane.xlu0 %1749
    %v1751 = vsel %vm329, %v1747, -inf
    %1752 = vmax.xlane.f32.xlu0 %v1751
    %v1753 = vpop.xlane.xlu0 %1752
    %v1754 = vsub.f32 %v1746, %v1750
    %v1755 = vsub.f32 %v1747, %v1753
    %v1756 = vmul.f32 %v1754, 1.442695
    %v1757 = vpow.pop %v1756
    %v1758 = vmul.f32 %v1755, 1.442695
    %v1759 = vpow.pop %v1758
    %v1760 = vsel %vm329, %v1757, 0.0
    %1761 = vadd.xlane.f32.xlu0 %v1760
    %v1762 = vpop.xlane.xlu0 %1761
    %v1763 = vsel %vm329, %v1759, 0.0
    %1764 = vadd.xlane.f32.xlu0 %v1763
    %v1765 = vpop.xlane.xlu0 %1764
    %v1766 = vrcp.pop %v1762
    %v1767 = vrcp.pop %v1765
    %v1768 = vmul.f32 %v1757, %v1766
    %v1769 = vmul.f32 %v1759, %v1767
    %v1770 = vpack.c.bf16 %v1769, %v1768
    %1771 = vrot.lane.b32.xlu0 %v1443, 48
    %v1772 = vpop.permute.xlu0 %1771
    %v1775 = vsel %vm329, %v1770, 0
    %1777 = vmatprep.subr.bf16.mxu0 0
    %1778 = vmatpush1.bf16.msra.mxu0 %v1772
    %1779 = vmatprep.subr.bf16.mxu0 0
    %1780 = vmatpush1.bf16.msra.mxu0 0
    %1781 = vmatprep.subr.bf16.mxu0 0
    %1782 = vmatpush1.bf16.msra.mxu0 0
    %1783 = vmatprep.subr.bf16.mxu0 0
    %1784 = vmatpush1.bf16.msra.mxu0 0
    %1785 = vmatprep.subr.bf16.mxu0 0
    %1786 = vmatpush1.bf16.msra.mxu0 0
    %1787 = vmatprep.subr.bf16.mxu0 0
    %1788 = vmatpush1.bf16.msra.mxu0 0
    %1789 = vmatprep.subr.bf16.mxu0 0
    %1790 = vmatpush1.bf16.msra.mxu0 0
    %1791 = vmatprep.subr.bf16.mxu0 0
    %1792 = vmatpush1.bf16.msra.mxu0 0
    %1793 = vmatprep.subr.bf16.mxu0 0
    %1794 = vmatpush1.bf16.msra.mxu0 0
    %1795 = vmatprep.subr.bf16.mxu0 0
    %1796 = vmatpush1.bf16.msra.mxu0 0
    %1797 = vmatprep.subr.bf16.mxu0 0
    %1798 = vmatpush1.bf16.msra.mxu0 0
    %1799 = vmatprep.subr.bf16.mxu0 0
    %1800 = vmatpush1.bf16.msra.mxu0 0
    %1801 = vmatprep.subr.bf16.mxu0 0
    %1802 = vmatpush1.bf16.msra.mxu0 0
    %1803 = vmatprep.subr.bf16.mxu0 0
    %1804 = vmatpush1.bf16.msra.mxu0 0
    %1805 = vmatprep.subr.bf16.mxu0 0
    %1806 = vmatpush1.bf16.msra.mxu0 0
    %1807 = vmatprep.subr.bf16.mxu0 0
    %1808 = vmatpush1.bf16.msra.mxu0 0
    %1809 = vmatprep.mubr.bf16.mxu0 0
    %1810 = vmatmul.mubr.bf16.gmra.mrb[0].mxu0 %v1775
    %v1811 = vpop.f32.mrb[0].mxu0
    %v1812 = vadd.f32 0.0, %v1811
    %v1813 = vpop.f32.mrb[0].mxu0
    %v1814 = vpop.f32.mrb[0].mxu0
    %v1815 = vadd.f32 0.0, %v1814
    %v1816 = vpop.f32.mrb[0].mxu0
    %1817 = vdwg.mxu0
    %1818 = vrot.lane.b32.xlu0 %v1443, 104
    %v1819 = vpop.permute.xlu0 %1818
    %1820 = vrot.lane.b32.xlu0 %v1443, 72
    %v1821 = vpop.permute.xlu0 %1820
    %v1823 = vsel %vm547, %v1819, 0
    %v1826 = vsel %vm547, %v1821, 0
    %1828 = vmatprep.subr.bf16.mxu0 0
    %1829 = vmatpush1.bf16.xpose.msra.mxu0 %v1826
    %1830 = vmatprep.subr.bf16.mxu0 0
    %1831 = vmatpush1.bf16.xpose.msra.mxu0 0
    %1832 = vmatprep.subr.bf16.mxu0 0
    %1833 = vmatpush1.bf16.xpose.msra.mxu0 0
    %1834 = vmatprep.subr.bf16.mxu0 0
    %1835 = vmatpush1.bf16.xpose.msra.mxu0 0
    %1836 = vmatprep.subr.bf16.mxu0 0
    %1837 = vmatpush1.bf16.xpose.msra.mxu0 0
    %1838 = vmatprep.subr.bf16.mxu0 0
    %1839 = vmatpush1.bf16.xpose.msra.mxu0 0
    %1840 = vmatprep.subr.bf16.mxu0 0
    %1841 = vmatpush1.bf16.xpose.msra.mxu0 0
    %1842 = vmatprep.subr.bf16.mxu0 0
    %1843 = vmatpush1.bf16.xpose.msra.mxu0 0
    %1844 = vmatprep.subr.bf16.mxu0 0
    %1845 = vmatpush1.bf16.xpose.msra.mxu0 0
    %1846 = vmatprep.subr.bf16.mxu0 0
    %1847 = vmatpush1.bf16.xpose.msra.mxu0 0
    %1848 = vmatprep.subr.bf16.mxu0 0
    %1849 = vmatpush1.bf16.xpose.msra.mxu0 0
    %1850 = vmatprep.subr.bf16.mxu0 0
    %1851 = vmatpush1.bf16.xpose.msra.mxu0 0
    %1852 = vmatprep.subr.bf16.mxu0 0
    %1853 = vmatpush1.bf16.xpose.msra.mxu0 0
    %1854 = vmatprep.subr.bf16.mxu0 0
    %1855 = vmatpush1.bf16.xpose.msra.mxu0 0
    %1856 = vmatprep.subr.bf16.mxu0 0
    %1857 = vmatpush1.bf16.xpose.msra.mxu0 0
    %1858 = vmatprep.subr.bf16.mxu0 0
    %1859 = vmatpush1.bf16.xpose.msra.mxu0 0
    %1860 = vmatprep.mubr.bf16.mxu0 0
    %1861 = vmatmul.mubr.bf16.gmra.mrb[0].mxu0 %v1823
    %v1862 = vpop.f32.mrb[0].mxu0
    %v1863 = vadd.f32 0.0, %v1862
    %v1864 = vpop.f32.mrb[0].mxu0
    %v1865 = vpop.f32.mrb[0].mxu0
    %v1866 = vadd.f32 0.0, %v1865
    %v1867 = vpop.f32.mrb[0].mxu0
    %1868 = vdwg.mxu0
    %v1869 = vmul.f32 %v1863, 0.35355338
    %v1870 = vmul.f32 %v1866, 0.35355338
    %v1871 = vadd.f32 %v1869, %v459
    %v1872 = vadd.f32 %v1870, %v460
    %v1873 = vsel %vm329, %v1871, -inf
    %1874 = vmax.xlane.f32.xlu0 %v1873
    %v1875 = vpop.xlane.xlu0 %1874
    %v1876 = vsel %vm329, %v1872, -inf
    %1877 = vmax.xlane.f32.xlu0 %v1876
    %v1878 = vpop.xlane.xlu0 %1877
    %v1879 = vsub.f32 %v1871, %v1875
    %v1880 = vsub.f32 %v1872, %v1878
    %v1881 = vmul.f32 %v1879, 1.442695
    %v1882 = vpow.pop %v1881
    %v1883 = vmul.f32 %v1880, 1.442695
    %v1884 = vpow.pop %v1883
    %v1885 = vsel %vm329, %v1882, 0.0
    %1886 = vadd.xlane.f32.xlu0 %v1885
    %v1887 = vpop.xlane.xlu0 %1886
    %v1888 = vsel %vm329, %v1884, 0.0
    %1889 = vadd.xlane.f32.xlu0 %v1888
    %v1890 = vpop.xlane.xlu0 %1889
    %v1891 = vrcp.pop %v1887
    %v1892 = vrcp.pop %v1890
    %v1893 = vmul.f32 %v1882, %v1891
    %v1894 = vmul.f32 %v1884, %v1892
    %v1895 = vpack.c.bf16 %v1894, %v1893
    %1896 = vrot.lane.b32.xlu0 %v1443, 40
    %v1897 = vpop.permute.xlu0 %1896
    %v1900 = vsel %vm329, %v1895, 0
    %1902 = vmatprep.subr.bf16.mxu0 0
    %1903 = vmatpush1.bf16.msra.mxu0 %v1897
    %1904 = vmatprep.subr.bf16.mxu0 0
    %1905 = vmatpush1.bf16.msra.mxu0 0
    %1906 = vmatprep.subr.bf16.mxu0 0
    %1907 = vmatpush1.bf16.msra.mxu0 0
    %1908 = vmatprep.subr.bf16.mxu0 0
    %1909 = vmatpush1.bf16.msra.mxu0 0
    %1910 = vmatprep.subr.bf16.mxu0 0
    %1911 = vmatpush1.bf16.msra.mxu0 0
    %1912 = vmatprep.subr.bf16.mxu0 0
    %1913 = vmatpush1.bf16.msra.mxu0 0
    %1914 = vmatprep.subr.bf16.mxu0 0
    %1915 = vmatpush1.bf16.msra.mxu0 0
    %1916 = vmatprep.subr.bf16.mxu0 0
    %1917 = vmatpush1.bf16.msra.mxu0 0
    %1918 = vmatprep.subr.bf16.mxu0 0
    %1919 = vmatpush1.bf16.msra.mxu0 0
    %1920 = vmatprep.subr.bf16.mxu0 0
    %1921 = vmatpush1.bf16.msra.mxu0 0
    %1922 = vmatprep.subr.bf16.mxu0 0
    %1923 = vmatpush1.bf16.msra.mxu0 0
    %1924 = vmatprep.subr.bf16.mxu0 0
    %1925 = vmatpush1.bf16.msra.mxu0 0
    %1926 = vmatprep.subr.bf16.mxu0 0
    %1927 = vmatpush1.bf16.msra.mxu0 0
    %1928 = vmatprep.subr.bf16.mxu0 0
    %1929 = vmatpush1.bf16.msra.mxu0 0
    %1930 = vmatprep.subr.bf16.mxu0 0
    %1931 = vmatpush1.bf16.msra.mxu0 0
    %1932 = vmatprep.subr.bf16.mxu0 0
    %1933 = vmatpush1.bf16.msra.mxu0 0
    %1934 = vmatprep.mubr.bf16.mxu0 0
    %1935 = vmatmul.mubr.bf16.gmra.mrb[0].mxu0 %v1900
    %v1936 = vpop.f32.mrb[0].mxu0
    %v1937 = vadd.f32 0.0, %v1936
    %v1938 = vpop.f32.mrb[0].mxu0
    %v1939 = vpop.f32.mrb[0].mxu0
    %v1940 = vadd.f32 0.0, %v1939
    %v1941 = vpop.f32.mrb[0].mxu0
    %1942 = vdwg.mxu0
    %1945 = vrot.lane.b32.xlu0 %v1687, 8
    %v1946 = vpop.permute.xlu0 %1945
    %1947 = vrot.lane.b32.xlu0 %v1690, 8
    %v1948 = vpop.permute.xlu0 %1947
    %1953 = vrot.lane.b32.xlu0 %v1812, 16
    %v1954 = vpop.permute.xlu0 %1953
    %1955 = vrot.lane.b32.xlu0 %v1815, 16
    %v1956 = vpop.permute.xlu0 %1955
    %1961 = vrot.lane.b32.xlu0 %v1937, 24
    %v1962 = vpop.permute.xlu0 %1961
    %1963 = vrot.lane.b32.xlu0 %v1940, 24
    %v1964 = vpop.permute.xlu0 %1963
    %v1967 = vsel %vm547, %v1562, %v1946
    %v1968 = vsel %vm547, %v1565, %v1948
    %v1969 = vsel %vm329, %v1967, %v1954
    %v1970 = vsel %vm329, %v1968, %v1956
    %v1971 = vsel %vm1072, %v1969, %v1962
    %v1972 = vsel %vm1072, %v1970, %v1964
    %v1973 = vpack.c.bf16 %v1972, %v1971
    %v1974 = vld [vmem:[%s3 + $0x37] sm:$0x1]
    %v1975 = vlaneseq
    %v1976 = vshrl.u32 %v1975, 7
    %v1977 = vsub.s32 0, %v1976
    %v1978 = vrot.slane %v1974, %v1977
    %v1983 = vunpack.c.l.b16 %v1365
    %v1984 = vunpack.c.l.b16 %v1366
    %v1985 = vunpack.c.l.b16 %v1367
    %v1986 = vunpack.c.l.b16 %v1368
    %v1987 = vpack.c.b16 %v1984, %v1983
    %v1988 = vpack.c.b16 %v1986, %v1985
    %v1992 = vsel %vm126, %v1973, 0
    %1994 = vmatprep.subr.bf16.mxu0 0
    %1995 = vmatpush1.bf16.msra.mxu0 %v1987
    %1996 = vmatprep.subr.bf16.mxu0 0
    %1997 = vmatpush1.bf16.msra.mxu0 %v1988
    %1998 = vmatprep.subr.bf16.mxu0 0
    %1999 = vmatpush1.bf16.msra.mxu0 0
    %2000 = vmatprep.subr.bf16.mxu0 0
    %2001 = vmatpush1.bf16.msra.mxu0 0
    %2002 = vmatprep.subr.bf16.mxu0 0
    %2003 = vmatpush1.bf16.msra.mxu0 0
    %2004 = vmatprep.subr.bf16.mxu0 0
    %2005 = vmatpush1.bf16.msra.mxu0 0
    %2006 = vmatprep.subr.bf16.mxu0 0
    %2007 = vmatpush1.bf16.msra.mxu0 0
    %2008 = vmatprep.subr.bf16.mxu0 0
    %2009 = vmatpush1.bf16.msra.mxu0 0
    %2010 = vmatprep.subr.bf16.mxu0 0
    %2011 = vmatpush1.bf16.msra.mxu0 0
    %2012 = vmatprep.subr.bf16.mxu0 0
    %2013 = vmatpush1.bf16.msra.mxu0 0
    %2014 = vmatprep.subr.bf16.mxu0 0
    %2015 = vmatpush1.bf16.msra.mxu0 0
    %2016 = vmatprep.subr.bf16.mxu0 0
    %2017 = vmatpush1.bf16.msra.mxu0 0
    %2018 = vmatprep.subr.bf16.mxu0 0
    %2019 = vmatpush1.bf16.msra.mxu0 0
    %2020 = vmatprep.subr.bf16.mxu0 0
    %2021 = vmatpush1.bf16.msra.mxu0 0
    %2022 = vmatprep.subr.bf16.mxu0 0
    %2023 = vmatpush1.bf16.msra.mxu0 0
    %2024 = vmatprep.subr.bf16.mxu0 0
    %2025 = vmatpush1.bf16.msra.mxu0 0
    %2026 = vmatprep.mubr.bf16.mxu0 0
    %2027 = vmatmul.mubr.bf16.gmra.mrb[0].mxu0 %v1992
    %v2028 = vpop.f32.mrb[0].mxu0
    %v2029 = vadd.f32 %v1978, %v2028
    %v2030 = vpop.f32.mrb[0].mxu0
    %v2031 = vpop.f32.mrb[0].mxu0
    %v2032 = vadd.f32 %v1978, %v2031
    %v2033 = vpop.f32.mrb[0].mxu0
    %2034 = vdwg.mxu0
    %v2035 = vadd.f32 %v1358, %v2029
    %v2036 = vadd.f32 %v1359, %v2032
    %v2037 = vld [vmem:[%s3 + $0x8] sm:$0x1]
    %v2038 = vld [vmem:[%s3 + $0x9] sm:$0x1]
    %v2039 = vsel %vm126, %v2035, 0.0
    %2040 = vadd.xlane.f32.xlu0 %v2039
    %v2041 = vpop.xlane.xlu0 %2040
    %v2042 = vsel %vm126, %v2036, 0.0
    %2043 = vadd.xlane.f32.xlu0 %v2042
    %v2044 = vpop.xlane.xlu0 %2043
    %v2045 = vmul.f32 %v2041, %v382
    %v2046 = vmul.f32 %v2044, %v382
    %v2047 = vsub.f32 %v2035, %v2045
    %v2048 = vsub.f32 %v2036, %v2046
    %v2049 = vmul.f32 %v2047, %v2047
    %v2050 = vmul.f32 %v2048, %v2048
    %v2051 = vsel %vm126, %v2049, 0.0
    %2052 = vadd.xlane.f32.xlu0 %v2051
    %v2053 = vpop.xlane.xlu0 %2052
    %v2054 = vsel %vm126, %v2050, 0.0
    %2055 = vadd.xlane.f32.xlu0 %v2054
    %v2056 = vpop.xlane.xlu0 %2055
    %v2057 = vmul.f32 %v2053, %v382
    %v2058 = vmul.f32 %v2056, %v382
    %v2059 = vadd.f32 %v2057, 1e-05
    %v2060 = vadd.f32 %v2058, 1e-05
    %v2061 = vrsqrt.pop %v2059
    %v2062 = vrsqrt.pop %v2060
    %v2063 = vmul.f32 %v2047, %v2061
    %v2064 = vmul.f32 %v2048, %v2062
    %v2065 = vlaneseq
    %v2066 = vshrl.u32 %v2065, 7
    %v2067 = vsub.s32 0, %v2066
    %v2068 = vrot.slane %v2037, %v2067
    %v2069 = vmul.f32 %v2063, %v2068
    %v2070 = vmul.f32 %v2064, %v2068
    %v2071 = vlaneseq
    %v2072 = vshrl.u32 %v2071, 7
    %v2073 = vsub.s32 0, %v2072
    %v2074 = vrot.slane %v2038, %v2073
    %v2075 = vadd.f32 %v2069, %v2074
    %v2076 = vadd.f32 %v2070, %v2074
    %v2077 = vpack.c.bf16 %v2076, %v2075
    %v2078 = vld [vmem:[%s3 + $0x39] sm:$0x1]
    %v2079 = vlaneseq
    %v2080 = vshrl.u32 %v2079, 7
    %v2081 = vsub.s32 0, %v2080
    %v2082 = vrot.slane %v2078, %v2081
    %v2087 = vunpack.c.l.b16 %v1369
    %v2088 = vunpack.c.l.b16 %v1370
    %v2089 = vunpack.c.l.b16 %v1371
    %v2090 = vunpack.c.l.b16 %v1372
    %v2091 = vpack.c.b16 %v2088, %v2087
    %v2092 = vpack.c.b16 %v2090, %v2089
    %v2096 = vsel %vm126, %v2077, 0
    %2098 = vmatprep.subr.bf16.mxu0 0
    %2099 = vmatpush1.bf16.msra.mxu0 %v2091
    %2100 = vmatprep.subr.bf16.mxu0 0
    %2101 = vmatpush1.bf16.msra.mxu0 %v2092
    %2102 = vmatprep.subr.bf16.mxu0 0
    %2103 = vmatpush1.bf16.msra.mxu0 0
    %2104 = vmatprep.subr.bf16.mxu0 0
    %2105 = vmatpush1.bf16.msra.mxu0 0
    %2106 = vmatprep.subr.bf16.mxu0 0
    %2107 = vmatpush1.bf16.msra.mxu0 0
    %2108 = vmatprep.subr.bf16.mxu0 0
    %2109 = vmatpush1.bf16.msra.mxu0 0
    %2110 = vmatprep.subr.bf16.mxu0 0
    %2111 = vmatpush1.bf16.msra.mxu0 0
    %2112 = vmatprep.subr.bf16.mxu0 0
    %2113 = vmatpush1.bf16.msra.mxu0 0
    %2114 = vmatprep.subr.bf16.mxu0 0
    %2115 = vmatpush1.bf16.msra.mxu0 0
    %2116 = vmatprep.subr.bf16.mxu0 0
    %2117 = vmatpush1.bf16.msra.mxu0 0
    %2118 = vmatprep.subr.bf16.mxu0 0
    %2119 = vmatpush1.bf16.msra.mxu0 0
    %2120 = vmatprep.subr.bf16.mxu0 0
    %2121 = vmatpush1.bf16.msra.mxu0 0
    %2122 = vmatprep.subr.bf16.mxu0 0
    %2123 = vmatpush1.bf16.msra.mxu0 0
    %2124 = vmatprep.subr.bf16.mxu0 0
    %2125 = vmatpush1.bf16.msra.mxu0 0
    %2126 = vmatprep.subr.bf16.mxu0 0
    %2127 = vmatpush1.bf16.msra.mxu0 0
    %2128 = vmatprep.subr.bf16.mxu0 0
    %2129 = vmatpush1.bf16.msra.mxu0 0
    %2130 = vmatprep.mubr.bf16.mxu0 0
    %2131 = vmatmul.mubr.bf16.gmra.mrb[0].mxu0 %v2096
    %v2132 = vpop.f32.mrb[0].mxu0
    %v2133 = vadd.f32 %v2082, %v2132
    %v2134 = vpop.f32.mrb[0].mxu0
    %v2135 = vpop.f32.mrb[0].mxu0
    %v2136 = vadd.f32 %v2082, %v2135
    %v2137 = vpop.f32.mrb[0].mxu0
    %2138 = vdwg.mxu0
    %v2139 = vmax.f32 %v2133, 0.0
    %v2140 = vmax.f32 %v2136, 0.0
    %v2141 = vpack.c.bf16 %v2140, %v2139
    %v2142 = vld [vmem:[%s3 + $0x3b] sm:$0x1]
    %v2143 = vlaneseq
    %v2144 = vshrl.u32 %v2143, 7
    %v2145 = vsub.s32 0, %v2144
    %v2146 = vrot.slane %v2142, %v2145
    %v2155 = vunpack.c.l.b16 %v1373
    %v2156 = vunpack.c.l.b16 %v1374
    %v2157 = vunpack.c.l.b16 %v1375
    %v2158 = vunpack.c.l.b16 %v1376
    %v2159 = vunpack.c.l.b16 %v1377
    %v2160 = vunpack.c.l.b16 %v1378
    %v2161 = vunpack.c.l.b16 %v1379
    %v2162 = vunpack.c.l.b16 %v1380
    %v2163 = vpack.c.b16 %v2156, %v2155
    %v2164 = vpack.c.b16 %v2158, %v2157
    %v2165 = vpack.c.b16 %v2160, %v2159
    %v2166 = vpack.c.b16 %v2162, %v2161
    %v2172 = vsel %vm1273, %v2141, 0
    %2174 = vmatprep.subr.bf16.mxu0 0
    %2175 = vmatpush1.bf16.msra.mxu0 %v2163
    %2176 = vmatprep.subr.bf16.mxu0 0
    %2177 = vmatpush1.bf16.msra.mxu0 %v2164
    %2178 = vmatprep.subr.bf16.mxu0 0
    %2179 = vmatpush1.bf16.msra.mxu0 %v2165
    %2180 = vmatprep.subr.bf16.mxu0 0
    %2181 = vmatpush1.bf16.msra.mxu0 %v2166
    %2182 = vmatprep.subr.bf16.mxu0 0
    %2183 = vmatpush1.bf16.msra.mxu0 0
    %2184 = vmatprep.subr.bf16.mxu0 0
    %2185 = vmatpush1.bf16.msra.mxu0 0
    %2186 = vmatprep.subr.bf16.mxu0 0
    %2187 = vmatpush1.bf16.msra.mxu0 0
    %2188 = vmatprep.subr.bf16.mxu0 0
    %2189 = vmatpush1.bf16.msra.mxu0 0
    %2190 = vmatprep.subr.bf16.mxu0 0
    %2191 = vmatpush1.bf16.msra.mxu0 0
    %2192 = vmatprep.subr.bf16.mxu0 0
    %2193 = vmatpush1.bf16.msra.mxu0 0
    %2194 = vmatprep.subr.bf16.mxu0 0
    %2195 = vmatpush1.bf16.msra.mxu0 0
    %2196 = vmatprep.subr.bf16.mxu0 0
    %2197 = vmatpush1.bf16.msra.mxu0 0
    %2198 = vmatprep.subr.bf16.mxu0 0
    %2199 = vmatpush1.bf16.msra.mxu0 0
    %2200 = vmatprep.subr.bf16.mxu0 0
    %2201 = vmatpush1.bf16.msra.mxu0 0
    %2202 = vmatprep.subr.bf16.mxu0 0
    %2203 = vmatpush1.bf16.msra.mxu0 0
    %2204 = vmatprep.subr.bf16.mxu0 0
    %2205 = vmatpush1.bf16.msra.mxu0 0
    %2206 = vmatprep.mubr.bf16.mxu0 0
    %2207 = vmatmul.mubr.bf16.gmra.mrb[0].mxu0 %v2172
    %v2208 = vpop.f32.mrb[0].mxu0
    %v2209 = vadd.f32 %v2146, %v2208
    %v2210 = vpop.f32.mrb[0].mxu0
    %v2211 = vpop.f32.mrb[0].mxu0
    %v2212 = vadd.f32 %v2146, %v2211
    %v2213 = vpop.f32.mrb[0].mxu0
    %2214 = vdwg.mxu0
    %v2215 = vadd.f32 %v2075, %v2209
    %v2216 = vadd.f32 %v2076, %v2212
    %v2217 = vld [vmem:[%s3 + $0xa] sm:$0x1]
    %v2218 = vld [vmem:[%s3 + $0xb] sm:$0x1]
    %v2219 = vsel %vm126, %v2215, 0.0
    %2220 = vadd.xlane.f32.xlu0 %v2219
    %v2221 = vpop.xlane.xlu0 %2220
    %v2222 = vsel %vm126, %v2216, 0.0
    %2223 = vadd.xlane.f32.xlu0 %v2222
    %v2224 = vpop.xlane.xlu0 %2223
    %v2225 = vmul.f32 %v2221, %v382
    %v2226 = vmul.f32 %v2224, %v382
    %v2227 = vsub.f32 %v2215, %v2225
    %v2228 = vsub.f32 %v2216, %v2226
    %v2229 = vmul.f32 %v2227, %v2227
    %v2230 = vmul.f32 %v2228, %v2228
    %v2231 = vsel %vm126, %v2229, 0.0
    %2232 = vadd.xlane.f32.xlu0 %v2231
    %v2233 = vpop.xlane.xlu0 %2232
    %v2234 = vsel %vm126, %v2230, 0.0
    %2235 = vadd.xlane.f32.xlu0 %v2234
    %v2236 = vpop.xlane.xlu0 %2235
    %v2237 = vmul.f32 %v2233, %v382
    %v2238 = vmul.f32 %v2236, %v382
    %v2239 = vadd.f32 %v2237, 1e-05
    %v2240 = vadd.f32 %v2238, 1e-05
    %v2241 = vrsqrt.pop %v2239
    %v2242 = vrsqrt.pop %v2240
    %v2243 = vmul.f32 %v2227, %v2241
    %v2244 = vmul.f32 %v2228, %v2242
    %v2245 = vlaneseq
    %v2246 = vshrl.u32 %v2245, 7
    %v2247 = vsub.s32 0, %v2246
    %v2248 = vrot.slane %v2217, %v2247
    %v2249 = vmul.f32 %v2243, %v2248
    %v2250 = vmul.f32 %v2244, %v2248
    %v2251 = vlaneseq
    %v2252 = vshrl.u32 %v2251, 7
    %v2253 = vsub.s32 0, %v2252
    %v2254 = vrot.slane %v2218, %v2253
    %v2255 = vadd.f32 %v2249, %v2254
    %v2256 = vadd.f32 %v2250, %v2254
    %v2257 = vld [vmem:[%s3 + $0xc] sm:$0x1]
    %v2258 = vld [vmem:[%s3 + $0xd] sm:$0x1]
    %v2259 = vsel %vm126, %v2255, 0.0
    %2260 = vadd.xlane.f32.xlu0 %v2259
    %v2261 = vpop.xlane.xlu0 %2260
    %v2262 = vsel %vm126, %v2256, 0.0
    %2263 = vadd.xlane.f32.xlu0 %v2262
    %v2264 = vpop.xlane.xlu0 %2263
    %v2265 = vmul.f32 %v2261, %v382
    %v2266 = vmul.f32 %v2264, %v382
    %v2267 = vsub.f32 %v2255, %v2265
    %v2268 = vsub.f32 %v2256, %v2266
    %v2269 = vmul.f32 %v2267, %v2267
    %v2270 = vmul.f32 %v2268, %v2268
    %v2271 = vsel %vm126, %v2269, 0.0
    %2272 = vadd.xlane.f32.xlu0 %v2271
    %v2273 = vpop.xlane.xlu0 %2272
    %v2274 = vsel %vm126, %v2270, 0.0
    %2275 = vadd.xlane.f32.xlu0 %v2274
    %v2276 = vpop.xlane.xlu0 %2275
    %v2277 = vmul.f32 %v2273, %v382
    %v2278 = vmul.f32 %v2276, %v382
    %v2279 = vadd.f32 %v2277, 1e-05
    %v2280 = vadd.f32 %v2278, 1e-05
    %v2281 = vrsqrt.pop %v2279
    %v2282 = vrsqrt.pop %v2280
    %v2283 = vmul.f32 %v2267, %v2281
    %v2284 = vmul.f32 %v2268, %v2282
    %v2285 = vlaneseq
    %v2286 = vshrl.u32 %v2285, 7
    %v2287 = vsub.s32 0, %v2286
    %v2288 = vrot.slane %v2257, %v2287
    %v2289 = vmul.f32 %v2283, %v2288
    %v2290 = vmul.f32 %v2284, %v2288
    %v2291 = vlaneseq
    %v2292 = vshrl.u32 %v2291, 7
    %v2293 = vsub.s32 0, %v2292
    %v2294 = vrot.slane %v2258, %v2293
    %v2295 = vadd.f32 %v2289, %v2294
    %v2296 = vadd.f32 %v2290, %v2294
    %v2297 = vld [vmem:[%s1 + $0x28] sm:$0x1]
    %v2298 = vpack.c.bf16 %v2296, %v2295
    %v2300 = vsel %vm329, %v2297, 0
    %2302 = vmatprep.subr.bf16.mxu0 0
    %2303 = vmatpush1.bf16.msra.mxu0 %v2298
    %2304 = vmatprep.subr.bf16.mxu0 0
    %2305 = vmatpush1.bf16.msra.mxu0 0
    %2306 = vmatprep.subr.bf16.mxu0 0
    %2307 = vmatpush1.bf16.msra.mxu0 0
    %2308 = vmatprep.subr.bf16.mxu0 0
    %2309 = vmatpush1.bf16.msra.mxu0 0
    %2310 = vmatprep.subr.bf16.mxu0 0
    %2311 = vmatpush1.bf16.msra.mxu0 0
    %2312 = vmatprep.subr.bf16.mxu0 0
    %2313 = vmatpush1.bf16.msra.mxu0 0
    %2314 = vmatprep.subr.bf16.mxu0 0
    %2315 = vmatpush1.bf16.msra.mxu0 0
    %2316 = vmatprep.subr.bf16.mxu0 0
    %2317 = vmatpush1.bf16.msra.mxu0 0
    %2318 = vmatprep.subr.bf16.mxu0 0
    %2319 = vmatpush1.bf16.msra.mxu0 0
    %2320 = vmatprep.subr.bf16.mxu0 0
    %2321 = vmatpush1.bf16.msra.mxu0 0
    %2322 = vmatprep.subr.bf16.mxu0 0
    %2323 = vmatpush1.bf16.msra.mxu0 0
    %2324 = vmatprep.subr.bf16.mxu0 0
    %2325 = vmatpush1.bf16.msra.mxu0 0
    %2326 = vmatprep.subr.bf16.mxu0 0
    %2327 = vmatpush1.bf16.msra.mxu0 0
    %2328 = vmatprep.subr.bf16.mxu0 0
    %2329 = vmatpush1.bf16.msra.mxu0 0
    %2330 = vmatprep.subr.bf16.mxu0 0
    %2331 = vmatpush1.bf16.msra.mxu0 0
    %2332 = vmatprep.subr.bf16.mxu0 0
    %2333 = vmatpush1.bf16.msra.mxu0 0
    %2334 = vmatprep.mubr.bf16.mxu0 0
    %2335 = vmatmul.mubr.bf16.gmra.mrb[0].mxu0 %v2300
    %v2336 = vpop.f32.mrb[0].mxu0
    %v2337 = vadd.f32 0.0, %v2336
    %v2338 = vpop.f32.mrb[0].mxu0
    %v2339 = vpop.f32.mrb[0].mxu0
    %v2340 = vpop.f32.mrb[0].mxu0
    %2341 = vdwg.mxu0
    %v2342 = vld [vmem:[%s1 + $0x30] sm:$0xf]
    %v2343 = vld [vmem:[%s1 + $0x34] sm:$0xf]
    %v2344 = vld [vmem:[%s1 + $0x38] sm:$0xf]
    %v2345 = vld [vmem:[%s1 + $0x3c] sm:$0xf]
    %v2346 = vpack.c.bf16 %v2337, %v2337
    %v2347 = vld [vmem:[%s3 + $0x33] sm:$0x1]
    %v2348 = vlaneseq
    %v2349 = vshrl.u32 %v2348, 7
    %v2350 = vsub.s32 0, %v2349
    %v2351 = vrot.slane %v2347, %v2350
    %v2356 = vunpack.c.l.b16 %v2342
    %v2357 = vunpack.c.l.b16 %v2343
    %v2358 = vunpack.c.l.b16 %v2344
    %v2359 = vunpack.c.l.b16 %v2345
    %v2360 = vpack.c.b16 %v2357, %v2356
    %v2361 = vpack.c.b16 %v2359, %v2358
    %v2365 = vsel %vm126, %v2346, 0
    %2367 = vmatprep.subr.bf16.mxu0 0
    %2368 = vmatpush1.bf16.msra.mxu0 %v2360
    %2369 = vmatprep.subr.bf16.mxu0 0
    %2370 = vmatpush1.bf16.msra.mxu0 %v2361
    %2371 = vmatprep.subr.bf16.mxu0 0
    %2372 = vmatpush1.bf16.msra.mxu0 0
    %2373 = vmatprep.subr.bf16.mxu0 0
    %2374 = vmatpush1.bf16.msra.mxu0 0
    %2375 = vmatprep.subr.bf16.mxu0 0
    %2376 = vmatpush1.bf16.msra.mxu0 0
    %2377 = vmatprep.subr.bf16.mxu0 0
    %2378 = vmatpush1.bf16.msra.mxu0 0
    %2379 = vmatprep.subr.bf16.mxu0 0
    %2380 = vmatpush1.bf16.msra.mxu0 0
    %2381 = vmatprep.subr.bf16.mxu0 0
    %2382 = vmatpush1.bf16.msra.mxu0 0
    %2383 = vmatprep.subr.bf16.mxu0 0
    %2384 = vmatpush1.bf16.msra.mxu0 0
    %2385 = vmatprep.subr.bf16.mxu0 0
    %2386 = vmatpush1.bf16.msra.mxu0 0
    %2387 = vmatprep.subr.bf16.mxu0 0
    %2388 = vmatpush1.bf16.msra.mxu0 0
    %2389 = vmatprep.subr.bf16.mxu0 0
    %2390 = vmatpush1.bf16.msra.mxu0 0
    %2391 = vmatprep.subr.bf16.mxu0 0
    %2392 = vmatpush1.bf16.msra.mxu0 0
    %2393 = vmatprep.subr.bf16.mxu0 0
    %2394 = vmatpush1.bf16.msra.mxu0 0
    %2395 = vmatprep.subr.bf16.mxu0 0
    %2396 = vmatpush1.bf16.msra.mxu0 0
    %2397 = vmatprep.subr.bf16.mxu0 0
    %2398 = vmatpush1.bf16.msra.mxu0 0
    %2399 = vmatprep.mubr.bf16.mxu0 0
    %2400 = vmatmul.mubr.bf16.gmra.mrb[0].mxu0 %v2365
    %v2401 = vpop.f32.mrb[0].mxu0
    %v2402 = vadd.f32 %v2351, %v2401
    %v2403 = vpop.f32.mrb[0].mxu0
    %v2404 = vpop.f32.mrb[0].mxu0
    %v2405 = vpop.f32.mrb[0].mxu0
    %2406 = vdwg.mxu0
    %vm2407 = vcmask 33792
    %2408 = vst.msk [vmem:[#allocation5] sm:$0x3] %vm2407, %v2402
    // Predicated region
    $region22: #{fwd.1} parent=1 // pred_check
      _
    $region23: #{fwd.1} parent=1 // pred_check_branch
      %2410 = sbr.rel (0) target = $region25
    $region24: #{fwd.1} parent=1 // pred_region
      %s2412 = ssub.s32 32, 32
      %2413 = vsyncadd [#allocation4], %s2412
      %s2415 = sshll.u32 [#allocation5], 4
      %s2416 = int_to_ptr.vmem [resolvable:$true] %s2415
      %2418 = dma.vmem_to_hbm [thread:$0]  %s2416, 32, %s4, [#allocation4]
    $region25: #{fwd.1} parent=1 // pred_fallthru
      _
    // Predicated region
    $region26: #{fwd.1} parent=1 // pred_check
      _
    $region27: #{fwd.1} parent=1 // pred_check_branch
      %2420 = sbr.rel (0) target = $region29
    $region28: #{fwd.1} parent=1 // pred_region
      %2421 = dma.done [#allocation4], 32
    $region29: #{fwd.1} parent=1 // pred_fallthru
      _
    %2422 = vsyncpa [#allocation3], 1
    %2423 = vsyncpa [#allocation4], 1

</llo_original>
